<compile_context>
chip_gen: v6e
topology: v6e:2x2x1
jax: 0.10.0
libtpu: 0.0.40
codegen_flags: <defaults>
</compile_context>

<pallas_src>
import math

import jax
import jax.numpy as jnp
from jax.experimental import pallas as pl
from jax.experimental.pallas import tpu as pltpu


def _round_up(v, m):
    return ((v + m - 1) // m) * m


# ----------------------------------------------------------------------------
# Fused encoder kernel
# ----------------------------------------------------------------------------
def make_text_encoder_kernel(n_layers, n_heads, k_ch, window, ks, C, F, T):
    w = window
    R = 2 * w + 1
    q_scale = 1.0 / math.sqrt(k_ch)
    f32 = jnp.float32
    bf16 = jnp.bfloat16

    def _mm(a, b):  # (M,K)@(K,N): bf16 operands, f32 accumulation on the MXU
        return jnp.dot(a.astype(bf16), b.astype(bf16), preferred_element_type=f32)

    def _mm_nt(a, b):  # (M,K) x (N,K) -> (M,N) without explicit transpose
        return jax.lax.dot_general(a.astype(bf16), b.astype(bf16),
                                   (((1,), (1,)), ((), ())),
                                   preferred_element_type=f32)

    def _layer_norm(x, g, b, eps=1e-5):
        mu = jnp.mean(x, axis=-1, keepdims=True)
        xc = x - mu
        var = jnp.mean(xc * xc, axis=-1, keepdims=True)
        return xc * jax.lax.rsqrt(var + eps) * g + b

    def kernel(xin_ref, len_ref,
               w_qkv_ref, b_qkv_ref, w_o_ref, b_o_ref,
               rel_k_ref, rel_v_ref, ln1_g_ref, ln1_b_ref,
               w1_ref, b1_ref, w2_ref, b2_ref, ln2_g_ref, ln2_b_ref,
               w_proj_ref, b_proj_ref,
               x_out_ref, stats_ref, pad_ref):
        b_idx = pl.program_id(0)
        length = len_ref[b_idx]

        # ---- per-program constants, hoisted out of the layer / head loops ----
        t_col = jax.lax.broadcasted_iota(jnp.int32, (T, 1), 0)
        mask = (t_col < length).astype(f32)                          # (T, 1)
        col_idx = jax.lax.broadcasted_iota(jnp.int32, (1, T), 1)
        col_bias = jnp.where(col_idx < length, 0.0, -1e9).astype(f32)  # (1, T)

        i_idx = jax.lax.broadcasted_iota(jnp.int32, (T, T), 0)
        j_idx = jax.lax.broadcasted_iota(jnp.int32, (T, T), 1)
        rel_pos = j_idx - i_idx
        # 0/1 indicators of relative offset (r - w); built ONCE, reused by every
        # head of every layer (previously rebuilt 2*(2w+1) times per head/layer).
        diag = [(rel_pos == (r - w)).astype(f32) for r in range(R)]
        eye = (jax.lax.broadcasted_iota(jnp.int32, (R, R), 0) ==
               jax.lax.broadcasted_iota(jnp.int32, (R, R), 1)).astype(f32)

        # conv halo scratch: zero once — the pad rows are never overwritten.
        pad_ref[...] = jnp.zeros(pad_ref.shape, f32)

        def conv_same(y, w_flat, bias):
            """'same'-padded depth-ks conv as one deep matmul via tap concat."""
            cin = y.shape[1]
            if ks == 1:
                return _mm(y, w_flat) + bias
            pad_l = (ks - 1) // 2
            pad_ref[pad_l:pad_l + T, 0:cin] = y
            xcat = jnp.concatenate(
                [pad_ref[k:k + T, 0:cin] for k in range(ks)], axis=-1)  # (T, ks*cin)
            return _mm(xcat, w_flat) + bias

        x = xin_ref[0] * mask                                        # (T, C) f32

        for li in range(n_layers):
            # ---------------- relative-position multi-head attention ---------
            qkv = _mm(x, w_qkv_ref[li]) + b_qkv_ref[li]              # (T, 3C) f32
            rel_k = rel_k_ref[li]                                    # (R, k_ch) bf16
            rel_v = rel_v_ref[li]                                    # (R, k_ch) bf16
            head_outs = []
            for h in range(n_heads):
                lo = h * k_ch
                q_h = qkv[:, lo:lo + k_ch] * q_scale                 # (T, k_ch)
                k_h = qkv[:, C + lo:C + lo + k_ch]
                v_h = qkv[:, 2 * C + lo:2 * C + lo + k_ch]

                scores = _mm_nt(q_h, k_h)                            # (T, T) f32
                r_log = _mm_nt(q_h, rel_k)                           # (T, R) f32
                for r in range(R):                                   # key-side bias
                    scores = scores + r_log[:, r:r + 1] * diag[r]
                scores = scores + col_bias                           # padding mask
                scores = scores - jnp.max(scores, axis=-1, keepdims=True)
                e = jnp.exp(scores)
                p = e * pl.reciprocal(jnp.sum(e, axis=-1, keepdims=True),
                                      approx=True)                   # (T, T) f32

                o_h = _mm(p, v_h)                                    # (T, k_ch)
                # value-side relative term: gather the (2w+1) diagonals of p into
                # (T, 2w+1), then a single (T,2w+1)@(2w+1,k_ch) MXU matmul.
                w_col = jnp.zeros((T, R), f32)
                for r in range(R):
                    w_col = w_col + jnp.sum(p * diag[r], axis=-1,
                                            keepdims=True) * eye[r:r + 1, :]
                o_h = o_h + _mm(w_col, rel_v)
                head_outs.append(o_h)

            attn = jnp.concatenate(head_outs, axis=-1)               # (T, C)
            attn = _mm(attn, w_o_ref[li]) + b_o_ref[li]              # fused out-proj
            x = _layer_norm(x + attn, ln1_g_ref[li], ln1_b_ref[li])

            # ---------------- FFN: conv(ks) -> relu -> conv(ks) --------------
            y = conv_same(x * mask, w1_ref[li], b1_ref[li])          # (T, F)
            y = jnp.maximum(y, 0.0)
            y = conv_same(y * mask, w2_ref[li], b2_ref[li])          # (T, C)
            x = _layer_norm(x + y * mask, ln2_g_ref[li], ln2_b_ref[li])

        x = x * mask
        x_out_ref[0] = x
        stats_ref[0] = (_mm(x, w_proj_ref[...]) + b_proj_ref[...]) * mask

    return kernel


# ----------------------------------------------------------------------------
# Module wrapper
# ----------------------------------------------------------------------------
class TextEncoderPallas:
    def __init__(self, n_vocab, out_channels, hidden_channels, filter_channels,
                 n_heads, n_layers, kernel_size, p_dropout, tm_last,
                 *, window_size=4, key):
        self.n_vocab = n_vocab
        self.out_channels = out_channels
        self.hidden_channels = hidden_channels
        self.filter_channels = filter_channels
        self.n_heads = n_heads
        self.n_layers = n_layers
        self.kernel_size = kernel_size
        self.p_dropout = p_dropout       # TODO(synk): unused (eval mode)
        self.tm_last = tm_last
        self.window_size = window_size

        C = hidden_channels + tm_last
        assert C % n_heads == 0
        self.C = C
        self.k_ch = C // n_heads
        S = 2 * out_channels
        self.S = S
        self.S_pad = _round_up(S, 128)   # lane-dense stats output

        H, F, L = hidden_channels, filter_channels, n_layers
        ks, w, kc = kernel_size, window_size, self.k_ch

        ks_rng = jax.random.split(key, 10)
        s = 0.1
        f32, bf16 = jnp.float32, jnp.bfloat16
        self.emb = jax.random.normal(ks_rng[0], (n_vocab, H), f32) * (H ** -0.5)
        self.w_qkv = (jax.random.normal(ks_rng[1], (L, C, 3 * C), f32) * s).astype(bf16)
        self.b_qkv = jnp.zeros((L, 1, 3 * C), f32)
        self.w_o = (jax.random.normal(ks_rng[2], (L, C, C), f32) * s).astype(bf16)
        self.b_o = jnp.zeros((L, 1, C), f32)
        rel_std = kc ** -0.5
        self.rel_k = (jax.random.normal(ks_rng[3], (L, 2 * w + 1, kc), f32)
                      * rel_std).astype(bf16)
        self.rel_v = (jax.random.normal(ks_rng[4], (L, 2 * w + 1, kc), f32)
                      * rel_std).astype(bf16)
        self.ln1_g = jnp.ones((L, 1, C), f32)
        self.ln1_b = jnp.zeros((L, 1, C), f32)
        self.w1 = (jax.random.normal(ks_rng[5], (L, ks * C, F), f32) * s).astype(bf16)
        self.b1 = jnp.zeros((L, 1, F), f32)
        self.w2 = (jax.random.normal(ks_rng[6], (L, ks * F, C), f32) * s).astype(bf16)
        self.b2 = jnp.zeros((L, 1, C), f32)
        self.ln2_g = jnp.ones((L, 1, C), f32)
        self.ln2_b = jnp.zeros((L, 1, C), f32)
        w_proj = jax.random.normal(ks_rng[7], (C, S), f32) * s
        w_proj = jnp.pad(w_proj, ((0, 0), (0, self.S_pad - S)))
        self.w_proj = w_proj.astype(bf16)
        self.b_proj = jnp.zeros((1, self.S_pad), f32)

    def __call__(self, tokens, x_lengths, torchmoji_hidden):
        B, T = tokens.shape
        C, F, ks = self.C, self.filter_channels, self.kernel_size
        Cout, S, S_pad = self.out_channels, self.S, self.S_pad

        # input prep (wrapper glue): embedding gather + scale + torchmoji concat
        xe = jnp.take(self.emb, tokens, axis=0) * math.sqrt(self.hidden_channels)
        tm = jnp.broadcast_to(torchmoji_hidden[:, None, :].astype(jnp.float32),
                              (B, T, self.tm_last))
        xin = jnp.concatenate([xe, tm], axis=-1).astype(jnp.float32)   # (B, T, C)
        lens = x_lengths.astype(jnp.int32)

        kernel = make_text_encoder_kernel(
            self.n_layers, self.n_heads, self.k_ch, self.window_size,
            ks, C, F, T)

        weights = (self.w_qkv, self.b_qkv, self.w_o, self.b_o,
                   self.rel_k, self.rel_v, self.ln1_g, self.ln1_b,
                   self.w1, self.b1, self.w2, self.b2,
                   self.ln2_g, self.ln2_b, self.w_proj, self.b_proj)

        # VMEM cap with headroom: ~48 MiB on v7x (64 MiB core), 96 MiB on v5e/v6e.
        try:
            vmem_cap = int(pltpu.get_tpu_info().vmem_capacity_bytes)
        except Exception:
            vmem_cap = 128 * 1024 * 1024
        vmem_limit = max(32 * 1024 * 1024,
                         min(vmem_cap * 3 // 4, 96 * 1024 * 1024))

        # advisory cost estimate (helps XLA schedule around one big custom call)
        L, Hh, kc = self.n_layers, self.n_heads, self.k_ch
        R = 2 * self.window_size + 1
        per_layer = (2 * T * C * 3 * C + 4 * Hh * T * T * kc + 4 * Hh * T * R * kc
                     + 2 * T * C * C + 2 * T * ks * C * F + 2 * T * ks * F * C)
        flops = B * (L * per_layer + 2 * T * C * S_pad)
        transcend = B * L * Hh * T * T
        bytes_acc = (int(xin.size) * 4 + int(lens.size) * 4
                     + sum(int(a.size) * a.dtype.itemsize for a in weights)
                     + B * T * C * 4 + B * T * S_pad * 4)

        rows = _round_up(T + ks - 1, 8)
        cols = _round_up(max(C, F), 128)
        vmem_full = pl.BlockSpec(memory_space=pltpu.MemorySpace.VMEM)

        x_btc, stats_btc = pl.pallas_call(
            kernel,
            grid=(B,),
            in_specs=[
                pl.BlockSpec((1, T, C), lambda b: (b, 0, 0)),
                pl.BlockSpec(memory_space=pltpu.MemorySpace.SMEM),
            ] + [vmem_full] * 16,
            out_specs=(
                pl.BlockSpec((1, T, C), lambda b: (b, 0, 0)),
                pl.BlockSpec((1, T, S_pad), lambda b: (b, 0, 0)),
            ),
            out_shape=(
                jax.ShapeDtypeStruct((B, T, C), jnp.float32),
                jax.ShapeDtypeStruct((B, T, S_pad), jnp.float32),
            ),
            scratch_shapes=[pltpu.VMEM((rows, cols), jnp.float32)],
            compiler_params=pltpu.CompilerParams(
                dimension_semantics=("parallel",),
                vmem_limit_bytes=int(vmem_limit)),
            cost_estimate=pl.CostEstimate(
                flops=int(flops), transcendentals=int(transcend),
                bytes_accessed=int(bytes_acc)),
        )(xin, lens, *weights)

        x_mask = (jnp.arange(T)[None, :] < lens[:, None]).astype(
            jnp.float32)[:, None, :]                                   # (B, 1, T)
        to_nct = lambda a: jnp.transpose(a, (0, 2, 1))
        stats = stats_btc[..., :S]
        m = to_nct(stats[..., :Cout])
        logs = to_nct(stats[..., Cout:])
        return to_nct(x_btc), m, logs, x_mask


# ----------------------------------------------------------------------------
if __name__ == "__main__":
    key = jax.random.PRNGKey(0)
    k_param, k_tok, k_tm = jax.random.split(key, 3)

    n_vocab, Cout, H, F, n_heads, n_layers, ks, tm_last = 64, 4, 32, 64, 2, 2, 3, 16
    B, T = 2, 16
    C = H + tm_last

    enc = TextEncoderPallas(n_vocab, Cout, H, F, n_heads, n_layers, ks,
                            p_dropout=0.1, tm_last=tm_last, key=k_param)

    tokens = jax.random.randint(k_tok, (B, T), 0, n_vocab, dtype=jnp.int32)
    x_lengths = jnp.array([16, 11], jnp.int32)
    tm_hidden = jax.random.normal(k_tm, (B, tm_last), jnp.float32)

    x, m, logs, x_mask = enc(tokens, x_lengths, tm_hidden)
    jax.block_until_ready((x, m, logs, x_mask))

    assert x.shape == (B, C, T)
    assert m.shape == (B, Cout, T)
    assert logs.shape == (B, Cout, T)
    assert x_mask.shape == (B, 1, T)
    print("KERNEL_OK")
</pallas_src>

<mosaic_0001>
module attributes {stable_mosaic.version = 11 : i64} {
  func.func @kernel(%arg0: i32, %arg1: memref<1x16x48xf32, #tpu.memory_space<vmem>>, %arg2: memref<2xi32, #tpu.memory_space<smem>>, %arg3: memref<2x48x144xbf16, #tpu.memory_space<vmem>>, %arg4: memref<2x1x144xf32, #tpu.memory_space<vmem>>, %arg5: memref<2x48x48xbf16, #tpu.memory_space<vmem>>, %arg6: memref<2x1x48xf32, #tpu.memory_space<vmem>>, %arg7: memref<2x9x24xbf16, #tpu.memory_space<vmem>>, %arg8: memref<2x9x24xbf16, #tpu.memory_space<vmem>>, %arg9: memref<2x1x48xf32, #tpu.memory_space<vmem>>, %arg10: memref<2x1x48xf32, #tpu.memory_space<vmem>>, %arg11: memref<2x144x64xbf16, #tpu.memory_space<vmem>>, %arg12: memref<2x1x64xf32, #tpu.memory_space<vmem>>, %arg13: memref<2x192x48xbf16, #tpu.memory_space<vmem>>, %arg14: memref<2x1x48xf32, #tpu.memory_space<vmem>>, %arg15: memref<2x1x48xf32, #tpu.memory_space<vmem>>, %arg16: memref<2x1x48xf32, #tpu.memory_space<vmem>>, %arg17: memref<48x128xbf16, #tpu.memory_space<vmem>>, %arg18: memref<1x128xf32, #tpu.memory_space<vmem>>, %arg19: memref<1x16x48xf32, #tpu.memory_space<vmem>>, %arg20: memref<1x16x128xf32, #tpu.memory_space<vmem>>, %arg21: memref<24x128xf32, #tpu.memory_space<vmem>>) attributes {dimension_semantics = [#tpu.dimension_semantics<parallel>], iteration_bounds = array<i64: 2>, scalar_prefetch = 0 : i64, scratch_operands = 1 : i64, tpu.core_type = #tpu.core_type<tc>, window_params = [{transform_indices = @transform_0, window_bounds = array<i64: 1, 16, 48>}, {transform_indices = @transform_1, window_bounds = array<i64: 2>}, {pipeline_mode = #tpu.pipeline_mode<synchronous>, transform_indices = @transform_2, window_bounds = array<i64: 2, 48, 144>}, {pipeline_mode = #tpu.pipeline_mode<synchronous>, transform_indices = @transform_3, window_bounds = array<i64: 2, 1, 144>}, {pipeline_mode = #tpu.pipeline_mode<synchronous>, transform_indices = @transform_4, window_bounds = array<i64: 2, 48, 48>}, {pipeline_mode = #tpu.pipeline_mode<synchronous>, transform_indices = @transform_5, window_bounds = array<i64: 2, 1, 48>}, {pipeline_mode = #tpu.pipeline_mode<synchronous>, transform_indices = @transform_6, window_bounds = array<i64: 2, 9, 24>}, {pipeline_mode = #tpu.pipeline_mode<synchronous>, transform_indices = @transform_7, window_bounds = array<i64: 2, 9, 24>}, {pipeline_mode = #tpu.pipeline_mode<synchronous>, transform_indices = @transform_8, window_bounds = array<i64: 2, 1, 48>}, {pipeline_mode = #tpu.pipeline_mode<synchronous>, transform_indices = @transform_9, window_bounds = array<i64: 2, 1, 48>}, {pipeline_mode = #tpu.pipeline_mode<synchronous>, transform_indices = @transform_10, window_bounds = array<i64: 2, 144, 64>}, {pipeline_mode = #tpu.pipeline_mode<synchronous>, transform_indices = @transform_11, window_bounds = array<i64: 2, 1, 64>}, {pipeline_mode = #tpu.pipeline_mode<synchronous>, transform_indices = @transform_12, window_bounds = array<i64: 2, 192, 48>}, {pipeline_mode = #tpu.pipeline_mode<synchronous>, transform_indices = @transform_13, window_bounds = array<i64: 2, 1, 48>}, {pipeline_mode = #tpu.pipeline_mode<synchronous>, transform_indices = @transform_14, window_bounds = array<i64: 2, 1, 48>}, {pipeline_mode = #tpu.pipeline_mode<synchronous>, transform_indices = @transform_15, window_bounds = array<i64: 2, 1, 48>}, {pipeline_mode = #tpu.pipeline_mode<synchronous>, transform_indices = @transform_16, window_bounds = array<i64: 48, 128>}, {pipeline_mode = #tpu.pipeline_mode<synchronous>, transform_indices = @transform_17, window_bounds = array<i64: 1, 128>}, {transform_indices = @transform_18, window_bounds = array<i64: 1, 16, 48>}, {transform_indices = @transform_19, window_bounds = array<i64: 1, 16, 128>}]} {
    %0 = arith.index_cast %arg0 : i32 to index
    %1 = memref.load %arg2[%0] : memref<2xi32, #tpu.memory_space<smem>>
    %2 = tpu.iota {dimensions = array<i32: 0>} : vector<16x1xi32>
    %3 = vector.broadcast %1 : i32 to vector<16x1xi32>
    %4 = arith.cmpi slt, %2, %3 : vector<16x1xi32>
    %5 = arith.extui %4 : vector<16x1xi1> to vector<16x1xi32>
    %6 = arith.sitofp %5 : vector<16x1xi32> to vector<16x1xf32>
    %7 = tpu.iota {dimensions = array<i32: 1>} : vector<1x16xi32>
    %8 = vector.broadcast %1 : i32 to vector<1x16xi32>
    %9 = arith.cmpi slt, %7, %8 : vector<1x16xi32>
    %cst = arith.constant 0.000000e+00 : f32
    %cst_0 = arith.constant -1.000000e+09 : f32
    %10 = vector.broadcast %cst : f32 to vector<1x16xf32>
    %11 = vector.broadcast %cst_0 : f32 to vector<1x16xf32>
    %12 = arith.select %9, %10, %11 : vector<1x16xi1>, vector<1x16xf32>
    %13 = tpu.iota {dimensions = array<i32: 0>} : vector<16x16xi32>
    %14 = tpu.iota {dimensions = array<i32: 1>} : vector<16x16xi32>
    %15 = arith.subi %14, %13 : vector<16x16xi32>
    %c-4_i32 = arith.constant -4 : i32
    %16 = vector.broadcast %c-4_i32 : i32 to vector<16x16xi32>
    %17 = arith.cmpi eq, %15, %16 : vector<16x16xi32>
    %18 = arith.extui %17 : vector<16x16xi1> to vector<16x16xi32>
    %19 = arith.sitofp %18 : vector<16x16xi32> to vector<16x16xf32>
    %c-3_i32 = arith.constant -3 : i32
    %20 = vector.broadcast %c-3_i32 : i32 to vector<16x16xi32>
    %21 = arith.cmpi eq, %15, %20 : vector<16x16xi32>
    %22 = arith.extui %21 : vector<16x16xi1> to vector<16x16xi32>
    %23 = arith.sitofp %22 : vector<16x16xi32> to vector<16x16xf32>
    %c-2_i32 = arith.constant -2 : i32
    %24 = vector.broadcast %c-2_i32 : i32 to vector<16x16xi32>
    %25 = arith.cmpi eq, %15, %24 : vector<16x16xi32>
    %26 = arith.extui %25 : vector<16x16xi1> to vector<16x16xi32>
    %27 = arith.sitofp %26 : vector<16x16xi32> to vector<16x16xf32>
    %c-1_i32 = arith.constant -1 : i32
    %28 = vector.broadcast %c-1_i32 : i32 to vector<16x16xi32>
    %29 = arith.cmpi eq, %15, %28 : vector<16x16xi32>
    %30 = arith.extui %29 : vector<16x16xi1> to vector<16x16xi32>
    %31 = arith.sitofp %30 : vector<16x16xi32> to vector<16x16xf32>
    %c0_i32 = arith.constant 0 : i32
    %32 = vector.broadcast %c0_i32 : i32 to vector<16x16xi32>
    %33 = arith.cmpi eq, %15, %32 : vector<16x16xi32>
    %34 = arith.extui %33 : vector<16x16xi1> to vector<16x16xi32>
    %35 = arith.sitofp %34 : vector<16x16xi32> to vector<16x16xf32>
    %c1_i32 = arith.constant 1 : i32
    %36 = vector.broadcast %c1_i32 : i32 to vector<16x16xi32>
    %37 = arith.cmpi eq, %15, %36 : vector<16x16xi32>
    %38 = arith.extui %37 : vector<16x16xi1> to vector<16x16xi32>
    %39 = arith.sitofp %38 : vector<16x16xi32> to vector<16x16xf32>
    %c2_i32 = arith.constant 2 : i32
    %40 = vector.broadcast %c2_i32 : i32 to vector<16x16xi32>
    %41 = arith.cmpi eq, %15, %40 : vector<16x16xi32>
    %42 = arith.extui %41 : vector<16x16xi1> to vector<16x16xi32>
    %43 = arith.sitofp %42 : vector<16x16xi32> to vector<16x16xf32>
    %c3_i32 = arith.constant 3 : i32
    %44 = vector.broadcast %c3_i32 : i32 to vector<16x16xi32>
    %45 = arith.cmpi eq, %15, %44 : vector<16x16xi32>
    %46 = arith.extui %45 : vector<16x16xi1> to vector<16x16xi32>
    %47 = arith.sitofp %46 : vector<16x16xi32> to vector<16x16xf32>
    %c4_i32 = arith.constant 4 : i32
    %48 = vector.broadcast %c4_i32 : i32 to vector<16x16xi32>
    %49 = arith.cmpi eq, %15, %48 : vector<16x16xi32>
    %50 = arith.extui %49 : vector<16x16xi1> to vector<16x16xi32>
    %51 = arith.sitofp %50 : vector<16x16xi32> to vector<16x16xf32>
    %52 = tpu.iota {dimensions = array<i32: 0>} : vector<9x9xi32>
    %53 = tpu.iota {dimensions = array<i32: 1>} : vector<9x9xi32>
    %54 = arith.cmpi eq, %52, %53 : vector<9x9xi32>
    %55 = arith.extui %54 : vector<9x9xi1> to vector<9x9xi32>
    %56 = arith.sitofp %55 : vector<9x9xi32> to vector<9x9xf32>
    %cst_1 = arith.constant 0.000000e+00 : f32
    %57 = vector.broadcast %cst_1 : f32 to vector<24x128xf32>
    %c0 = arith.constant 0 : index
    %c0_2 = arith.constant 0 : index
    %58 = vector.load %arg21[%c0, %c0_2] : memref<24x128xf32, #tpu.memory_space<vmem>>, vector<24x128xf32>
    tpu.vector_store %arg21[%c0, %c0_2], %57 {strides = array<i32>} : memref<24x128xf32, #tpu.memory_space<vmem>>, vector<24x128xf32>,
    %c0_3 = arith.constant 0 : index
    %c0_4 = arith.constant 0 : index
    %c0_5 = arith.constant 0 : index
    %59 = vector.load %arg1[%c0_3, %c0_4, %c0_5] : memref<1x16x48xf32, #tpu.memory_space<vmem>>, vector<1x16x48xf32>
    %60 = vector.shape_cast %59 : vector<1x16x48xf32> to vector<16x48xf32>
    %61 = vector.broadcast %6 : vector<16x1xf32> to vector<16x48xf32>
    %62 = arith.mulf %60, %61 : vector<16x48xf32>
    %c0_6 = arith.constant 0 : index
    %c0_7 = arith.constant 0 : index
    %c0_8 = arith.constant 0 : index
    %63 = vector.load %arg3[%c0_6, %c0_7, %c0_8] : memref<2x48x144xbf16, #tpu.memory_space<vmem>>, vector<1x48x144xbf16>
    %64 = vector.shape_cast %63 : vector<1x48x144xbf16> to vector<48x144xbf16>
    %65 = arith.truncf %62 : vector<16x48xf32> to vector<16x48xbf16>
    %cst_9 = arith.constant dense<0.000000e+00> : vector<16x144xf32>
    %66 = tpu.matmul %65, %64, %cst_9 {dimension_numbers = #tpu.dot_dimension_numbers<[1], [0], [0], [1], [0, 0, 1, 1], [], []>} : vector<16x48xbf16>, vector<48x144xbf16>, vector<16x144xf32> -> vector<16x144xf32>
    %c0_10 = arith.constant 0 : index
    %c0_11 = arith.constant 0 : index
    %c0_12 = arith.constant 0 : index
    %67 = vector.load %arg4[%c0_10, %c0_11, %c0_12] : memref<2x1x144xf32, #tpu.memory_space<vmem>>, vector<1x1x144xf32>
    %68 = vector.shape_cast %67 : vector<1x1x144xf32> to vector<1x144xf32>
    %69 = vector.broadcast %68 : vector<1x144xf32> to vector<16x144xf32>
    %70 = arith.addf %66, %69 : vector<16x144xf32>
    %c0_13 = arith.constant 0 : index
    %c0_14 = arith.constant 0 : index
    %c0_15 = arith.constant 0 : index
    %71 = vector.load %arg7[%c0_13, %c0_14, %c0_15] : memref<2x9x24xbf16, #tpu.memory_space<vmem>>, vector<1x9x24xbf16>
    %72 = vector.shape_cast %71 : vector<1x9x24xbf16> to vector<9x24xbf16>
    %c0_16 = arith.constant 0 : index
    %c0_17 = arith.constant 0 : index
    %c0_18 = arith.constant 0 : index
    %73 = vector.load %arg8[%c0_16, %c0_17, %c0_18] : memref<2x9x24xbf16, #tpu.memory_space<vmem>>, vector<1x9x24xbf16>
    %74 = vector.shape_cast %73 : vector<1x9x24xbf16> to vector<9x24xbf16>
    %75 = vector.extract_strided_slice %70 {offsets = [0, 0], sizes = [16, 24], strides = [1, 1]} : vector<16x144xf32> to vector<16x24xf32>
    %cst_19 = arith.constant 0.204124153 : f32
    %76 = vector.broadcast %cst_19 : f32 to vector<16x24xf32>
    %77 = arith.mulf %75, %76 : vector<16x24xf32>
    %78 = vector.extract_strided_slice %70 {offsets = [0, 48], sizes = [16, 24], strides = [1, 1]} : vector<16x144xf32> to vector<16x24xf32>
    %79 = vector.extract_strided_slice %70 {offsets = [0, 96], sizes = [16, 24], strides = [1, 1]} : vector<16x144xf32> to vector<16x24xf32>
    %80 = arith.truncf %77 : vector<16x24xf32> to vector<16x24xbf16>
    %81 = arith.truncf %78 : vector<16x24xf32> to vector<16x24xbf16>
    %cst_20 = arith.constant dense<0.000000e+00> : vector<16x16xf32>
    %82 = tpu.matmul %80, %81, %cst_20 {dimension_numbers = #tpu.dot_dimension_numbers<[1], [1], [0], [0], [0, 0, 1, 0], [], []>} : vector<16x24xbf16>, vector<16x24xbf16>, vector<16x16xf32> -> vector<16x16xf32>
    %83 = arith.truncf %77 : vector<16x24xf32> to vector<16x24xbf16>
    %cst_21 = arith.constant dense<0.000000e+00> : vector<16x9xf32>
    %84 = tpu.matmul %83, %72, %cst_21 {dimension_numbers = #tpu.dot_dimension_numbers<[1], [1], [0], [0], [0, 0, 1, 0], [], []>} : vector<16x24xbf16>, vector<9x24xbf16>, vector<16x9xf32> -> vector<16x9xf32>
    %85 = vector.extract_strided_slice %84 {offsets = [0, 0], sizes = [16, 1], strides = [1, 1]} : vector<16x9xf32> to vector<16x1xf32>
    %86 = vector.broadcast %85 : vector<16x1xf32> to vector<16x16xf32>
    %87 = arith.mulf %86, %19 : vector<16x16xf32>
    %88 = arith.addf %82, %87 : vector<16x16xf32>
    %89 = vector.extract_strided_slice %84 {offsets = [0, 1], sizes = [16, 1], strides = [1, 1]} : vector<16x9xf32> to vector<16x1xf32>
    %90 = vector.broadcast %89 : vector<16x1xf32> to vector<16x16xf32>
    %91 = arith.mulf %90, %23 : vector<16x16xf32>
    %92 = arith.addf %88, %91 : vector<16x16xf32>
    %93 = vector.extract_strided_slice %84 {offsets = [0, 2], sizes = [16, 1], strides = [1, 1]} : vector<16x9xf32> to vector<16x1xf32>
    %94 = vector.broadcast %93 : vector<16x1xf32> to vector<16x16xf32>
    %95 = arith.mulf %94, %27 : vector<16x16xf32>
    %96 = arith.addf %92, %95 : vector<16x16xf32>
    %97 = vector.extract_strided_slice %84 {offsets = [0, 3], sizes = [16, 1], strides = [1, 1]} : vector<16x9xf32> to vector<16x1xf32>
    %98 = vector.broadcast %97 : vector<16x1xf32> to vector<16x16xf32>
    %99 = arith.mulf %98, %31 : vector<16x16xf32>
    %100 = arith.addf %96, %99 : vector<16x16xf32>
    %101 = vector.extract_strided_slice %84 {offsets = [0, 4], sizes = [16, 1], strides = [1, 1]} : vector<16x9xf32> to vector<16x1xf32>
    %102 = vector.broadcast %101 : vector<16x1xf32> to vector<16x16xf32>
    %103 = arith.mulf %102, %35 : vector<16x16xf32>
    %104 = arith.addf %100, %103 : vector<16x16xf32>
    %105 = vector.extract_strided_slice %84 {offsets = [0, 5], sizes = [16, 1], strides = [1, 1]} : vector<16x9xf32> to vector<16x1xf32>
    %106 = vector.broadcast %105 : vector<16x1xf32> to vector<16x16xf32>
    %107 = arith.mulf %106, %39 : vector<16x16xf32>
    %108 = arith.addf %104, %107 : vector<16x16xf32>
    %109 = vector.extract_strided_slice %84 {offsets = [0, 6], sizes = [16, 1], strides = [1, 1]} : vector<16x9xf32> to vector<16x1xf32>
    %110 = vector.broadcast %109 : vector<16x1xf32> to vector<16x16xf32>
    %111 = arith.mulf %110, %43 : vector<16x16xf32>
    %112 = arith.addf %108, %111 : vector<16x16xf32>
    %113 = vector.extract_strided_slice %84 {offsets = [0, 7], sizes = [16, 1], strides = [1, 1]} : vector<16x9xf32> to vector<16x1xf32>
    %114 = vector.broadcast %113 : vector<16x1xf32> to vector<16x16xf32>
    %115 = arith.mulf %114, %47 : vector<16x16xf32>
    %116 = arith.addf %112, %115 : vector<16x16xf32>
    %117 = vector.extract_strided_slice %84 {offsets = [0, 8], sizes = [16, 1], strides = [1, 1]} : vector<16x9xf32> to vector<16x1xf32>
    %118 = vector.broadcast %117 : vector<16x1xf32> to vector<16x16xf32>
    %119 = arith.mulf %118, %51 : vector<16x16xf32>
    %120 = arith.addf %116, %119 : vector<16x16xf32>
    %121 = vector.broadcast %12 : vector<1x16xf32> to vector<16x16xf32>
    %122 = arith.addf %120, %121 : vector<16x16xf32>
    %cst_22 = arith.constant dense<0xFF800000> : vector<16xf32>
    %123 = vector.multi_reduction <maximumf>, %122, %cst_22 [1] : vector<16x16xf32> to vector<16xf32>
    %124 = vector.shape_cast %123 : vector<16xf32> to vector<16x1xf32>
    %125 = vector.broadcast %124 : vector<16x1xf32> to vector<16x16xf32>
    %126 = arith.subf %122, %125 : vector<16x16xf32>
    %127 = math.exp %126 : vector<16x16xf32>
    %cst_23 = arith.constant dense<0.000000e+00> : vector<16xf32>
    %128 = vector.multi_reduction <add>, %127, %cst_23 [1] : vector<16x16xf32> to vector<16xf32>
    %129 = vector.shape_cast %128 : vector<16xf32> to vector<16x1xf32>
    %130 = tpu.reciprocal %129 {approx = true} : vector<16x1xf32> -> vector<16x1xf32>
    %131 = vector.broadcast %130 : vector<16x1xf32> to vector<16x16xf32>
    %132 = arith.mulf %127, %131 : vector<16x16xf32>
    %133 = arith.truncf %132 : vector<16x16xf32> to vector<16x16xbf16>
    %134 = arith.truncf %79 : vector<16x24xf32> to vector<16x24xbf16>
    %cst_24 = arith.constant dense<0.000000e+00> : vector<16x24xf32>
    %135 = tpu.matmul %133, %134, %cst_24 {dimension_numbers = #tpu.dot_dimension_numbers<[1], [0], [0], [1], [0, 0, 1, 1], [], []>} : vector<16x16xbf16>, vector<16x24xbf16>, vector<16x24xf32> -> vector<16x24xf32>
    %cst_25 = arith.constant 0.000000e+00 : f32
    %136 = vector.broadcast %cst_25 : f32 to vector<16x9xf32>
    %137 = arith.mulf %132, %19 : vector<16x16xf32>
    %cst_26 = arith.constant dense<0.000000e+00> : vector<16xf32>
    %138 = vector.multi_reduction <add>, %137, %cst_26 [1] : vector<16x16xf32> to vector<16xf32>
    %139 = vector.shape_cast %138 : vector<16xf32> to vector<16x1xf32>
    %140 = vector.extract_strided_slice %56 {offsets = [0, 0], sizes = [1, 9], strides = [1, 1]} : vector<9x9xf32> to vector<1x9xf32>
    %141 = vector.broadcast %139 : vector<16x1xf32> to vector<16x9xf32>
    %142 = vector.broadcast %140 : vector<1x9xf32> to vector<16x9xf32>
    %143 = arith.mulf %141, %142 : vector<16x9xf32>
    %144 = arith.addf %136, %143 : vector<16x9xf32>
    %145 = arith.mulf %132, %23 : vector<16x16xf32>
    %cst_27 = arith.constant dense<0.000000e+00> : vector<16xf32>
    %146 = vector.multi_reduction <add>, %145, %cst_27 [1] : vector<16x16xf32> to vector<16xf32>
    %147 = vector.shape_cast %146 : vector<16xf32> to vector<16x1xf32>
    %148 = vector.extract_strided_slice %56 {offsets = [1, 0], sizes = [1, 9], strides = [1, 1]} : vector<9x9xf32> to vector<1x9xf32>
    %149 = vector.broadcast %147 : vector<16x1xf32> to vector<16x9xf32>
    %150 = vector.broadcast %148 : vector<1x9xf32> to vector<16x9xf32>
    %151 = arith.mulf %149, %150 : vector<16x9xf32>
    %152 = arith.addf %144, %151 : vector<16x9xf32>
    %153 = arith.mulf %132, %27 : vector<16x16xf32>
    %cst_28 = arith.constant dense<0.000000e+00> : vector<16xf32>
    %154 = vector.multi_reduction <add>, %153, %cst_28 [1] : vector<16x16xf32> to vector<16xf32>
    %155 = vector.shape_cast %154 : vector<16xf32> to vector<16x1xf32>
    %156 = vector.extract_strided_slice %56 {offsets = [2, 0], sizes = [1, 9], strides = [1, 1]} : vector<9x9xf32> to vector<1x9xf32>
    %157 = vector.broadcast %155 : vector<16x1xf32> to vector<16x9xf32>
    %158 = vector.broadcast %156 : vector<1x9xf32> to vector<16x9xf32>
    %159 = arith.mulf %157, %158 : vector<16x9xf32>
    %160 = arith.addf %152, %159 : vector<16x9xf32>
    %161 = arith.mulf %132, %31 : vector<16x16xf32>
    %cst_29 = arith.constant dense<0.000000e+00> : vector<16xf32>
    %162 = vector.multi_reduction <add>, %161, %cst_29 [1] : vector<16x16xf32> to vector<16xf32>
    %163 = vector.shape_cast %162 : vector<16xf32> to vector<16x1xf32>
    %164 = vector.extract_strided_slice %56 {offsets = [3, 0], sizes = [1, 9], strides = [1, 1]} : vector<9x9xf32> to vector<1x9xf32>
    %165 = vector.broadcast %163 : vector<16x1xf32> to vector<16x9xf32>
    %166 = vector.broadcast %164 : vector<1x9xf32> to vector<16x9xf32>
    %167 = arith.mulf %165, %166 : vector<16x9xf32>
    %168 = arith.addf %160, %167 : vector<16x9xf32>
    %169 = arith.mulf %132, %35 : vector<16x16xf32>
    %cst_30 = arith.constant dense<0.000000e+00> : vector<16xf32>
    %170 = vector.multi_reduction <add>, %169, %cst_30 [1] : vector<16x16xf32> to vector<16xf32>
    %171 = vector.shape_cast %170 : vector<16xf32> to vector<16x1xf32>
    %172 = vector.extract_strided_slice %56 {offsets = [4, 0], sizes = [1, 9], strides = [1, 1]} : vector<9x9xf32> to vector<1x9xf32>
    %173 = vector.broadcast %171 : vector<16x1xf32> to vector<16x9xf32>
    %174 = vector.broadcast %172 : vector<1x9xf32> to vector<16x9xf32>
    %175 = arith.mulf %173, %174 : vector<16x9xf32>
    %176 = arith.addf %168, %175 : vector<16x9xf32>
    %177 = arith.mulf %132, %39 : vector<16x16xf32>
    %cst_31 = arith.constant dense<0.000000e+00> : vector<16xf32>
    %178 = vector.multi_reduction <add>, %177, %cst_31 [1] : vector<16x16xf32> to vector<16xf32>
    %179 = vector.shape_cast %178 : vector<16xf32> to vector<16x1xf32>
    %180 = vector.extract_strided_slice %56 {offsets = [5, 0], sizes = [1, 9], strides = [1, 1]} : vector<9x9xf32> to vector<1x9xf32>
    %181 = vector.broadcast %179 : vector<16x1xf32> to vector<16x9xf32>
    %182 = vector.broadcast %180 : vector<1x9xf32> to vector<16x9xf32>
    %183 = arith.mulf %181, %182 : vector<16x9xf32>
    %184 = arith.addf %176, %183 : vector<16x9xf32>
    %185 = arith.mulf %132, %43 : vector<16x16xf32>
    %cst_32 = arith.constant dense<0.000000e+00> : vector<16xf32>
    %186 = vector.multi_reduction <add>, %185, %cst_32 [1] : vector<16x16xf32> to vector<16xf32>
    %187 = vector.shape_cast %186 : vector<16xf32> to vector<16x1xf32>
    %188 = vector.extract_strided_slice %56 {offsets = [6, 0], sizes = [1, 9], strides = [1, 1]} : vector<9x9xf32> to vector<1x9xf32>
    %189 = vector.broadcast %187 : vector<16x1xf32> to vector<16x9xf32>
    %190 = vector.broadcast %188 : vector<1x9xf32> to vector<16x9xf32>
    %191 = arith.mulf %189, %190 : vector<16x9xf32>
    %192 = arith.addf %184, %191 : vector<16x9xf32>
    %193 = arith.mulf %132, %47 : vector<16x16xf32>
    %cst_33 = arith.constant dense<0.000000e+00> : vector<16xf32>
    %194 = vector.multi_reduction <add>, %193, %cst_33 [1] : vector<16x16xf32> to vector<16xf32>
    %195 = vector.shape_cast %194 : vector<16xf32> to vector<16x1xf32>
    %196 = vector.extract_strided_slice %56 {offsets = [7, 0], sizes = [1, 9], strides = [1, 1]} : vector<9x9xf32> to vector<1x9xf32>
    %197 = vector.broadcast %195 : vector<16x1xf32> to vector<16x9xf32>
    %198 = vector.broadcast %196 : vector<1x9xf32> to vector<16x9xf32>
    %199 = arith.mulf %197, %198 : vector<16x9xf32>
    %200 = arith.addf %192, %199 : vector<16x9xf32>
    %201 = arith.mulf %132, %51 : vector<16x16xf32>
    %cst_34 = arith.constant dense<0.000000e+00> : vector<16xf32>
    %202 = vector.multi_reduction <add>, %201, %cst_34 [1] : vector<16x16xf32> to vector<16xf32>
    %203 = vector.shape_cast %202 : vector<16xf32> to vector<16x1xf32>
    %204 = vector.extract_strided_slice %56 {offsets = [8, 0], sizes = [1, 9], strides = [1, 1]} : vector<9x9xf32> to vector<1x9xf32>
    %205 = vector.broadcast %203 : vector<16x1xf32> to vector<16x9xf32>
    %206 = vector.broadcast %204 : vector<1x9xf32> to vector<16x9xf32>
    %207 = arith.mulf %205, %206 : vector<16x9xf32>
    %208 = arith.addf %200, %207 : vector<16x9xf32>
    %209 = arith.truncf %208 : vector<16x9xf32> to vector<16x9xbf16>
    %cst_35 = arith.constant dense<0.000000e+00> : vector<16x24xf32>
    %210 = tpu.matmul %209, %74, %cst_35 {dimension_numbers = #tpu.dot_dimension_numbers<[1], [0], [0], [1], [0, 0, 1, 1], [], []>} : vector<16x9xbf16>, vector<9x24xbf16>, vector<16x24xf32> -> vector<16x24xf32>
    %211 = arith.addf %135, %210 : vector<16x24xf32>
    %212 = vector.extract_strided_slice %70 {offsets = [0, 24], sizes = [16, 24], strides = [1, 1]} : vector<16x144xf32> to vector<16x24xf32>
    %cst_36 = arith.constant 0.204124153 : f32
    %213 = vector.broadcast %cst_36 : f32 to vector<16x24xf32>
    %214 = arith.mulf %212, %213 : vector<16x24xf32>
    %215 = vector.extract_strided_slice %70 {offsets = [0, 72], sizes = [16, 24], strides = [1, 1]} : vector<16x144xf32> to vector<16x24xf32>
    %216 = vector.extract_strided_slice %70 {offsets = [0, 120], sizes = [16, 24], strides = [1, 1]} : vector<16x144xf32> to vector<16x24xf32>
    %217 = arith.truncf %214 : vector<16x24xf32> to vector<16x24xbf16>
    %218 = arith.truncf %215 : vector<16x24xf32> to vector<16x24xbf16>
    %cst_37 = arith.constant dense<0.000000e+00> : vector<16x16xf32>
    %219 = tpu.matmul %217, %218, %cst_37 {dimension_numbers = #tpu.dot_dimension_numbers<[1], [1], [0], [0], [0, 0, 1, 0], [], []>} : vector<16x24xbf16>, vector<16x24xbf16>, vector<16x16xf32> -> vector<16x16xf32>
    %220 = arith.truncf %214 : vector<16x24xf32> to vector<16x24xbf16>
    %cst_38 = arith.constant dense<0.000000e+00> : vector<16x9xf32>
    %221 = tpu.matmul %220, %72, %cst_38 {dimension_numbers = #tpu.dot_dimension_numbers<[1], [1], [0], [0], [0, 0, 1, 0], [], []>} : vector<16x24xbf16>, vector<9x24xbf16>, vector<16x9xf32> -> vector<16x9xf32>
    %222 = vector.extract_strided_slice %221 {offsets = [0, 0], sizes = [16, 1], strides = [1, 1]} : vector<16x9xf32> to vector<16x1xf32>
    %223 = vector.broadcast %222 : vector<16x1xf32> to vector<16x16xf32>
    %224 = arith.mulf %223, %19 : vector<16x16xf32>
    %225 = arith.addf %219, %224 : vector<16x16xf32>
    %226 = vector.extract_strided_slice %221 {offsets = [0, 1], sizes = [16, 1], strides = [1, 1]} : vector<16x9xf32> to vector<16x1xf32>
    %227 = vector.broadcast %226 : vector<16x1xf32> to vector<16x16xf32>
    %228 = arith.mulf %227, %23 : vector<16x16xf32>
    %229 = arith.addf %225, %228 : vector<16x16xf32>
    %230 = vector.extract_strided_slice %221 {offsets = [0, 2], sizes = [16, 1], strides = [1, 1]} : vector<16x9xf32> to vector<16x1xf32>
    %231 = vector.broadcast %230 : vector<16x1xf32> to vector<16x16xf32>
    %232 = arith.mulf %231, %27 : vector<16x16xf32>
    %233 = arith.addf %229, %232 : vector<16x16xf32>
    %234 = vector.extract_strided_slice %221 {offsets = [0, 3], sizes = [16, 1], strides = [1, 1]} : vector<16x9xf32> to vector<16x1xf32>
    %235 = vector.broadcast %234 : vector<16x1xf32> to vector<16x16xf32>
    %236 = arith.mulf %235, %31 : vector<16x16xf32>
    %237 = arith.addf %233, %236 : vector<16x16xf32>
    %238 = vector.extract_strided_slice %221 {offsets = [0, 4], sizes = [16, 1], strides = [1, 1]} : vector<16x9xf32> to vector<16x1xf32>
    %239 = vector.broadcast %238 : vector<16x1xf32> to vector<16x16xf32>
    %240 = arith.mulf %239, %35 : vector<16x16xf32>
    %241 = arith.addf %237, %240 : vector<16x16xf32>
    %242 = vector.extract_strided_slice %221 {offsets = [0, 5], sizes = [16, 1], strides = [1, 1]} : vector<16x9xf32> to vector<16x1xf32>
    %243 = vector.broadcast %242 : vector<16x1xf32> to vector<16x16xf32>
    %244 = arith.mulf %243, %39 : vector<16x16xf32>
    %245 = arith.addf %241, %244 : vector<16x16xf32>
    %246 = vector.extract_strided_slice %221 {offsets = [0, 6], sizes = [16, 1], strides = [1, 1]} : vector<16x9xf32> to vector<16x1xf32>
    %247 = vector.broadcast %246 : vector<16x1xf32> to vector<16x16xf32>
    %248 = arith.mulf %247, %43 : vector<16x16xf32>
    %249 = arith.addf %245, %248 : vector<16x16xf32>
    %250 = vector.extract_strided_slice %221 {offsets = [0, 7], sizes = [16, 1], strides = [1, 1]} : vector<16x9xf32> to vector<16x1xf32>
    %251 = vector.broadcast %250 : vector<16x1xf32> to vector<16x16xf32>
    %252 = arith.mulf %251, %47 : vector<16x16xf32>
    %253 = arith.addf %249, %252 : vector<16x16xf32>
    %254 = vector.extract_strided_slice %221 {offsets = [0, 8], sizes = [16, 1], strides = [1, 1]} : vector<16x9xf32> to vector<16x1xf32>
    %255 = vector.broadcast %254 : vector<16x1xf32> to vector<16x16xf32>
    %256 = arith.mulf %255, %51 : vector<16x16xf32>
    %257 = arith.addf %253, %256 : vector<16x16xf32>
    %258 = vector.broadcast %12 : vector<1x16xf32> to vector<16x16xf32>
    %259 = arith.addf %257, %258 : vector<16x16xf32>
    %cst_39 = arith.constant dense<0xFF800000> : vector<16xf32>
    %260 = vector.multi_reduction <maximumf>, %259, %cst_39 [1] : vector<16x16xf32> to vector<16xf32>
    %261 = vector.shape_cast %260 : vector<16xf32> to vector<16x1xf32>
    %262 = vector.broadcast %261 : vector<16x1xf32> to vector<16x16xf32>
    %263 = arith.subf %259, %262 : vector<16x16xf32>
    %264 = math.exp %263 : vector<16x16xf32>
    %cst_40 = arith.constant dense<0.000000e+00> : vector<16xf32>
    %265 = vector.multi_reduction <add>, %264, %cst_40 [1] : vector<16x16xf32> to vector<16xf32>
    %266 = vector.shape_cast %265 : vector<16xf32> to vector<16x1xf32>
    %267 = tpu.reciprocal %266 {approx = true} : vector<16x1xf32> -> vector<16x1xf32>
    %268 = vector.broadcast %267 : vector<16x1xf32> to vector<16x16xf32>
    %269 = arith.mulf %264, %268 : vector<16x16xf32>
    %270 = arith.truncf %269 : vector<16x16xf32> to vector<16x16xbf16>
    %271 = arith.truncf %216 : vector<16x24xf32> to vector<16x24xbf16>
    %cst_41 = arith.constant dense<0.000000e+00> : vector<16x24xf32>
    %272 = tpu.matmul %270, %271, %cst_41 {dimension_numbers = #tpu.dot_dimension_numbers<[1], [0], [0], [1], [0, 0, 1, 1], [], []>} : vector<16x16xbf16>, vector<16x24xbf16>, vector<16x24xf32> -> vector<16x24xf32>
    %cst_42 = arith.constant 0.000000e+00 : f32
    %273 = vector.broadcast %cst_42 : f32 to vector<16x9xf32>
    %274 = arith.mulf %269, %19 : vector<16x16xf32>
    %cst_43 = arith.constant dense<0.000000e+00> : vector<16xf32>
    %275 = vector.multi_reduction <add>, %274, %cst_43 [1] : vector<16x16xf32> to vector<16xf32>
    %276 = vector.shape_cast %275 : vector<16xf32> to vector<16x1xf32>
    %277 = vector.extract_strided_slice %56 {offsets = [0, 0], sizes = [1, 9], strides = [1, 1]} : vector<9x9xf32> to vector<1x9xf32>
    %278 = vector.broadcast %276 : vector<16x1xf32> to vector<16x9xf32>
    %279 = vector.broadcast %277 : vector<1x9xf32> to vector<16x9xf32>
    %280 = arith.mulf %278, %279 : vector<16x9xf32>
    %281 = arith.addf %273, %280 : vector<16x9xf32>
    %282 = arith.mulf %269, %23 : vector<16x16xf32>
    %cst_44 = arith.constant dense<0.000000e+00> : vector<16xf32>
    %283 = vector.multi_reduction <add>, %282, %cst_44 [1] : vector<16x16xf32> to vector<16xf32>
    %284 = vector.shape_cast %283 : vector<16xf32> to vector<16x1xf32>
    %285 = vector.extract_strided_slice %56 {offsets = [1, 0], sizes = [1, 9], strides = [1, 1]} : vector<9x9xf32> to vector<1x9xf32>
    %286 = vector.broadcast %284 : vector<16x1xf32> to vector<16x9xf32>
    %287 = vector.broadcast %285 : vector<1x9xf32> to vector<16x9xf32>
    %288 = arith.mulf %286, %287 : vector<16x9xf32>
    %289 = arith.addf %281, %288 : vector<16x9xf32>
    %290 = arith.mulf %269, %27 : vector<16x16xf32>
    %cst_45 = arith.constant dense<0.000000e+00> : vector<16xf32>
    %291 = vector.multi_reduction <add>, %290, %cst_45 [1] : vector<16x16xf32> to vector<16xf32>
    %292 = vector.shape_cast %291 : vector<16xf32> to vector<16x1xf32>
    %293 = vector.extract_strided_slice %56 {offsets = [2, 0], sizes = [1, 9], strides = [1, 1]} : vector<9x9xf32> to vector<1x9xf32>
    %294 = vector.broadcast %292 : vector<16x1xf32> to vector<16x9xf32>
    %295 = vector.broadcast %293 : vector<1x9xf32> to vector<16x9xf32>
    %296 = arith.mulf %294, %295 : vector<16x9xf32>
    %297 = arith.addf %289, %296 : vector<16x9xf32>
    %298 = arith.mulf %269, %31 : vector<16x16xf32>
    %cst_46 = arith.constant dense<0.000000e+00> : vector<16xf32>
    %299 = vector.multi_reduction <add>, %298, %cst_46 [1] : vector<16x16xf32> to vector<16xf32>
    %300 = vector.shape_cast %299 : vector<16xf32> to vector<16x1xf32>
    %301 = vector.extract_strided_slice %56 {offsets = [3, 0], sizes = [1, 9], strides = [1, 1]} : vector<9x9xf32> to vector<1x9xf32>
    %302 = vector.broadcast %300 : vector<16x1xf32> to vector<16x9xf32>
    %303 = vector.broadcast %301 : vector<1x9xf32> to vector<16x9xf32>
    %304 = arith.mulf %302, %303 : vector<16x9xf32>
    %305 = arith.addf %297, %304 : vector<16x9xf32>
    %306 = arith.mulf %269, %35 : vector<16x16xf32>
    %cst_47 = arith.constant dense<0.000000e+00> : vector<16xf32>
    %307 = vector.multi_reduction <add>, %306, %cst_47 [1] : vector<16x16xf32> to vector<16xf32>
    %308 = vector.shape_cast %307 : vector<16xf32> to vector<16x1xf32>
    %309 = vector.extract_strided_slice %56 {offsets = [4, 0], sizes = [1, 9], strides = [1, 1]} : vector<9x9xf32> to vector<1x9xf32>
    %310 = vector.broadcast %308 : vector<16x1xf32> to vector<16x9xf32>
    %311 = vector.broadcast %309 : vector<1x9xf32> to vector<16x9xf32>
    %312 = arith.mulf %310, %311 : vector<16x9xf32>
    %313 = arith.addf %305, %312 : vector<16x9xf32>
    %314 = arith.mulf %269, %39 : vector<16x16xf32>
    %cst_48 = arith.constant dense<0.000000e+00> : vector<16xf32>
    %315 = vector.multi_reduction <add>, %314, %cst_48 [1] : vector<16x16xf32> to vector<16xf32>
    %316 = vector.shape_cast %315 : vector<16xf32> to vector<16x1xf32>
    %317 = vector.extract_strided_slice %56 {offsets = [5, 0], sizes = [1, 9], strides = [1, 1]} : vector<9x9xf32> to vector<1x9xf32>
    %318 = vector.broadcast %316 : vector<16x1xf32> to vector<16x9xf32>
    %319 = vector.broadcast %317 : vector<1x9xf32> to vector<16x9xf32>
    %320 = arith.mulf %318, %319 : vector<16x9xf32>
    %321 = arith.addf %313, %320 : vector<16x9xf32>
    %322 = arith.mulf %269, %43 : vector<16x16xf32>
    %cst_49 = arith.constant dense<0.000000e+00> : vector<16xf32>
    %323 = vector.multi_reduction <add>, %322, %cst_49 [1] : vector<16x16xf32> to vector<16xf32>
    %324 = vector.shape_cast %323 : vector<16xf32> to vector<16x1xf32>
    %325 = vector.extract_strided_slice %56 {offsets = [6, 0], sizes = [1, 9], strides = [1, 1]} : vector<9x9xf32> to vector<1x9xf32>
    %326 = vector.broadcast %324 : vector<16x1xf32> to vector<16x9xf32>
    %327 = vector.broadcast %325 : vector<1x9xf32> to vector<16x9xf32>
    %328 = arith.mulf %326, %327 : vector<16x9xf32>
    %329 = arith.addf %321, %328 : vector<16x9xf32>
    %330 = arith.mulf %269, %47 : vector<16x16xf32>
    %cst_50 = arith.constant dense<0.000000e+00> : vector<16xf32>
    %331 = vector.multi_reduction <add>, %330, %cst_50 [1] : vector<16x16xf32> to vector<16xf32>
    %332 = vector.shape_cast %331 : vector<16xf32> to vector<16x1xf32>
    %333 = vector.extract_strided_slice %56 {offsets = [7, 0], sizes = [1, 9], strides = [1, 1]} : vector<9x9xf32> to vector<1x9xf32>
    %334 = vector.broadcast %332 : vector<16x1xf32> to vector<16x9xf32>
    %335 = vector.broadcast %333 : vector<1x9xf32> to vector<16x9xf32>
    %336 = arith.mulf %334, %335 : vector<16x9xf32>
    %337 = arith.addf %329, %336 : vector<16x9xf32>
    %338 = arith.mulf %269, %51 : vector<16x16xf32>
    %cst_51 = arith.constant dense<0.000000e+00> : vector<16xf32>
    %339 = vector.multi_reduction <add>, %338, %cst_51 [1] : vector<16x16xf32> to vector<16xf32>
    %340 = vector.shape_cast %339 : vector<16xf32> to vector<16x1xf32>
    %341 = vector.extract_strided_slice %56 {offsets = [8, 0], sizes = [1, 9], strides = [1, 1]} : vector<9x9xf32> to vector<1x9xf32>
    %342 = vector.broadcast %340 : vector<16x1xf32> to vector<16x9xf32>
    %343 = vector.broadcast %341 : vector<1x9xf32> to vector<16x9xf32>
    %344 = arith.mulf %342, %343 : vector<16x9xf32>
    %345 = arith.addf %337, %344 : vector<16x9xf32>
    %346 = arith.truncf %345 : vector<16x9xf32> to vector<16x9xbf16>
    %cst_52 = arith.constant dense<0.000000e+00> : vector<16x24xf32>
    %347 = tpu.matmul %346, %74, %cst_52 {dimension_numbers = #tpu.dot_dimension_numbers<[1], [0], [0], [1], [0, 0, 1, 1], [], []>} : vector<16x9xbf16>, vector<9x24xbf16>, vector<16x24xf32> -> vector<16x24xf32>
    %348 = arith.addf %272, %347 : vector<16x24xf32>
    %349 = tpu.concatenate %211, %348 in 1 : vector<16x24xf32>, vector<16x24xf32> -> vector<16x48xf32>
    %c0_53 = arith.constant 0 : index
    %c0_54 = arith.constant 0 : index
    %c0_55 = arith.constant 0 : index
    %350 = vector.load %arg5[%c0_53, %c0_54, %c0_55] : memref<2x48x48xbf16, #tpu.memory_space<vmem>>, vector<1x48x48xbf16>
    %351 = vector.shape_cast %350 : vector<1x48x48xbf16> to vector<48x48xbf16>
    %352 = arith.truncf %349 : vector<16x48xf32> to vector<16x48xbf16>
    %cst_56 = arith.constant dense<0.000000e+00> : vector<16x48xf32>
    %353 = tpu.matmul %352, %351, %cst_56 {dimension_numbers = #tpu.dot_dimension_numbers<[1], [0], [0], [1], [0, 0, 1, 1], [], []>} : vector<16x48xbf16>, vector<48x48xbf16>, vector<16x48xf32> -> vector<16x48xf32>
    %c0_57 = arith.constant 0 : index
    %c0_58 = arith.constant 0 : index
    %c0_59 = arith.constant 0 : index
    %354 = vector.load %arg6[%c0_57, %c0_58, %c0_59] : memref<2x1x48xf32, #tpu.memory_space<vmem>>, vector<1x1x48xf32>
    %355 = vector.shape_cast %354 : vector<1x1x48xf32> to vector<1x48xf32>
    %356 = vector.broadcast %355 : vector<1x48xf32> to vector<16x48xf32>
    %357 = arith.addf %353, %356 : vector<16x48xf32>
    %358 = arith.addf %62, %357 : vector<16x48xf32>
    %c0_60 = arith.constant 0 : index
    %c0_61 = arith.constant 0 : index
    %c0_62 = arith.constant 0 : index
    %359 = vector.load %arg9[%c0_60, %c0_61, %c0_62] : memref<2x1x48xf32, #tpu.memory_space<vmem>>, vector<1x1x48xf32>
    %360 = vector.shape_cast %359 : vector<1x1x48xf32> to vector<1x48xf32>
    %c0_63 = arith.constant 0 : index
    %c0_64 = arith.constant 0 : index
    %c0_65 = arith.constant 0 : index
    %361 = vector.load %arg10[%c0_63, %c0_64, %c0_65] : memref<2x1x48xf32, #tpu.memory_space<vmem>>, vector<1x1x48xf32>
    %362 = vector.shape_cast %361 : vector<1x1x48xf32> to vector<1x48xf32>
    %cst_66 = arith.constant dense<0.000000e+00> : vector<16xf32>
    %363 = vector.multi_reduction <add>, %358, %cst_66 [1] : vector<16x48xf32> to vector<16xf32>
    %364 = vector.shape_cast %363 : vector<16xf32> to vector<16x1xf32>
    %cst_67 = arith.constant 4.800000e+01 : f32
    %365 = vector.broadcast %cst_67 : f32 to vector<16x1xf32>
    %366 = arith.divf %364, %365 : vector<16x1xf32>
    %367 = vector.broadcast %366 : vector<16x1xf32> to vector<16x48xf32>
    %368 = arith.subf %358, %367 : vector<16x48xf32>
    %369 = arith.mulf %368, %368 : vector<16x48xf32>
    %cst_68 = arith.constant dense<0.000000e+00> : vector<16xf32>
    %370 = vector.multi_reduction <add>, %369, %cst_68 [1] : vector<16x48xf32> to vector<16xf32>
    %371 = vector.shape_cast %370 : vector<16xf32> to vector<16x1xf32>
    %cst_69 = arith.constant 4.800000e+01 : f32
    %372 = vector.broadcast %cst_69 : f32 to vector<16x1xf32>
    %373 = arith.divf %371, %372 : vector<16x1xf32>
    %cst_70 = arith.constant 9.99999974E-6 : f32
    %374 = vector.broadcast %cst_70 : f32 to vector<16x1xf32>
    %375 = arith.addf %373, %374 : vector<16x1xf32>
    %376 = math.rsqrt %375 : vector<16x1xf32>
    %377 = vector.broadcast %376 : vector<16x1xf32> to vector<16x48xf32>
    %378 = arith.mulf %368, %377 : vector<16x48xf32>
    %379 = vector.broadcast %360 : vector<1x48xf32> to vector<16x48xf32>
    %380 = arith.mulf %378, %379 : vector<16x48xf32>
    %381 = vector.broadcast %362 : vector<1x48xf32> to vector<16x48xf32>
    %382 = arith.addf %380, %381 : vector<16x48xf32>
    %383 = vector.broadcast %6 : vector<16x1xf32> to vector<16x48xf32>
    %384 = arith.mulf %382, %383 : vector<16x48xf32>
    %c0_71 = arith.constant 0 : index
    %c0_72 = arith.constant 0 : index
    %c0_73 = arith.constant 0 : index
    %385 = vector.load %arg11[%c0_71, %c0_72, %c0_73] : memref<2x144x64xbf16, #tpu.memory_space<vmem>>, vector<1x144x64xbf16>
    %386 = vector.shape_cast %385 : vector<1x144x64xbf16> to vector<144x64xbf16>
    %c0_74 = arith.constant 0 : index
    %c0_75 = arith.constant 0 : index
    %c0_76 = arith.constant 0 : index
    %387 = vector.load %arg12[%c0_74, %c0_75, %c0_76] : memref<2x1x64xf32, #tpu.memory_space<vmem>>, vector<1x1x64xf32>
    %388 = vector.shape_cast %387 : vector<1x1x64xf32> to vector<1x64xf32>
    %c1 = arith.constant 1 : index
    %c0_77 = arith.constant 0 : index
    %389 = vector.load %arg21[%c1, %c0_77] : memref<24x128xf32, #tpu.memory_space<vmem>>, vector<16x48xf32>
    tpu.vector_store %arg21[%c1, %c0_77], %384 {strides = array<i32>} : memref<24x128xf32, #tpu.memory_space<vmem>>, vector<16x48xf32>,
    %c0_78 = arith.constant 0 : index
    %c0_79 = arith.constant 0 : index
    %390 = vector.load %arg21[%c0_78, %c0_79] : memref<24x128xf32, #tpu.memory_space<vmem>>, vector<16x48xf32>
    %c1_80 = arith.constant 1 : index
    %c0_81 = arith.constant 0 : index
    %391 = vector.load %arg21[%c1_80, %c0_81] : memref<24x128xf32, #tpu.memory_space<vmem>>, vector<16x48xf32>
    %c2 = arith.constant 2 : index
    %c0_82 = arith.constant 0 : index
    %392 = vector.load %arg21[%c2, %c0_82] : memref<24x128xf32, #tpu.memory_space<vmem>>, vector<16x48xf32>
    %393 = tpu.concatenate %390, %391, %392 in 1 : vector<16x48xf32>, vector<16x48xf32>, vector<16x48xf32> -> vector<16x144xf32>
    %394 = arith.truncf %393 : vector<16x144xf32> to vector<16x144xbf16>
    %cst_83 = arith.constant dense<0.000000e+00> : vector<16x64xf32>
    %395 = tpu.matmul %394, %386, %cst_83 {dimension_numbers = #tpu.dot_dimension_numbers<[1], [0], [0], [1], [0, 0, 1, 1], [], []>} : vector<16x144xbf16>, vector<144x64xbf16>, vector<16x64xf32> -> vector<16x64xf32>
    %396 = vector.broadcast %388 : vector<1x64xf32> to vector<16x64xf32>
    %397 = arith.addf %395, %396 : vector<16x64xf32>
    %cst_84 = arith.constant 0.000000e+00 : f32
    %398 = vector.broadcast %cst_84 : f32 to vector<16x64xf32>
    %399 = arith.maximumf %397, %398 : vector<16x64xf32>
    %400 = vector.broadcast %6 : vector<16x1xf32> to vector<16x64xf32>
    %401 = arith.mulf %399, %400 : vector<16x64xf32>
    %c0_85 = arith.constant 0 : index
    %c0_86 = arith.constant 0 : index
    %c0_87 = arith.constant 0 : index
    %402 = vector.load %arg13[%c0_85, %c0_86, %c0_87] : memref<2x192x48xbf16, #tpu.memory_space<vmem>>, vector<1x192x48xbf16>
    %403 = vector.shape_cast %402 : vector<1x192x48xbf16> to vector<192x48xbf16>
    %c0_88 = arith.constant 0 : index
    %c0_89 = arith.constant 0 : index
    %c0_90 = arith.constant 0 : index
    %404 = vector.load %arg14[%c0_88, %c0_89, %c0_90] : memref<2x1x48xf32, #tpu.memory_space<vmem>>, vector<1x1x48xf32>
    %405 = vector.shape_cast %404 : vector<1x1x48xf32> to vector<1x48xf32>
    %c1_91 = arith.constant 1 : index
    %c0_92 = arith.constant 0 : index
    %406 = vector.load %arg21[%c1_91, %c0_92] : memref<24x128xf32, #tpu.memory_space<vmem>>, vector<16x64xf32>
    tpu.vector_store %arg21[%c1_91, %c0_92], %401 {strides = array<i32>} : memref<24x128xf32, #tpu.memory_space<vmem>>, vector<16x64xf32>,
    %c0_93 = arith.constant 0 : index
    %c0_94 = arith.constant 0 : index
    %407 = vector.load %arg21[%c0_93, %c0_94] : memref<24x128xf32, #tpu.memory_space<vmem>>, vector<16x64xf32>
    %c1_95 = arith.constant 1 : index
    %c0_96 = arith.constant 0 : index
    %408 = vector.load %arg21[%c1_95, %c0_96] : memref<24x128xf32, #tpu.memory_space<vmem>>, vector<16x64xf32>
    %c2_97 = arith.constant 2 : index
    %c0_98 = arith.constant 0 : index
    %409 = vector.load %arg21[%c2_97, %c0_98] : memref<24x128xf32, #tpu.memory_space<vmem>>, vector<16x64xf32>
    %410 = tpu.concatenate %407, %408, %409 in 1 : vector<16x64xf32>, vector<16x64xf32>, vector<16x64xf32> -> vector<16x192xf32>
    %411 = arith.truncf %410 : vector<16x192xf32> to vector<16x192xbf16>
    %cst_99 = arith.constant dense<0.000000e+00> : vector<16x48xf32>
    %412 = tpu.matmul %411, %403, %cst_99 {dimension_numbers = #tpu.dot_dimension_numbers<[1], [0], [0], [1], [0, 0, 1, 1], [], []>} : vector<16x192xbf16>, vector<192x48xbf16>, vector<16x48xf32> -> vector<16x48xf32>
    %413 = vector.broadcast %405 : vector<1x48xf32> to vector<16x48xf32>
    %414 = arith.addf %412, %413 : vector<16x48xf32>
    %415 = vector.broadcast %6 : vector<16x1xf32> to vector<16x48xf32>
    %416 = arith.mulf %414, %415 : vector<16x48xf32>
    %417 = arith.addf %382, %416 : vector<16x48xf32>
    %c0_100 = arith.constant 0 : index
    %c0_101 = arith.constant 0 : index
    %c0_102 = arith.constant 0 : index
    %418 = vector.load %arg15[%c0_100, %c0_101, %c0_102] : memref<2x1x48xf32, #tpu.memory_space<vmem>>, vector<1x1x48xf32>
    %419 = vector.shape_cast %418 : vector<1x1x48xf32> to vector<1x48xf32>
    %c0_103 = arith.constant 0 : index
    %c0_104 = arith.constant 0 : index
    %c0_105 = arith.constant 0 : index
    %420 = vector.load %arg16[%c0_103, %c0_104, %c0_105] : memref<2x1x48xf32, #tpu.memory_space<vmem>>, vector<1x1x48xf32>
    %421 = vector.shape_cast %420 : vector<1x1x48xf32> to vector<1x48xf32>
    %cst_106 = arith.constant dense<0.000000e+00> : vector<16xf32>
    %422 = vector.multi_reduction <add>, %417, %cst_106 [1] : vector<16x48xf32> to vector<16xf32>
    %423 = vector.shape_cast %422 : vector<16xf32> to vector<16x1xf32>
    %cst_107 = arith.constant 4.800000e+01 : f32
    %424 = vector.broadcast %cst_107 : f32 to vector<16x1xf32>
    %425 = arith.divf %423, %424 : vector<16x1xf32>
    %426 = vector.broadcast %425 : vector<16x1xf32> to vector<16x48xf32>
    %427 = arith.subf %417, %426 : vector<16x48xf32>
    %428 = arith.mulf %427, %427 : vector<16x48xf32>
    %cst_108 = arith.constant dense<0.000000e+00> : vector<16xf32>
    %429 = vector.multi_reduction <add>, %428, %cst_108 [1] : vector<16x48xf32> to vector<16xf32>
    %430 = vector.shape_cast %429 : vector<16xf32> to vector<16x1xf32>
    %cst_109 = arith.constant 4.800000e+01 : f32
    %431 = vector.broadcast %cst_109 : f32 to vector<16x1xf32>
    %432 = arith.divf %430, %431 : vector<16x1xf32>
    %cst_110 = arith.constant 9.99999974E-6 : f32
    %433 = vector.broadcast %cst_110 : f32 to vector<16x1xf32>
    %434 = arith.addf %432, %433 : vector<16x1xf32>
    %435 = math.rsqrt %434 : vector<16x1xf32>
    %436 = vector.broadcast %435 : vector<16x1xf32> to vector<16x48xf32>
    %437 = arith.mulf %427, %436 : vector<16x48xf32>
    %438 = vector.broadcast %419 : vector<1x48xf32> to vector<16x48xf32>
    %439 = arith.mulf %437, %438 : vector<16x48xf32>
    %440 = vector.broadcast %421 : vector<1x48xf32> to vector<16x48xf32>
    %441 = arith.addf %439, %440 : vector<16x48xf32>
    %c1_111 = arith.constant 1 : index
    %c0_112 = arith.constant 0 : index
    %c0_113 = arith.constant 0 : index
    %442 = vector.load %arg3[%c1_111, %c0_112, %c0_113] : memref<2x48x144xbf16, #tpu.memory_space<vmem>>, vector<1x48x144xbf16>
    %443 = vector.shape_cast %442 : vector<1x48x144xbf16> to vector<48x144xbf16>
    %444 = arith.truncf %441 : vector<16x48xf32> to vector<16x48xbf16>
    %cst_114 = arith.constant dense<0.000000e+00> : vector<16x144xf32>
    %445 = tpu.matmul %444, %443, %cst_114 {dimension_numbers = #tpu.dot_dimension_numbers<[1], [0], [0], [1], [0, 0, 1, 1], [], []>} : vector<16x48xbf16>, vector<48x144xbf16>, vector<16x144xf32> -> vector<16x144xf32>
    %c1_115 = arith.constant 1 : index
    %c0_116 = arith.constant 0 : index
    %c0_117 = arith.constant 0 : index
    %446 = vector.load %arg4[%c1_115, %c0_116, %c0_117] : memref<2x1x144xf32, #tpu.memory_space<vmem>>, vector<1x1x144xf32>
    %447 = vector.shape_cast %446 : vector<1x1x144xf32> to vector<1x144xf32>
    %448 = vector.broadcast %447 : vector<1x144xf32> to vector<16x144xf32>
    %449 = arith.addf %445, %448 : vector<16x144xf32>
    %c1_118 = arith.constant 1 : index
    %c0_119 = arith.constant 0 : index
    %c0_120 = arith.constant 0 : index
    %450 = vector.load %arg7[%c1_118, %c0_119, %c0_120] : memref<2x9x24xbf16, #tpu.memory_space<vmem>>, vector<1x9x24xbf16>
    %451 = vector.shape_cast %450 : vector<1x9x24xbf16> to vector<9x24xbf16>
    %c1_121 = arith.constant 1 : index
    %c0_122 = arith.constant 0 : index
    %c0_123 = arith.constant 0 : index
    %452 = vector.load %arg8[%c1_121, %c0_122, %c0_123] : memref<2x9x24xbf16, #tpu.memory_space<vmem>>, vector<1x9x24xbf16>
    %453 = vector.shape_cast %452 : vector<1x9x24xbf16> to vector<9x24xbf16>
    %454 = vector.extract_strided_slice %449 {offsets = [0, 0], sizes = [16, 24], strides = [1, 1]} : vector<16x144xf32> to vector<16x24xf32>
    %cst_124 = arith.constant 0.204124153 : f32
    %455 = vector.broadcast %cst_124 : f32 to vector<16x24xf32>
    %456 = arith.mulf %454, %455 : vector<16x24xf32>
    %457 = vector.extract_strided_slice %449 {offsets = [0, 48], sizes = [16, 24], strides = [1, 1]} : vector<16x144xf32> to vector<16x24xf32>
    %458 = vector.extract_strided_slice %449 {offsets = [0, 96], sizes = [16, 24], strides = [1, 1]} : vector<16x144xf32> to vector<16x24xf32>
    %459 = arith.truncf %456 : vector<16x24xf32> to vector<16x24xbf16>
    %460 = arith.truncf %457 : vector<16x24xf32> to vector<16x24xbf16>
    %cst_125 = arith.constant dense<0.000000e+00> : vector<16x16xf32>
    %461 = tpu.matmul %459, %460, %cst_125 {dimension_numbers = #tpu.dot_dimension_numbers<[1], [1], [0], [0], [0, 0, 1, 0], [], []>} : vector<16x24xbf16>, vector<16x24xbf16>, vector<16x16xf32> -> vector<16x16xf32>
    %462 = arith.truncf %456 : vector<16x24xf32> to vector<16x24xbf16>
    %cst_126 = arith.constant dense<0.000000e+00> : vector<16x9xf32>
    %463 = tpu.matmul %462, %451, %cst_126 {dimension_numbers = #tpu.dot_dimension_numbers<[1], [1], [0], [0], [0, 0, 1, 0], [], []>} : vector<16x24xbf16>, vector<9x24xbf16>, vector<16x9xf32> -> vector<16x9xf32>
    %464 = vector.extract_strided_slice %463 {offsets = [0, 0], sizes = [16, 1], strides = [1, 1]} : vector<16x9xf32> to vector<16x1xf32>
    %465 = vector.broadcast %464 : vector<16x1xf32> to vector<16x16xf32>
    %466 = arith.mulf %465, %19 : vector<16x16xf32>
    %467 = arith.addf %461, %466 : vector<16x16xf32>
    %468 = vector.extract_strided_slice %463 {offsets = [0, 1], sizes = [16, 1], strides = [1, 1]} : vector<16x9xf32> to vector<16x1xf32>
    %469 = vector.broadcast %468 : vector<16x1xf32> to vector<16x16xf32>
    %470 = arith.mulf %469, %23 : vector<16x16xf32>
    %471 = arith.addf %467, %470 : vector<16x16xf32>
    %472 = vector.extract_strided_slice %463 {offsets = [0, 2], sizes = [16, 1], strides = [1, 1]} : vector<16x9xf32> to vector<16x1xf32>
    %473 = vector.broadcast %472 : vector<16x1xf32> to vector<16x16xf32>
    %474 = arith.mulf %473, %27 : vector<16x16xf32>
    %475 = arith.addf %471, %474 : vector<16x16xf32>
    %476 = vector.extract_strided_slice %463 {offsets = [0, 3], sizes = [16, 1], strides = [1, 1]} : vector<16x9xf32> to vector<16x1xf32>
    %477 = vector.broadcast %476 : vector<16x1xf32> to vector<16x16xf32>
    %478 = arith.mulf %477, %31 : vector<16x16xf32>
    %479 = arith.addf %475, %478 : vector<16x16xf32>
    %480 = vector.extract_strided_slice %463 {offsets = [0, 4], sizes = [16, 1], strides = [1, 1]} : vector<16x9xf32> to vector<16x1xf32>
    %481 = vector.broadcast %480 : vector<16x1xf32> to vector<16x16xf32>
    %482 = arith.mulf %481, %35 : vector<16x16xf32>
    %483 = arith.addf %479, %482 : vector<16x16xf32>
    %484 = vector.extract_strided_slice %463 {offsets = [0, 5], sizes = [16, 1], strides = [1, 1]} : vector<16x9xf32> to vector<16x1xf32>
    %485 = vector.broadcast %484 : vector<16x1xf32> to vector<16x16xf32>
    %486 = arith.mulf %485, %39 : vector<16x16xf32>
    %487 = arith.addf %483, %486 : vector<16x16xf32>
    %488 = vector.extract_strided_slice %463 {offsets = [0, 6], sizes = [16, 1], strides = [1, 1]} : vector<16x9xf32> to vector<16x1xf32>
    %489 = vector.broadcast %488 : vector<16x1xf32> to vector<16x16xf32>
    %490 = arith.mulf %489, %43 : vector<16x16xf32>
    %491 = arith.addf %487, %490 : vector<16x16xf32>
    %492 = vector.extract_strided_slice %463 {offsets = [0, 7], sizes = [16, 1], strides = [1, 1]} : vector<16x9xf32> to vector<16x1xf32>
    %493 = vector.broadcast %492 : vector<16x1xf32> to vector<16x16xf32>
    %494 = arith.mulf %493, %47 : vector<16x16xf32>
    %495 = arith.addf %491, %494 : vector<16x16xf32>
    %496 = vector.extract_strided_slice %463 {offsets = [0, 8], sizes = [16, 1], strides = [1, 1]} : vector<16x9xf32> to vector<16x1xf32>
    %497 = vector.broadcast %496 : vector<16x1xf32> to vector<16x16xf32>
    %498 = arith.mulf %497, %51 : vector<16x16xf32>
    %499 = arith.addf %495, %498 : vector<16x16xf32>
    %500 = vector.broadcast %12 : vector<1x16xf32> to vector<16x16xf32>
    %501 = arith.addf %499, %500 : vector<16x16xf32>
    %cst_127 = arith.constant dense<0xFF800000> : vector<16xf32>
    %502 = vector.multi_reduction <maximumf>, %501, %cst_127 [1] : vector<16x16xf32> to vector<16xf32>
    %503 = vector.shape_cast %502 : vector<16xf32> to vector<16x1xf32>
    %504 = vector.broadcast %503 : vector<16x1xf32> to vector<16x16xf32>
    %505 = arith.subf %501, %504 : vector<16x16xf32>
    %506 = math.exp %505 : vector<16x16xf32>
    %cst_128 = arith.constant dense<0.000000e+00> : vector<16xf32>
    %507 = vector.multi_reduction <add>, %506, %cst_128 [1] : vector<16x16xf32> to vector<16xf32>
    %508 = vector.shape_cast %507 : vector<16xf32> to vector<16x1xf32>
    %509 = tpu.reciprocal %508 {approx = true} : vector<16x1xf32> -> vector<16x1xf32>
    %510 = vector.broadcast %509 : vector<16x1xf32> to vector<16x16xf32>
    %511 = arith.mulf %506, %510 : vector<16x16xf32>
    %512 = arith.truncf %511 : vector<16x16xf32> to vector<16x16xbf16>
    %513 = arith.truncf %458 : vector<16x24xf32> to vector<16x24xbf16>
    %cst_129 = arith.constant dense<0.000000e+00> : vector<16x24xf32>
    %514 = tpu.matmul %512, %513, %cst_129 {dimension_numbers = #tpu.dot_dimension_numbers<[1], [0], [0], [1], [0, 0, 1, 1], [], []>} : vector<16x16xbf16>, vector<16x24xbf16>, vector<16x24xf32> -> vector<16x24xf32>
    %cst_130 = arith.constant 0.000000e+00 : f32
    %515 = vector.broadcast %cst_130 : f32 to vector<16x9xf32>
    %516 = arith.mulf %511, %19 : vector<16x16xf32>
    %cst_131 = arith.constant dense<0.000000e+00> : vector<16xf32>
    %517 = vector.multi_reduction <add>, %516, %cst_131 [1] : vector<16x16xf32> to vector<16xf32>
    %518 = vector.shape_cast %517 : vector<16xf32> to vector<16x1xf32>
    %519 = vector.extract_strided_slice %56 {offsets = [0, 0], sizes = [1, 9], strides = [1, 1]} : vector<9x9xf32> to vector<1x9xf32>
    %520 = vector.broadcast %518 : vector<16x1xf32> to vector<16x9xf32>
    %521 = vector.broadcast %519 : vector<1x9xf32> to vector<16x9xf32>
    %522 = arith.mulf %520, %521 : vector<16x9xf32>
    %523 = arith.addf %515, %522 : vector<16x9xf32>
    %524 = arith.mulf %511, %23 : vector<16x16xf32>
    %cst_132 = arith.constant dense<0.000000e+00> : vector<16xf32>
    %525 = vector.multi_reduction <add>, %524, %cst_132 [1] : vector<16x16xf32> to vector<16xf32>
    %526 = vector.shape_cast %525 : vector<16xf32> to vector<16x1xf32>
    %527 = vector.extract_strided_slice %56 {offsets = [1, 0], sizes = [1, 9], strides = [1, 1]} : vector<9x9xf32> to vector<1x9xf32>
    %528 = vector.broadcast %526 : vector<16x1xf32> to vector<16x9xf32>
    %529 = vector.broadcast %527 : vector<1x9xf32> to vector<16x9xf32>
    %530 = arith.mulf %528, %529 : vector<16x9xf32>
    %531 = arith.addf %523, %530 : vector<16x9xf32>
    %532 = arith.mulf %511, %27 : vector<16x16xf32>
    %cst_133 = arith.constant dense<0.000000e+00> : vector<16xf32>
    %533 = vector.multi_reduction <add>, %532, %cst_133 [1] : vector<16x16xf32> to vector<16xf32>
    %534 = vector.shape_cast %533 : vector<16xf32> to vector<16x1xf32>
    %535 = vector.extract_strided_slice %56 {offsets = [2, 0], sizes = [1, 9], strides = [1, 1]} : vector<9x9xf32> to vector<1x9xf32>
    %536 = vector.broadcast %534 : vector<16x1xf32> to vector<16x9xf32>
    %537 = vector.broadcast %535 : vector<1x9xf32> to vector<16x9xf32>
    %538 = arith.mulf %536, %537 : vector<16x9xf32>
    %539 = arith.addf %531, %538 : vector<16x9xf32>
    %540 = arith.mulf %511, %31 : vector<16x16xf32>
    %cst_134 = arith.constant dense<0.000000e+00> : vector<16xf32>
    %541 = vector.multi_reduction <add>, %540, %cst_134 [1] : vector<16x16xf32> to vector<16xf32>
    %542 = vector.shape_cast %541 : vector<16xf32> to vector<16x1xf32>
    %543 = vector.extract_strided_slice %56 {offsets = [3, 0], sizes = [1, 9], strides = [1, 1]} : vector<9x9xf32> to vector<1x9xf32>
    %544 = vector.broadcast %542 : vector<16x1xf32> to vector<16x9xf32>
    %545 = vector.broadcast %543 : vector<1x9xf32> to vector<16x9xf32>
    %546 = arith.mulf %544, %545 : vector<16x9xf32>
    %547 = arith.addf %539, %546 : vector<16x9xf32>
    %548 = arith.mulf %511, %35 : vector<16x16xf32>
    %cst_135 = arith.constant dense<0.000000e+00> : vector<16xf32>
    %549 = vector.multi_reduction <add>, %548, %cst_135 [1] : vector<16x16xf32> to vector<16xf32>
    %550 = vector.shape_cast %549 : vector<16xf32> to vector<16x1xf32>
    %551 = vector.extract_strided_slice %56 {offsets = [4, 0], sizes = [1, 9], strides = [1, 1]} : vector<9x9xf32> to vector<1x9xf32>
    %552 = vector.broadcast %550 : vector<16x1xf32> to vector<16x9xf32>
    %553 = vector.broadcast %551 : vector<1x9xf32> to vector<16x9xf32>
    %554 = arith.mulf %552, %553 : vector<16x9xf32>
    %555 = arith.addf %547, %554 : vector<16x9xf32>
    %556 = arith.mulf %511, %39 : vector<16x16xf32>
    %cst_136 = arith.constant dense<0.000000e+00> : vector<16xf32>
    %557 = vector.multi_reduction <add>, %556, %cst_136 [1] : vector<16x16xf32> to vector<16xf32>
    %558 = vector.shape_cast %557 : vector<16xf32> to vector<16x1xf32>
    %559 = vector.extract_strided_slice %56 {offsets = [5, 0], sizes = [1, 9], strides = [1, 1]} : vector<9x9xf32> to vector<1x9xf32>
    %560 = vector.broadcast %558 : vector<16x1xf32> to vector<16x9xf32>
    %561 = vector.broadcast %559 : vector<1x9xf32> to vector<16x9xf32>
    %562 = arith.mulf %560, %561 : vector<16x9xf32>
    %563 = arith.addf %555, %562 : vector<16x9xf32>
    %564 = arith.mulf %511, %43 : vector<16x16xf32>
    %cst_137 = arith.constant dense<0.000000e+00> : vector<16xf32>
    %565 = vector.multi_reduction <add>, %564, %cst_137 [1] : vector<16x16xf32> to vector<16xf32>
    %566 = vector.shape_cast %565 : vector<16xf32> to vector<16x1xf32>
    %567 = vector.extract_strided_slice %56 {offsets = [6, 0], sizes = [1, 9], strides = [1, 1]} : vector<9x9xf32> to vector<1x9xf32>
    %568 = vector.broadcast %566 : vector<16x1xf32> to vector<16x9xf32>
    %569 = vector.broadcast %567 : vector<1x9xf32> to vector<16x9xf32>
    %570 = arith.mulf %568, %569 : vector<16x9xf32>
    %571 = arith.addf %563, %570 : vector<16x9xf32>
    %572 = arith.mulf %511, %47 : vector<16x16xf32>
    %cst_138 = arith.constant dense<0.000000e+00> : vector<16xf32>
    %573 = vector.multi_reduction <add>, %572, %cst_138 [1] : vector<16x16xf32> to vector<16xf32>
    %574 = vector.shape_cast %573 : vector<16xf32> to vector<16x1xf32>
    %575 = vector.extract_strided_slice %56 {offsets = [7, 0], sizes = [1, 9], strides = [1, 1]} : vector<9x9xf32> to vector<1x9xf32>
    %576 = vector.broadcast %574 : vector<16x1xf32> to vector<16x9xf32>
    %577 = vector.broadcast %575 : vector<1x9xf32> to vector<16x9xf32>
    %578 = arith.mulf %576, %577 : vector<16x9xf32>
    %579 = arith.addf %571, %578 : vector<16x9xf32>
    %580 = arith.mulf %511, %51 : vector<16x16xf32>
    %cst_139 = arith.constant dense<0.000000e+00> : vector<16xf32>
    %581 = vector.multi_reduction <add>, %580, %cst_139 [1] : vector<16x16xf32> to vector<16xf32>
    %582 = vector.shape_cast %581 : vector<16xf32> to vector<16x1xf32>
    %583 = vector.extract_strided_slice %56 {offsets = [8, 0], sizes = [1, 9], strides = [1, 1]} : vector<9x9xf32> to vector<1x9xf32>
    %584 = vector.broadcast %582 : vector<16x1xf32> to vector<16x9xf32>
    %585 = vector.broadcast %583 : vector<1x9xf32> to vector<16x9xf32>
    %586 = arith.mulf %584, %585 : vector<16x9xf32>
    %587 = arith.addf %579, %586 : vector<16x9xf32>
    %588 = arith.truncf %587 : vector<16x9xf32> to vector<16x9xbf16>
    %cst_140 = arith.constant dense<0.000000e+00> : vector<16x24xf32>
    %589 = tpu.matmul %588, %453, %cst_140 {dimension_numbers = #tpu.dot_dimension_numbers<[1], [0], [0], [1], [0, 0, 1, 1], [], []>} : vector<16x9xbf16>, vector<9x24xbf16>, vector<16x24xf32> -> vector<16x24xf32>
    %590 = arith.addf %514, %589 : vector<16x24xf32>
    %591 = vector.extract_strided_slice %449 {offsets = [0, 24], sizes = [16, 24], strides = [1, 1]} : vector<16x144xf32> to vector<16x24xf32>
    %cst_141 = arith.constant 0.204124153 : f32
    %592 = vector.broadcast %cst_141 : f32 to vector<16x24xf32>
    %593 = arith.mulf %591, %592 : vector<16x24xf32>
    %594 = vector.extract_strided_slice %449 {offsets = [0, 72], sizes = [16, 24], strides = [1, 1]} : vector<16x144xf32> to vector<16x24xf32>
    %595 = vector.extract_strided_slice %449 {offsets = [0, 120], sizes = [16, 24], strides = [1, 1]} : vector<16x144xf32> to vector<16x24xf32>
    %596 = arith.truncf %593 : vector<16x24xf32> to vector<16x24xbf16>
    %597 = arith.truncf %594 : vector<16x24xf32> to vector<16x24xbf16>
    %cst_142 = arith.constant dense<0.000000e+00> : vector<16x16xf32>
    %598 = tpu.matmul %596, %597, %cst_142 {dimension_numbers = #tpu.dot_dimension_numbers<[1], [1], [0], [0], [0, 0, 1, 0], [], []>} : vector<16x24xbf16>, vector<16x24xbf16>, vector<16x16xf32> -> vector<16x16xf32>
    %599 = arith.truncf %593 : vector<16x24xf32> to vector<16x24xbf16>
    %cst_143 = arith.constant dense<0.000000e+00> : vector<16x9xf32>
    %600 = tpu.matmul %599, %451, %cst_143 {dimension_numbers = #tpu.dot_dimension_numbers<[1], [1], [0], [0], [0, 0, 1, 0], [], []>} : vector<16x24xbf16>, vector<9x24xbf16>, vector<16x9xf32> -> vector<16x9xf32>
    %601 = vector.extract_strided_slice %600 {offsets = [0, 0], sizes = [16, 1], strides = [1, 1]} : vector<16x9xf32> to vector<16x1xf32>
    %602 = vector.broadcast %601 : vector<16x1xf32> to vector<16x16xf32>
    %603 = arith.mulf %602, %19 : vector<16x16xf32>
    %604 = arith.addf %598, %603 : vector<16x16xf32>
    %605 = vector.extract_strided_slice %600 {offsets = [0, 1], sizes = [16, 1], strides = [1, 1]} : vector<16x9xf32> to vector<16x1xf32>
    %606 = vector.broadcast %605 : vector<16x1xf32> to vector<16x16xf32>
    %607 = arith.mulf %606, %23 : vector<16x16xf32>
    %608 = arith.addf %604, %607 : vector<16x16xf32>
    %609 = vector.extract_strided_slice %600 {offsets = [0, 2], sizes = [16, 1], strides = [1, 1]} : vector<16x9xf32> to vector<16x1xf32>
    %610 = vector.broadcast %609 : vector<16x1xf32> to vector<16x16xf32>
    %611 = arith.mulf %610, %27 : vector<16x16xf32>
    %612 = arith.addf %608, %611 : vector<16x16xf32>
    %613 = vector.extract_strided_slice %600 {offsets = [0, 3], sizes = [16, 1], strides = [1, 1]} : vector<16x9xf32> to vector<16x1xf32>
    %614 = vector.broadcast %613 : vector<16x1xf32> to vector<16x16xf32>
    %615 = arith.mulf %614, %31 : vector<16x16xf32>
    %616 = arith.addf %612, %615 : vector<16x16xf32>
    %617 = vector.extract_strided_slice %600 {offsets = [0, 4], sizes = [16, 1], strides = [1, 1]} : vector<16x9xf32> to vector<16x1xf32>
    %618 = vector.broadcast %617 : vector<16x1xf32> to vector<16x16xf32>
    %619 = arith.mulf %618, %35 : vector<16x16xf32>
    %620 = arith.addf %616, %619 : vector<16x16xf32>
    %621 = vector.extract_strided_slice %600 {offsets = [0, 5], sizes = [16, 1], strides = [1, 1]} : vector<16x9xf32> to vector<16x1xf32>
    %622 = vector.broadcast %621 : vector<16x1xf32> to vector<16x16xf32>
    %623 = arith.mulf %622, %39 : vector<16x16xf32>
    %624 = arith.addf %620, %623 : vector<16x16xf32>
    %625 = vector.extract_strided_slice %600 {offsets = [0, 6], sizes = [16, 1], strides = [1, 1]} : vector<16x9xf32> to vector<16x1xf32>
    %626 = vector.broadcast %625 : vector<16x1xf32> to vector<16x16xf32>
    %627 = arith.mulf %626, %43 : vector<16x16xf32>
    %628 = arith.addf %624, %627 : vector<16x16xf32>
    %629 = vector.extract_strided_slice %600 {offsets = [0, 7], sizes = [16, 1], strides = [1, 1]} : vector<16x9xf32> to vector<16x1xf32>
    %630 = vector.broadcast %629 : vector<16x1xf32> to vector<16x16xf32>
    %631 = arith.mulf %630, %47 : vector<16x16xf32>
    %632 = arith.addf %628, %631 : vector<16x16xf32>
    %633 = vector.extract_strided_slice %600 {offsets = [0, 8], sizes = [16, 1], strides = [1, 1]} : vector<16x9xf32> to vector<16x1xf32>
    %634 = vector.broadcast %633 : vector<16x1xf32> to vector<16x16xf32>
    %635 = arith.mulf %634, %51 : vector<16x16xf32>
    %636 = arith.addf %632, %635 : vector<16x16xf32>
    %637 = vector.broadcast %12 : vector<1x16xf32> to vector<16x16xf32>
    %638 = arith.addf %636, %637 : vector<16x16xf32>
    %cst_144 = arith.constant dense<0xFF800000> : vector<16xf32>
    %639 = vector.multi_reduction <maximumf>, %638, %cst_144 [1] : vector<16x16xf32> to vector<16xf32>
    %640 = vector.shape_cast %639 : vector<16xf32> to vector<16x1xf32>
    %641 = vector.broadcast %640 : vector<16x1xf32> to vector<16x16xf32>
    %642 = arith.subf %638, %641 : vector<16x16xf32>
    %643 = math.exp %642 : vector<16x16xf32>
    %cst_145 = arith.constant dense<0.000000e+00> : vector<16xf32>
    %644 = vector.multi_reduction <add>, %643, %cst_145 [1] : vector<16x16xf32> to vector<16xf32>
    %645 = vector.shape_cast %644 : vector<16xf32> to vector<16x1xf32>
    %646 = tpu.reciprocal %645 {approx = true} : vector<16x1xf32> -> vector<16x1xf32>
    %647 = vector.broadcast %646 : vector<16x1xf32> to vector<16x16xf32>
    %648 = arith.mulf %643, %647 : vector<16x16xf32>
    %649 = arith.truncf %648 : vector<16x16xf32> to vector<16x16xbf16>
    %650 = arith.truncf %595 : vector<16x24xf32> to vector<16x24xbf16>
    %cst_146 = arith.constant dense<0.000000e+00> : vector<16x24xf32>
    %651 = tpu.matmul %649, %650, %cst_146 {dimension_numbers = #tpu.dot_dimension_numbers<[1], [0], [0], [1], [0, 0, 1, 1], [], []>} : vector<16x16xbf16>, vector<16x24xbf16>, vector<16x24xf32> -> vector<16x24xf32>
    %cst_147 = arith.constant 0.000000e+00 : f32
    %652 = vector.broadcast %cst_147 : f32 to vector<16x9xf32>
    %653 = arith.mulf %648, %19 : vector<16x16xf32>
    %cst_148 = arith.constant dense<0.000000e+00> : vector<16xf32>
    %654 = vector.multi_reduction <add>, %653, %cst_148 [1] : vector<16x16xf32> to vector<16xf32>
    %655 = vector.shape_cast %654 : vector<16xf32> to vector<16x1xf32>
    %656 = vector.extract_strided_slice %56 {offsets = [0, 0], sizes = [1, 9], strides = [1, 1]} : vector<9x9xf32> to vector<1x9xf32>
    %657 = vector.broadcast %655 : vector<16x1xf32> to vector<16x9xf32>
    %658 = vector.broadcast %656 : vector<1x9xf32> to vector<16x9xf32>
    %659 = arith.mulf %657, %658 : vector<16x9xf32>
    %660 = arith.addf %652, %659 : vector<16x9xf32>
    %661 = arith.mulf %648, %23 : vector<16x16xf32>
    %cst_149 = arith.constant dense<0.000000e+00> : vector<16xf32>
    %662 = vector.multi_reduction <add>, %661, %cst_149 [1] : vector<16x16xf32> to vector<16xf32>
    %663 = vector.shape_cast %662 : vector<16xf32> to vector<16x1xf32>
    %664 = vector.extract_strided_slice %56 {offsets = [1, 0], sizes = [1, 9], strides = [1, 1]} : vector<9x9xf32> to vector<1x9xf32>
    %665 = vector.broadcast %663 : vector<16x1xf32> to vector<16x9xf32>
    %666 = vector.broadcast %664 : vector<1x9xf32> to vector<16x9xf32>
    %667 = arith.mulf %665, %666 : vector<16x9xf32>
    %668 = arith.addf %660, %667 : vector<16x9xf32>
    %669 = arith.mulf %648, %27 : vector<16x16xf32>
    %cst_150 = arith.constant dense<0.000000e+00> : vector<16xf32>
    %670 = vector.multi_reduction <add>, %669, %cst_150 [1] : vector<16x16xf32> to vector<16xf32>
    %671 = vector.shape_cast %670 : vector<16xf32> to vector<16x1xf32>
    %672 = vector.extract_strided_slice %56 {offsets = [2, 0], sizes = [1, 9], strides = [1, 1]} : vector<9x9xf32> to vector<1x9xf32>
    %673 = vector.broadcast %671 : vector<16x1xf32> to vector<16x9xf32>
    %674 = vector.broadcast %672 : vector<1x9xf32> to vector<16x9xf32>
    %675 = arith.mulf %673, %674 : vector<16x9xf32>
    %676 = arith.addf %668, %675 : vector<16x9xf32>
    %677 = arith.mulf %648, %31 : vector<16x16xf32>
    %cst_151 = arith.constant dense<0.000000e+00> : vector<16xf32>
    %678 = vector.multi_reduction <add>, %677, %cst_151 [1] : vector<16x16xf32> to vector<16xf32>
    %679 = vector.shape_cast %678 : vector<16xf32> to vector<16x1xf32>
    %680 = vector.extract_strided_slice %56 {offsets = [3, 0], sizes = [1, 9], strides = [1, 1]} : vector<9x9xf32> to vector<1x9xf32>
    %681 = vector.broadcast %679 : vector<16x1xf32> to vector<16x9xf32>
    %682 = vector.broadcast %680 : vector<1x9xf32> to vector<16x9xf32>
    %683 = arith.mulf %681, %682 : vector<16x9xf32>
    %684 = arith.addf %676, %683 : vector<16x9xf32>
    %685 = arith.mulf %648, %35 : vector<16x16xf32>
    %cst_152 = arith.constant dense<0.000000e+00> : vector<16xf32>
    %686 = vector.multi_reduction <add>, %685, %cst_152 [1] : vector<16x16xf32> to vector<16xf32>
    %687 = vector.shape_cast %686 : vector<16xf32> to vector<16x1xf32>
    %688 = vector.extract_strided_slice %56 {offsets = [4, 0], sizes = [1, 9], strides = [1, 1]} : vector<9x9xf32> to vector<1x9xf32>
    %689 = vector.broadcast %687 : vector<16x1xf32> to vector<16x9xf32>
    %690 = vector.broadcast %688 : vector<1x9xf32> to vector<16x9xf32>
    %691 = arith.mulf %689, %690 : vector<16x9xf32>
    %692 = arith.addf %684, %691 : vector<16x9xf32>
    %693 = arith.mulf %648, %39 : vector<16x16xf32>
    %cst_153 = arith.constant dense<0.000000e+00> : vector<16xf32>
    %694 = vector.multi_reduction <add>, %693, %cst_153 [1] : vector<16x16xf32> to vector<16xf32>
    %695 = vector.shape_cast %694 : vector<16xf32> to vector<16x1xf32>
    %696 = vector.extract_strided_slice %56 {offsets = [5, 0], sizes = [1, 9], strides = [1, 1]} : vector<9x9xf32> to vector<1x9xf32>
    %697 = vector.broadcast %695 : vector<16x1xf32> to vector<16x9xf32>
    %698 = vector.broadcast %696 : vector<1x9xf32> to vector<16x9xf32>
    %699 = arith.mulf %697, %698 : vector<16x9xf32>
    %700 = arith.addf %692, %699 : vector<16x9xf32>
    %701 = arith.mulf %648, %43 : vector<16x16xf32>
    %cst_154 = arith.constant dense<0.000000e+00> : vector<16xf32>
    %702 = vector.multi_reduction <add>, %701, %cst_154 [1] : vector<16x16xf32> to vector<16xf32>
    %703 = vector.shape_cast %702 : vector<16xf32> to vector<16x1xf32>
    %704 = vector.extract_strided_slice %56 {offsets = [6, 0], sizes = [1, 9], strides = [1, 1]} : vector<9x9xf32> to vector<1x9xf32>
    %705 = vector.broadcast %703 : vector<16x1xf32> to vector<16x9xf32>
    %706 = vector.broadcast %704 : vector<1x9xf32> to vector<16x9xf32>
    %707 = arith.mulf %705, %706 : vector<16x9xf32>
    %708 = arith.addf %700, %707 : vector<16x9xf32>
    %709 = arith.mulf %648, %47 : vector<16x16xf32>
    %cst_155 = arith.constant dense<0.000000e+00> : vector<16xf32>
    %710 = vector.multi_reduction <add>, %709, %cst_155 [1] : vector<16x16xf32> to vector<16xf32>
    %711 = vector.shape_cast %710 : vector<16xf32> to vector<16x1xf32>
    %712 = vector.extract_strided_slice %56 {offsets = [7, 0], sizes = [1, 9], strides = [1, 1]} : vector<9x9xf32> to vector<1x9xf32>
    %713 = vector.broadcast %711 : vector<16x1xf32> to vector<16x9xf32>
    %714 = vector.broadcast %712 : vector<1x9xf32> to vector<16x9xf32>
    %715 = arith.mulf %713, %714 : vector<16x9xf32>
    %716 = arith.addf %708, %715 : vector<16x9xf32>
    %717 = arith.mulf %648, %51 : vector<16x16xf32>
    %cst_156 = arith.constant dense<0.000000e+00> : vector<16xf32>
    %718 = vector.multi_reduction <add>, %717, %cst_156 [1] : vector<16x16xf32> to vector<16xf32>
    %719 = vector.shape_cast %718 : vector<16xf32> to vector<16x1xf32>
    %720 = vector.extract_strided_slice %56 {offsets = [8, 0], sizes = [1, 9], strides = [1, 1]} : vector<9x9xf32> to vector<1x9xf32>
    %721 = vector.broadcast %719 : vector<16x1xf32> to vector<16x9xf32>
    %722 = vector.broadcast %720 : vector<1x9xf32> to vector<16x9xf32>
    %723 = arith.mulf %721, %722 : vector<16x9xf32>
    %724 = arith.addf %716, %723 : vector<16x9xf32>
    %725 = arith.truncf %724 : vector<16x9xf32> to vector<16x9xbf16>
    %cst_157 = arith.constant dense<0.000000e+00> : vector<16x24xf32>
    %726 = tpu.matmul %725, %453, %cst_157 {dimension_numbers = #tpu.dot_dimension_numbers<[1], [0], [0], [1], [0, 0, 1, 1], [], []>} : vector<16x9xbf16>, vector<9x24xbf16>, vector<16x24xf32> -> vector<16x24xf32>
    %727 = arith.addf %651, %726 : vector<16x24xf32>
    %728 = tpu.concatenate %590, %727 in 1 : vector<16x24xf32>, vector<16x24xf32> -> vector<16x48xf32>
    %c1_158 = arith.constant 1 : index
    %c0_159 = arith.constant 0 : index
    %c0_160 = arith.constant 0 : index
    %729 = vector.load %arg5[%c1_158, %c0_159, %c0_160] : memref<2x48x48xbf16, #tpu.memory_space<vmem>>, vector<1x48x48xbf16>
    %730 = vector.shape_cast %729 : vector<1x48x48xbf16> to vector<48x48xbf16>
    %731 = arith.truncf %728 : vector<16x48xf32> to vector<16x48xbf16>
    %cst_161 = arith.constant dense<0.000000e+00> : vector<16x48xf32>
    %732 = tpu.matmul %731, %730, %cst_161 {dimension_numbers = #tpu.dot_dimension_numbers<[1], [0], [0], [1], [0, 0, 1, 1], [], []>} : vector<16x48xbf16>, vector<48x48xbf16>, vector<16x48xf32> -> vector<16x48xf32>
    %c1_162 = arith.constant 1 : index
    %c0_163 = arith.constant 0 : index
    %c0_164 = arith.constant 0 : index
    %733 = vector.load %arg6[%c1_162, %c0_163, %c0_164] : memref<2x1x48xf32, #tpu.memory_space<vmem>>, vector<1x1x48xf32>
    %734 = vector.shape_cast %733 : vector<1x1x48xf32> to vector<1x48xf32>
    %735 = vector.broadcast %734 : vector<1x48xf32> to vector<16x48xf32>
    %736 = arith.addf %732, %735 : vector<16x48xf32>
    %737 = arith.addf %441, %736 : vector<16x48xf32>
    %c1_165 = arith.constant 1 : index
    %c0_166 = arith.constant 0 : index
    %c0_167 = arith.constant 0 : index
    %738 = vector.load %arg9[%c1_165, %c0_166, %c0_167] : memref<2x1x48xf32, #tpu.memory_space<vmem>>, vector<1x1x48xf32>
    %739 = vector.shape_cast %738 : vector<1x1x48xf32> to vector<1x48xf32>
    %c1_168 = arith.constant 1 : index
    %c0_169 = arith.constant 0 : index
    %c0_170 = arith.constant 0 : index
    %740 = vector.load %arg10[%c1_168, %c0_169, %c0_170] : memref<2x1x48xf32, #tpu.memory_space<vmem>>, vector<1x1x48xf32>
    %741 = vector.shape_cast %740 : vector<1x1x48xf32> to vector<1x48xf32>
    %cst_171 = arith.constant dense<0.000000e+00> : vector<16xf32>
    %742 = vector.multi_reduction <add>, %737, %cst_171 [1] : vector<16x48xf32> to vector<16xf32>
    %743 = vector.shape_cast %742 : vector<16xf32> to vector<16x1xf32>
    %cst_172 = arith.constant 4.800000e+01 : f32
    %744 = vector.broadcast %cst_172 : f32 to vector<16x1xf32>
    %745 = arith.divf %743, %744 : vector<16x1xf32>
    %746 = vector.broadcast %745 : vector<16x1xf32> to vector<16x48xf32>
    %747 = arith.subf %737, %746 : vector<16x48xf32>
    %748 = arith.mulf %747, %747 : vector<16x48xf32>
    %cst_173 = arith.constant dense<0.000000e+00> : vector<16xf32>
    %749 = vector.multi_reduction <add>, %748, %cst_173 [1] : vector<16x48xf32> to vector<16xf32>
    %750 = vector.shape_cast %749 : vector<16xf32> to vector<16x1xf32>
    %cst_174 = arith.constant 4.800000e+01 : f32
    %751 = vector.broadcast %cst_174 : f32 to vector<16x1xf32>
    %752 = arith.divf %750, %751 : vector<16x1xf32>
    %cst_175 = arith.constant 9.99999974E-6 : f32
    %753 = vector.broadcast %cst_175 : f32 to vector<16x1xf32>
    %754 = arith.addf %752, %753 : vector<16x1xf32>
    %755 = math.rsqrt %754 : vector<16x1xf32>
    %756 = vector.broadcast %755 : vector<16x1xf32> to vector<16x48xf32>
    %757 = arith.mulf %747, %756 : vector<16x48xf32>
    %758 = vector.broadcast %739 : vector<1x48xf32> to vector<16x48xf32>
    %759 = arith.mulf %757, %758 : vector<16x48xf32>
    %760 = vector.broadcast %741 : vector<1x48xf32> to vector<16x48xf32>
    %761 = arith.addf %759, %760 : vector<16x48xf32>
    %762 = vector.broadcast %6 : vector<16x1xf32> to vector<16x48xf32>
    %763 = arith.mulf %761, %762 : vector<16x48xf32>
    %c1_176 = arith.constant 1 : index
    %c0_177 = arith.constant 0 : index
    %c0_178 = arith.constant 0 : index
    %764 = vector.load %arg11[%c1_176, %c0_177, %c0_178] : memref<2x144x64xbf16, #tpu.memory_space<vmem>>, vector<1x144x64xbf16>
    %765 = vector.shape_cast %764 : vector<1x144x64xbf16> to vector<144x64xbf16>
    %c1_179 = arith.constant 1 : index
    %c0_180 = arith.constant 0 : index
    %c0_181 = arith.constant 0 : index
    %766 = vector.load %arg12[%c1_179, %c0_180, %c0_181] : memref<2x1x64xf32, #tpu.memory_space<vmem>>, vector<1x1x64xf32>
    %767 = vector.shape_cast %766 : vector<1x1x64xf32> to vector<1x64xf32>
    %c1_182 = arith.constant 1 : index
    %c0_183 = arith.constant 0 : index
    %768 = vector.load %arg21[%c1_182, %c0_183] : memref<24x128xf32, #tpu.memory_space<vmem>>, vector<16x48xf32>
    tpu.vector_store %arg21[%c1_182, %c0_183], %763 {strides = array<i32>} : memref<24x128xf32, #tpu.memory_space<vmem>>, vector<16x48xf32>,
    %c0_184 = arith.constant 0 : index
    %c0_185 = arith.constant 0 : index
    %769 = vector.load %arg21[%c0_184, %c0_185] : memref<24x128xf32, #tpu.memory_space<vmem>>, vector<16x48xf32>
    %c1_186 = arith.constant 1 : index
    %c0_187 = arith.constant 0 : index
    %770 = vector.load %arg21[%c1_186, %c0_187] : memref<24x128xf32, #tpu.memory_space<vmem>>, vector<16x48xf32>
    %c2_188 = arith.constant 2 : index
    %c0_189 = arith.constant 0 : index
    %771 = vector.load %arg21[%c2_188, %c0_189] : memref<24x128xf32, #tpu.memory_space<vmem>>, vector<16x48xf32>
    %772 = tpu.concatenate %769, %770, %771 in 1 : vector<16x48xf32>, vector<16x48xf32>, vector<16x48xf32> -> vector<16x144xf32>
    %773 = arith.truncf %772 : vector<16x144xf32> to vector<16x144xbf16>
    %cst_190 = arith.constant dense<0.000000e+00> : vector<16x64xf32>
    %774 = tpu.matmul %773, %765, %cst_190 {dimension_numbers = #tpu.dot_dimension_numbers<[1], [0], [0], [1], [0, 0, 1, 1], [], []>} : vector<16x144xbf16>, vector<144x64xbf16>, vector<16x64xf32> -> vector<16x64xf32>
    %775 = vector.broadcast %767 : vector<1x64xf32> to vector<16x64xf32>
    %776 = arith.addf %774, %775 : vector<16x64xf32>
    %cst_191 = arith.constant 0.000000e+00 : f32
    %777 = vector.broadcast %cst_191 : f32 to vector<16x64xf32>
    %778 = arith.maximumf %776, %777 : vector<16x64xf32>
    %779 = vector.broadcast %6 : vector<16x1xf32> to vector<16x64xf32>
    %780 = arith.mulf %778, %779 : vector<16x64xf32>
    %c1_192 = arith.constant 1 : index
    %c0_193 = arith.constant 0 : index
    %c0_194 = arith.constant 0 : index
    %781 = vector.load %arg13[%c1_192, %c0_193, %c0_194] : memref<2x192x48xbf16, #tpu.memory_space<vmem>>, vector<1x192x48xbf16>
    %782 = vector.shape_cast %781 : vector<1x192x48xbf16> to vector<192x48xbf16>
    %c1_195 = arith.constant 1 : index
    %c0_196 = arith.constant 0 : index
    %c0_197 = arith.constant 0 : index
    %783 = vector.load %arg14[%c1_195, %c0_196, %c0_197] : memref<2x1x48xf32, #tpu.memory_space<vmem>>, vector<1x1x48xf32>
    %784 = vector.shape_cast %783 : vector<1x1x48xf32> to vector<1x48xf32>
    %c1_198 = arith.constant 1 : index
    %c0_199 = arith.constant 0 : index
    %785 = vector.load %arg21[%c1_198, %c0_199] : memref<24x128xf32, #tpu.memory_space<vmem>>, vector<16x64xf32>
    tpu.vector_store %arg21[%c1_198, %c0_199], %780 {strides = array<i32>} : memref<24x128xf32, #tpu.memory_space<vmem>>, vector<16x64xf32>,
    %c0_200 = arith.constant 0 : index
    %c0_201 = arith.constant 0 : index
    %786 = vector.load %arg21[%c0_200, %c0_201] : memref<24x128xf32, #tpu.memory_space<vmem>>, vector<16x64xf32>
    %c1_202 = arith.constant 1 : index
    %c0_203 = arith.constant 0 : index
    %787 = vector.load %arg21[%c1_202, %c0_203] : memref<24x128xf32, #tpu.memory_space<vmem>>, vector<16x64xf32>
    %c2_204 = arith.constant 2 : index
    %c0_205 = arith.constant 0 : index
    %788 = vector.load %arg21[%c2_204, %c0_205] : memref<24x128xf32, #tpu.memory_space<vmem>>, vector<16x64xf32>
    %789 = tpu.concatenate %786, %787, %788 in 1 : vector<16x64xf32>, vector<16x64xf32>, vector<16x64xf32> -> vector<16x192xf32>
    %790 = arith.truncf %789 : vector<16x192xf32> to vector<16x192xbf16>
    %cst_206 = arith.constant dense<0.000000e+00> : vector<16x48xf32>
    %791 = tpu.matmul %790, %782, %cst_206 {dimension_numbers = #tpu.dot_dimension_numbers<[1], [0], [0], [1], [0, 0, 1, 1], [], []>} : vector<16x192xbf16>, vector<192x48xbf16>, vector<16x48xf32> -> vector<16x48xf32>
    %792 = vector.broadcast %784 : vector<1x48xf32> to vector<16x48xf32>
    %793 = arith.addf %791, %792 : vector<16x48xf32>
    %794 = vector.broadcast %6 : vector<16x1xf32> to vector<16x48xf32>
    %795 = arith.mulf %793, %794 : vector<16x48xf32>
    %796 = arith.addf %761, %795 : vector<16x48xf32>
    %c1_207 = arith.constant 1 : index
    %c0_208 = arith.constant 0 : index
    %c0_209 = arith.constant 0 : index
    %797 = vector.load %arg15[%c1_207, %c0_208, %c0_209] : memref<2x1x48xf32, #tpu.memory_space<vmem>>, vector<1x1x48xf32>
    %798 = vector.shape_cast %797 : vector<1x1x48xf32> to vector<1x48xf32>
    %c1_210 = arith.constant 1 : index
    %c0_211 = arith.constant 0 : index
    %c0_212 = arith.constant 0 : index
    %799 = vector.load %arg16[%c1_210, %c0_211, %c0_212] : memref<2x1x48xf32, #tpu.memory_space<vmem>>, vector<1x1x48xf32>
    %800 = vector.shape_cast %799 : vector<1x1x48xf32> to vector<1x48xf32>
    %cst_213 = arith.constant dense<0.000000e+00> : vector<16xf32>
    %801 = vector.multi_reduction <add>, %796, %cst_213 [1] : vector<16x48xf32> to vector<16xf32>
    %802 = vector.shape_cast %801 : vector<16xf32> to vector<16x1xf32>
    %cst_214 = arith.constant 4.800000e+01 : f32
    %803 = vector.broadcast %cst_214 : f32 to vector<16x1xf32>
    %804 = arith.divf %802, %803 : vector<16x1xf32>
    %805 = vector.broadcast %804 : vector<16x1xf32> to vector<16x48xf32>
    %806 = arith.subf %796, %805 : vector<16x48xf32>
    %807 = arith.mulf %806, %806 : vector<16x48xf32>
    %cst_215 = arith.constant dense<0.000000e+00> : vector<16xf32>
    %808 = vector.multi_reduction <add>, %807, %cst_215 [1] : vector<16x48xf32> to vector<16xf32>
    %809 = vector.shape_cast %808 : vector<16xf32> to vector<16x1xf32>
    %cst_216 = arith.constant 4.800000e+01 : f32
    %810 = vector.broadcast %cst_216 : f32 to vector<16x1xf32>
    %811 = arith.divf %809, %810 : vector<16x1xf32>
    %cst_217 = arith.constant 9.99999974E-6 : f32
    %812 = vector.broadcast %cst_217 : f32 to vector<16x1xf32>
    %813 = arith.addf %811, %812 : vector<16x1xf32>
    %814 = math.rsqrt %813 : vector<16x1xf32>
    %815 = vector.broadcast %814 : vector<16x1xf32> to vector<16x48xf32>
    %816 = arith.mulf %806, %815 : vector<16x48xf32>
    %817 = vector.broadcast %798 : vector<1x48xf32> to vector<16x48xf32>
    %818 = arith.mulf %816, %817 : vector<16x48xf32>
    %819 = vector.broadcast %800 : vector<1x48xf32> to vector<16x48xf32>
    %820 = arith.addf %818, %819 : vector<16x48xf32>
    %821 = vector.broadcast %6 : vector<16x1xf32> to vector<16x48xf32>
    %822 = arith.mulf %820, %821 : vector<16x48xf32>
    %c0_218 = arith.constant 0 : index
    %c0_219 = arith.constant 0 : index
    %c0_220 = arith.constant 0 : index
    %823 = vector.load %arg19[%c0_218, %c0_219, %c0_220] : memref<1x16x48xf32, #tpu.memory_space<vmem>>, vector<1x16x48xf32>
    %824 = vector.shape_cast %823 : vector<1x16x48xf32> to vector<16x48xf32>
    %825 = vector.shape_cast %822 : vector<16x48xf32> to vector<1x16x48xf32>
    tpu.vector_store %arg19[%c0_218, %c0_219, %c0_220], %825 {strides = array<i32>} : memref<1x16x48xf32, #tpu.memory_space<vmem>>, vector<1x16x48xf32>,
    %c0_221 = arith.constant 0 : index
    %c0_222 = arith.constant 0 : index
    %826 = vector.load %arg17[%c0_221, %c0_222] : memref<48x128xbf16, #tpu.memory_space<vmem>>, vector<48x128xbf16>
    %827 = arith.truncf %822 : vector<16x48xf32> to vector<16x48xbf16>
    %cst_223 = arith.constant dense<0.000000e+00> : vector<16x128xf32>
    %828 = tpu.matmul %827, %826, %cst_223 {dimension_numbers = #tpu.dot_dimension_numbers<[1], [0], [0], [1], [0, 0, 1, 1], [], []>} : vector<16x48xbf16>, vector<48x128xbf16>, vector<16x128xf32> -> vector<16x128xf32>
    %c0_224 = arith.constant 0 : index
    %c0_225 = arith.constant 0 : index
    %829 = vector.load %arg18[%c0_224, %c0_225] : memref<1x128xf32, #tpu.memory_space<vmem>>, vector<1x128xf32>
    %830 = vector.broadcast %829 : vector<1x128xf32> to vector<16x128xf32>
    %831 = arith.addf %828, %830 : vector<16x128xf32>
    %832 = vector.broadcast %6 : vector<16x1xf32> to vector<16x128xf32>
    %833 = arith.mulf %831, %832 : vector<16x128xf32>
    %c0_226 = arith.constant 0 : index
    %c0_227 = arith.constant 0 : index
    %c0_228 = arith.constant 0 : index
    %834 = vector.load %arg20[%c0_226, %c0_227, %c0_228] : memref<1x16x128xf32, #tpu.memory_space<vmem>>, vector<1x16x128xf32>
    %835 = vector.shape_cast %834 : vector<1x16x128xf32> to vector<16x128xf32>
    %836 = vector.shape_cast %833 : vector<16x128xf32> to vector<1x16x128xf32>
    tpu.vector_store %arg20[%c0_226, %c0_227, %c0_228], %836 {strides = array<i32>} : memref<1x16x128xf32, #tpu.memory_space<vmem>>, vector<1x16x128xf32>,
    return
  }
  func.func @transform_0(%arg0: i32) -> (i32, i32, i32) {
    %c0_i32 = arith.constant 0 : i32
    %c0_i32_0 = arith.constant 0 : i32
    %c0_i32_1 = arith.constant 0 : i32
    return %arg0, %c0_i32, %c0_i32_0 : i32, i32, i32
  }
  func.func @transform_1(%arg0: i32) -> i32 {
    %c0_i32 = arith.constant 0 : i32
    %c0_i32_0 = arith.constant 0 : i32
    return %c0_i32 : i32
  }
  func.func @transform_2(%arg0: i32) -> (i32, i32, i32) {
    %c0_i32 = arith.constant 0 : i32
    %c0_i32_0 = arith.constant 0 : i32
    %c0_i32_1 = arith.constant 0 : i32
    %c0_i32_2 = arith.constant 0 : i32
    return %c0_i32, %c0_i32_0, %c0_i32_1 : i32, i32, i32
  }
  func.func @transform_3(%arg0: i32) -> (i32, i32, i32) {
    %c0_i32 = arith.constant 0 : i32
    %c0_i32_0 = arith.constant 0 : i32
    %c0_i32_1 = arith.constant 0 : i32
    %c0_i32_2 = arith.constant 0 : i32
    return %c0_i32, %c0_i32_0, %c0_i32_1 : i32, i32, i32
  }
  func.func @transform_4(%arg0: i32) -> (i32, i32, i32) {
    %c0_i32 = arith.constant 0 : i32
    %c0_i32_0 = arith.constant 0 : i32
    %c0_i32_1 = arith.constant 0 : i32
    %c0_i32_2 = arith.constant 0 : i32
    return %c0_i32, %c0_i32_0, %c0_i32_1 : i32, i32, i32
  }
  func.func @transform_5(%arg0: i32) -> (i32, i32, i32) {
    %c0_i32 = arith.constant 0 : i32
    %c0_i32_0 = arith.constant 0 : i32
    %c0_i32_1 = arith.constant 0 : i32
    %c0_i32_2 = arith.constant 0 : i32
    return %c0_i32, %c0_i32_0, %c0_i32_1 : i32, i32, i32
  }
  func.func @transform_6(%arg0: i32) -> (i32, i32, i32) {
    %c0_i32 = arith.constant 0 : i32
    %c0_i32_0 = arith.constant 0 : i32
    %c0_i32_1 = arith.constant 0 : i32
    %c0_i32_2 = arith.constant 0 : i32
    return %c0_i32, %c0_i32_0, %c0_i32_1 : i32, i32, i32
  }
  func.func @transform_7(%arg0: i32) -> (i32, i32, i32) {
    %c0_i32 = arith.constant 0 : i32
    %c0_i32_0 = arith.constant 0 : i32
    %c0_i32_1 = arith.constant 0 : i32
    %c0_i32_2 = arith.constant 0 : i32
    return %c0_i32, %c0_i32_0, %c0_i32_1 : i32, i32, i32
  }
  func.func @transform_8(%arg0: i32) -> (i32, i32, i32) {
    %c0_i32 = arith.constant 0 : i32
    %c0_i32_0 = arith.constant 0 : i32
    %c0_i32_1 = arith.constant 0 : i32
    %c0_i32_2 = arith.constant 0 : i32
    return %c0_i32, %c0_i32_0, %c0_i32_1 : i32, i32, i32
  }
  func.func @transform_9(%arg0: i32) -> (i32, i32, i32) {
    %c0_i32 = arith.constant 0 : i32
    %c0_i32_0 = arith.constant 0 : i32
    %c0_i32_1 = arith.constant 0 : i32
    %c0_i32_2 = arith.constant 0 : i32
    return %c0_i32, %c0_i32_0, %c0_i32_1 : i32, i32, i32
  }
  func.func @transform_10(%arg0: i32) -> (i32, i32, i32) {
    %c0_i32 = arith.constant 0 : i32
    %c0_i32_0 = arith.constant 0 : i32
    %c0_i32_1 = arith.constant 0 : i32
    %c0_i32_2 = arith.constant 0 : i32
    return %c0_i32, %c0_i32_0, %c0_i32_1 : i32, i32, i32
  }
  func.func @transform_11(%arg0: i32) -> (i32, i32, i32) {
    %c0_i32 = arith.constant 0 : i32
    %c0_i32_0 = arith.constant 0 : i32
    %c0_i32_1 = arith.constant 0 : i32
    %c0_i32_2 = arith.constant 0 : i32
    return %c0_i32, %c0_i32_0, %c0_i32_1 : i32, i32, i32
  }
  func.func @transform_12(%arg0: i32) -> (i32, i32, i32) {
    %c0_i32 = arith.constant 0 : i32
    %c0_i32_0 = arith.constant 0 : i32
    %c0_i32_1 = arith.constant 0 : i32
    %c0_i32_2 = arith.constant 0 : i32
    return %c0_i32, %c0_i32_0, %c0_i32_1 : i32, i32, i32
  }
  func.func @transform_13(%arg0: i32) -> (i32, i32, i32) {
    %c0_i32 = arith.constant 0 : i32
    %c0_i32_0 = arith.constant 0 : i32
    %c0_i32_1 = arith.constant 0 : i32
    %c0_i32_2 = arith.constant 0 : i32
    return %c0_i32, %c0_i32_0, %c0_i32_1 : i32, i32, i32
  }
  func.func @transform_14(%arg0: i32) -> (i32, i32, i32) {
    %c0_i32 = arith.constant 0 : i32
    %c0_i32_0 = arith.constant 0 : i32
    %c0_i32_1 = arith.constant 0 : i32
    %c0_i32_2 = arith.constant 0 : i32
    return %c0_i32, %c0_i32_0, %c0_i32_1 : i32, i32, i32
  }
  func.func @transform_15(%arg0: i32) -> (i32, i32, i32) {
    %c0_i32 = arith.constant 0 : i32
    %c0_i32_0 = arith.constant 0 : i32
    %c0_i32_1 = arith.constant 0 : i32
    %c0_i32_2 = arith.constant 0 : i32
    return %c0_i32, %c0_i32_0, %c0_i32_1 : i32, i32, i32
  }
  func.func @transform_16(%arg0: i32) -> (i32, i32) {
    %c0_i32 = arith.constant 0 : i32
    %c0_i32_0 = arith.constant 0 : i32
    %c0_i32_1 = arith.constant 0 : i32
    return %c0_i32, %c0_i32_0 : i32, i32
  }
  func.func @transform_17(%arg0: i32) -> (i32, i32) {
    %c0_i32 = arith.constant 0 : i32
    %c0_i32_0 = arith.constant 0 : i32
    %c0_i32_1 = arith.constant 0 : i32
    return %c0_i32, %c0_i32_0 : i32, i32
  }
  func.func @transform_18(%arg0: i32) -> (i32, i32, i32) {
    %c0_i32 = arith.constant 0 : i32
    %c0_i32_0 = arith.constant 0 : i32
    %c0_i32_1 = arith.constant 0 : i32
    return %arg0, %c0_i32, %c0_i32_0 : i32, i32, i32
  }
  func.func @transform_19(%arg0: i32) -> (i32, i32, i32) {
    %c0_i32 = arith.constant 0 : i32
    %c0_i32_0 = arith.constant 0 : i32
    %c0_i32_1 = arith.constant 0 : i32
    return %arg0, %c0_i32, %c0_i32_0 : i32, i32, i32
  }
}

</mosaic_0001>

<llo_original>
// kernel: tpu_custom_call.1
$region0: #{tpu_custom_call.1}
  #allocation0 [shape = 'u32[]', space=smem, size = 0x4, offset = 0x4, fixed_abs, tag = 'smem constant byte address 0x4 - core index']
  #allocation1 [shape = 'u32[144,128]{1,0:T(1,128)}', space=vmem, size = 0x12000, scoped, tag = 'internal scratch']
  #allocation2 [shape = 'f32[24,128]{1,0:T(8,128)}', space=vmem, size = 0x3000, scoped, tag = 'scratch operand']
  %s0 = inlined_call_operand.vmem [shape: f32[2,16,48], index: 0, kind: input, shape index: {}]
  %s1 = inlined_call_operand.vmem [shape: s32[2], index: 1, kind: input, shape index: {}]
  %s2 = inlined_call_operand.vmem [shape: bf16[2,48,144], index: 2, kind: input, shape index: {}]
  %s3 = inlined_call_operand.vmem [shape: f32[2,1,144], index: 3, kind: input, shape index: {}]
  %s4 = inlined_call_operand.vmem [shape: bf16[2,48,48], index: 4, kind: input, shape index: {}]
  %s5 = inlined_call_operand.vmem [shape: f32[2,1,48], index: 5, kind: input, shape index: {}]
  %s6 = inlined_call_operand.vmem [shape: bf16[2,9,24], index: 6, kind: input, shape index: {}]
  %s7 = inlined_call_operand.vmem [shape: bf16[2,9,24], index: 7, kind: input, shape index: {}]
  %s8 = inlined_call_operand.vmem [shape: f32[2,1,48], index: 8, kind: input, shape index: {}]
  %s9 = inlined_call_operand.vmem [shape: f32[2,1,48], index: 9, kind: input, shape index: {}]
  %s10 = inlined_call_operand.vmem [shape: bf16[2,144,64], index: 10, kind: input, shape index: {}]
  %s11 = inlined_call_operand.vmem [shape: f32[2,1,64], index: 11, kind: input, shape index: {}]
  %s12 = inlined_call_operand.vmem [shape: bf16[2,192,48], index: 12, kind: input, shape index: {}]
  %s13 = inlined_call_operand.vmem [shape: f32[2,1,48], index: 13, kind: input, shape index: {}]
  %s14 = inlined_call_operand.vmem [shape: f32[2,1,48], index: 14, kind: input, shape index: {}]
  %s15 = inlined_call_operand.vmem [shape: f32[2,1,48], index: 15, kind: input, shape index: {}]
  %s16 = inlined_call_operand.vmem [shape: bf16[48,128], index: 16, kind: input, shape index: {}]
  %s17 = inlined_call_operand.vmem [shape: f32[1,128], index: 17, kind: input, shape index: {}]
  %s18 = inlined_call_operand.hbm [shape: f32[2,16,48], index: 18, kind: output, shape index: {0}]
  %s19 = inlined_call_operand.hbm [shape: f32[2,16,128], index: 19, kind: output, shape index: {1}]
  %20 = xla_tuple %s18, %s19
  %s21 = sld [smem:[#allocation0]]
  $region117: #{tpu_custom_call.1} parent=0
    _
  %s23 = ssub.s32 1, %s21
  %s24 = scalar_select 0, %s23, %s21
  $region1: #{tpu_custom_call.1} parent=0
    #allocation3 [shape = 'u8[512]{0}', space=smem, size = 0x200, scoped, tag = 'input window, operand 1, single buffered']
    #allocation4 [shape = 's32[2]{0}', space=sflag, size = 0x8, scoped, tag = 'scoped memory for tpu_custom_call.1']
    #allocation5 [shape = 's32[2]{0}', space=sflag, size = 0x8, scoped, tag = 'scoped memory for tpu_custom_call.1']
    #allocation6 [shape = 'u8[16384]{0}', space=vmem, size = 0x4000, scoped, tag = 'output window, operand 0']
    #allocation7 [shape = 'u8[16384]{0}', space=vmem, size = 0x4000, scoped, tag = 'output window, operand 1']
    #allocation8 [shape = 's32[2]{0}', space=sflag, size = 0x8, scoped, tag = 'scoped memory for tpu_custom_call.1']
    %25 = vsyncpa [#allocation5], 0
    %26 = vsyncpa [#allocation4], 0
    %s27 = scalar_lea.sflag [#allocation4], 1
    %28 = vsyncpa %s27, 0
    %29 = vsyncpa [#allocation8], 0
    %s30 = scalar_lea.sflag [#allocation8], 1
    %31 = vsyncpa %s30, 0
    loop: start=0, step=1, limit=4
    $region2: #{tpu_custom_call.1} parent=1 // loop_pre_header
      _
    $region3: #{tpu_custom_call.1} parent=1 // loop_header
      %s33 = sphi 0, %s37
      %p34 = scmp.ge.s32.totalorder %s33, 4
      %s43 = sphi 0, %s45
      %s46 = sphi 0, %s43
      %s47 = sphi 0, %s46
      %s63 = sphi 0, %s47
      %s67 = sphi 0, %s67
      %s69 = sphi 0, %s67
      %s70 = sphi 0, %s69
      %s84 = sphi 0, %s70
      %s88 = sphi 0, %s88
      %s90 = sphi 0, %s88
      %s91 = sphi 0, %s90
      %s105 = sphi 0, %s91
      %s109 = sphi 0, %s109
      %s111 = sphi 0, %s109
      %s112 = sphi 0, %s111
      %s126 = sphi 0, %s112
      %s130 = sphi 0, %s130
      %s132 = sphi 0, %s130
      %s133 = sphi 0, %s132
      %s147 = sphi 0, %s133
      %s151 = sphi 0, %s151
      %s153 = sphi 0, %s151
      %s154 = sphi 0, %s153
      %s168 = sphi 0, %s154
      %s172 = sphi 0, %s172
      %s174 = sphi 0, %s172
      %s175 = sphi 0, %s174
      %s189 = sphi 0, %s175
      %s193 = sphi 0, %s193
      %s195 = sphi 0, %s193
      %s196 = sphi 0, %s195
      %s210 = sphi 0, %s196
      %s214 = sphi 0, %s214
      %s216 = sphi 0, %s214
      %s217 = sphi 0, %s216
      %s231 = sphi 0, %s217
      %s235 = sphi 0, %s235
      %s237 = sphi 0, %s235
      %s238 = sphi 0, %s237
      %s252 = sphi 0, %s238
      %s256 = sphi 0, %s256
      %s258 = sphi 0, %s256
      %s259 = sphi 0, %s258
      %s273 = sphi 0, %s259
      %s277 = sphi 0, %s277
      %s279 = sphi 0, %s277
      %s280 = sphi 0, %s279
      %s294 = sphi 0, %s280
      %s298 = sphi 0, %s298
      %s300 = sphi 0, %s298
      %s301 = sphi 0, %s300
      %s315 = sphi 0, %s301
      %s319 = sphi 0, %s319
      %s321 = sphi 0, %s319
      %s322 = sphi 0, %s321
      %s336 = sphi 0, %s322
      %s340 = sphi 0, %s340
      %s342 = sphi 0, %s340
      %s343 = sphi 0, %s342
      %s357 = sphi 0, %s343
      %s361 = sphi 0, %s361
      %s363 = sphi 0, %s361
      %s364 = sphi 0, %s363
      %s378 = sphi 0, %s364
      %s382 = sphi 0, %s382
      %s384 = sphi 0, %s382
      %s385 = sphi 0, %s384
      %s399 = sphi 0, %s385
      %s403 = sphi 0, %s403
      %s405 = sphi 0, %s403
      %s406 = sphi 0, %s405
      %s420 = sphi 0, %s406
      %s426 = sphi 0, %s428
      %s429 = sphi 0, %s426
      %s430 = sphi 0, %s429
      %s446 = sphi 0, %s430
      %s452 = sphi 0, %s454
      %s455 = sphi 0, %s452
      %s456 = sphi 0, %s455
      %s472 = sphi 0, %s456
    $region4: #{tpu_custom_call.1} parent=1 // loop_header_branch
      %36 = sbr.rel (%p34) target = $region8
    $region5: #{tpu_custom_call.1} parent=1 // loop_body
      %s38 = ssub.s32 %s33, 1
      %s39 = ssub.s32 %s33, 2
      %s40 = sadd.s32 %s33, 1
      %s41 = ssub.s32 %s33, %s40
      %p42 = scmp.eq.s32.totalorder %s41, 0
      %s44 = sadd.s32 %s43, 1
      %s45 = scalar_select %p42, %s43, %s44
      %p48 = pneg %p42
      %p49 = scmp.eq.s32.totalorder %s33, 1
      %p50 = por %p48, %p49
      %p51 = scmp.ne.s32.totalorder %s43, %s46
      %p52 = scmp.eq.s32.totalorder %s33, 0
      %p53 = por %p51, %p52
      %p54 = scmp.ne.s32.totalorder %s43, %s46
      %p55 = scmp.eq.s32.totalorder %s38, 1
      %p56 = por %p54, %p55
      %p57 = scmp.ne.s32.totalorder %s46, %s47
      %p58 = scmp.eq.s32.totalorder %s38, 0
      %p59 = por %p57, %p58
      %p60 = scmp.ne.s32.totalorder %s46, %s47
      %p61 = scmp.eq.s32.totalorder %s39, 1
      %p62 = por %p60, %p61
      %p64 = scmp.ne.s32.totalorder %s47, %s63
      %p65 = scmp.eq.s32.totalorder %s39, 0
      %p66 = por %p64, %p65
      %s68 = sadd.s32 %s67, 1
      %p71 = scmp.eq.s32.totalorder %s33, 1
      %p72 = scmp.ne.s32.totalorder %s67, %s69
      %p73 = scmp.eq.s32.totalorder %s33, 0
      %p74 = por %p72, %p73
      %p75 = scmp.ne.s32.totalorder %s67, %s69
      %p76 = scmp.eq.s32.totalorder %s38, 1
      %p77 = por %p75, %p76
      %p78 = scmp.ne.s32.totalorder %s69, %s70
      %p79 = scmp.eq.s32.totalorder %s38, 0
      %p80 = por %p78, %p79
      %p81 = scmp.ne.s32.totalorder %s69, %s70
      %p82 = scmp.eq.s32.totalorder %s39, 1
      %p83 = por %p81, %p82
      %p85 = scmp.ne.s32.totalorder %s70, %s84
      %p86 = scmp.eq.s32.totalorder %s39, 0
      %p87 = por %p85, %p86
      %s89 = sadd.s32 %s88, 1
      %p92 = scmp.eq.s32.totalorder %s33, 1
      %p93 = scmp.ne.s32.totalorder %s88, %s90
      %p94 = scmp.eq.s32.totalorder %s33, 0
      %p95 = por %p93, %p94
      %p96 = scmp.ne.s32.totalorder %s88, %s90
      %p97 = scmp.eq.s32.totalorder %s38, 1
      %p98 = por %p96, %p97
      %p99 = scmp.ne.s32.totalorder %s90, %s91
      %p100 = scmp.eq.s32.totalorder %s38, 0
      %p101 = por %p99, %p100
      %p102 = scmp.ne.s32.totalorder %s90, %s91
      %p103 = scmp.eq.s32.totalorder %s39, 1
      %p104 = por %p102, %p103
      %p106 = scmp.ne.s32.totalorder %s91, %s105
      %p107 = scmp.eq.s32.totalorder %s39, 0
      %p108 = por %p106, %p107
      %s110 = sadd.s32 %s109, 1
      %p113 = scmp.eq.s32.totalorder %s33, 1
      %p114 = scmp.ne.s32.totalorder %s109, %s111
      %p115 = scmp.eq.s32.totalorder %s33, 0
      %p116 = por %p114, %p115
      %p117 = scmp.ne.s32.totalorder %s109, %s111
      %p118 = scmp.eq.s32.totalorder %s38, 1
      %p119 = por %p117, %p118
      %p120 = scmp.ne.s32.totalorder %s111, %s112
      %p121 = scmp.eq.s32.totalorder %s38, 0
      %p122 = por %p120, %p121
      %p123 = scmp.ne.s32.totalorder %s111, %s112
      %p124 = scmp.eq.s32.totalorder %s39, 1
      %p125 = por %p123, %p124
      %p127 = scmp.ne.s32.totalorder %s112, %s126
      %p128 = scmp.eq.s32.totalorder %s39, 0
      %p129 = por %p127, %p128
      %s131 = sadd.s32 %s130, 1
      %p134 = scmp.eq.s32.totalorder %s33, 1
      %p135 = scmp.ne.s32.totalorder %s130, %s132
      %p136 = scmp.eq.s32.totalorder %s33, 0
      %p137 = por %p135, %p136
      %p138 = scmp.ne.s32.totalorder %s130, %s132
      %p139 = scmp.eq.s32.totalorder %s38, 1
      %p140 = por %p138, %p139
      %p141 = scmp.ne.s32.totalorder %s132, %s133
      %p142 = scmp.eq.s32.totalorder %s38, 0
      %p143 = por %p141, %p142
      %p144 = scmp.ne.s32.totalorder %s132, %s133
      %p145 = scmp.eq.s32.totalorder %s39, 1
      %p146 = por %p144, %p145
      %p148 = scmp.ne.s32.totalorder %s133, %s147
      %p149 = scmp.eq.s32.totalorder %s39, 0
      %p150 = por %p148, %p149
      %s152 = sadd.s32 %s151, 1
      %p155 = scmp.eq.s32.totalorder %s33, 1
      %p156 = scmp.ne.s32.totalorder %s151, %s153
      %p157 = scmp.eq.s32.totalorder %s33, 0
      %p158 = por %p156, %p157
      %p159 = scmp.ne.s32.totalorder %s151, %s153
      %p160 = scmp.eq.s32.totalorder %s38, 1
      %p161 = por %p159, %p160
      %p162 = scmp.ne.s32.totalorder %s153, %s154
      %p163 = scmp.eq.s32.totalorder %s38, 0
      %p164 = por %p162, %p163
      %p165 = scmp.ne.s32.totalorder %s153, %s154
      %p166 = scmp.eq.s32.totalorder %s39, 1
      %p167 = por %p165, %p166
      %p169 = scmp.ne.s32.totalorder %s154, %s168
      %p170 = scmp.eq.s32.totalorder %s39, 0
      %p171 = por %p169, %p170
      %s173 = sadd.s32 %s172, 1
      %p176 = scmp.eq.s32.totalorder %s33, 1
      %p177 = scmp.ne.s32.totalorder %s172, %s174
      %p178 = scmp.eq.s32.totalorder %s33, 0
      %p179 = por %p177, %p178
      %p180 = scmp.ne.s32.totalorder %s172, %s174
      %p181 = scmp.eq.s32.totalorder %s38, 1
      %p182 = por %p180, %p181
      %p183 = scmp.ne.s32.totalorder %s174, %s175
      %p184 = scmp.eq.s32.totalorder %s38, 0
      %p185 = por %p183, %p184
      %p186 = scmp.ne.s32.totalorder %s174, %s175
      %p187 = scmp.eq.s32.totalorder %s39, 1
      %p188 = por %p186, %p187
      %p190 = scmp.ne.s32.totalorder %s175, %s189
      %p191 = scmp.eq.s32.totalorder %s39, 0
      %p192 = por %p190, %p191
      %s194 = sadd.s32 %s193, 1
      %p197 = scmp.eq.s32.totalorder %s33, 1
      %p198 = scmp.ne.s32.totalorder %s193, %s195
      %p199 = scmp.eq.s32.totalorder %s33, 0
      %p200 = por %p198, %p199
      %p201 = scmp.ne.s32.totalorder %s193, %s195
      %p202 = scmp.eq.s32.totalorder %s38, 1
      %p203 = por %p201, %p202
      %p204 = scmp.ne.s32.totalorder %s195, %s196
      %p205 = scmp.eq.s32.totalorder %s38, 0
      %p206 = por %p204, %p205
      %p207 = scmp.ne.s32.totalorder %s195, %s196
      %p208 = scmp.eq.s32.totalorder %s39, 1
      %p209 = por %p207, %p208
      %p211 = scmp.ne.s32.totalorder %s196, %s210
      %p212 = scmp.eq.s32.totalorder %s39, 0
      %p213 = por %p211, %p212
      %s215 = sadd.s32 %s214, 1
      %p218 = scmp.eq.s32.totalorder %s33, 1
      %p219 = scmp.ne.s32.totalorder %s214, %s216
      %p220 = scmp.eq.s32.totalorder %s33, 0
      %p221 = por %p219, %p220
      %p222 = scmp.ne.s32.totalorder %s214, %s216
      %p223 = scmp.eq.s32.totalorder %s38, 1
      %p224 = por %p222, %p223
      %p225 = scmp.ne.s32.totalorder %s216, %s217
      %p226 = scmp.eq.s32.totalorder %s38, 0
      %p227 = por %p225, %p226
      %p228 = scmp.ne.s32.totalorder %s216, %s217
      %p229 = scmp.eq.s32.totalorder %s39, 1
      %p230 = por %p228, %p229
      %p232 = scmp.ne.s32.totalorder %s217, %s231
      %p233 = scmp.eq.s32.totalorder %s39, 0
      %p234 = por %p232, %p233
      %s236 = sadd.s32 %s235, 1
      %p239 = scmp.eq.s32.totalorder %s33, 1
      %p240 = scmp.ne.s32.totalorder %s235, %s237
      %p241 = scmp.eq.s32.totalorder %s33, 0
      %p242 = por %p240, %p241
      %p243 = scmp.ne.s32.totalorder %s235, %s237
      %p244 = scmp.eq.s32.totalorder %s38, 1
      %p245 = por %p243, %p244
      %p246 = scmp.ne.s32.totalorder %s237, %s238
      %p247 = scmp.eq.s32.totalorder %s38, 0
      %p248 = por %p246, %p247
      %p249 = scmp.ne.s32.totalorder %s237, %s238
      %p250 = scmp.eq.s32.totalorder %s39, 1
      %p251 = por %p249, %p250
      %p253 = scmp.ne.s32.totalorder %s238, %s252
      %p254 = scmp.eq.s32.totalorder %s39, 0
      %p255 = por %p253, %p254
      %s257 = sadd.s32 %s256, 1
      %p260 = scmp.eq.s32.totalorder %s33, 1
      %p261 = scmp.ne.s32.totalorder %s256, %s258
      %p262 = scmp.eq.s32.totalorder %s33, 0
      %p263 = por %p261, %p262
      %p264 = scmp.ne.s32.totalorder %s256, %s258
      %p265 = scmp.eq.s32.totalorder %s38, 1
      %p266 = por %p264, %p265
      %p267 = scmp.ne.s32.totalorder %s258, %s259
      %p268 = scmp.eq.s32.totalorder %s38, 0
      %p269 = por %p267, %p268
      %p270 = scmp.ne.s32.totalorder %s258, %s259
      %p271 = scmp.eq.s32.totalorder %s39, 1
      %p272 = por %p270, %p271
      %p274 = scmp.ne.s32.totalorder %s259, %s273
      %p275 = scmp.eq.s32.totalorder %s39, 0
      %p276 = por %p274, %p275
      %s278 = sadd.s32 %s277, 1
      %p281 = scmp.eq.s32.totalorder %s33, 1
      %p282 = scmp.ne.s32.totalorder %s277, %s279
      %p283 = scmp.eq.s32.totalorder %s33, 0
      %p284 = por %p282, %p283
      %p285 = scmp.ne.s32.totalorder %s277, %s279
      %p286 = scmp.eq.s32.totalorder %s38, 1
      %p287 = por %p285, %p286
      %p288 = scmp.ne.s32.totalorder %s279, %s280
      %p289 = scmp.eq.s32.totalorder %s38, 0
      %p290 = por %p288, %p289
      %p291 = scmp.ne.s32.totalorder %s279, %s280
      %p292 = scmp.eq.s32.totalorder %s39, 1
      %p293 = por %p291, %p292
      %p295 = scmp.ne.s32.totalorder %s280, %s294
      %p296 = scmp.eq.s32.totalorder %s39, 0
      %p297 = por %p295, %p296
      %s299 = sadd.s32 %s298, 1
      %p302 = scmp.eq.s32.totalorder %s33, 1
      %p303 = scmp.ne.s32.totalorder %s298, %s300
      %p304 = scmp.eq.s32.totalorder %s33, 0
      %p305 = por %p303, %p304
      %p306 = scmp.ne.s32.totalorder %s298, %s300
      %p307 = scmp.eq.s32.totalorder %s38, 1
      %p308 = por %p306, %p307
      %p309 = scmp.ne.s32.totalorder %s300, %s301
      %p310 = scmp.eq.s32.totalorder %s38, 0
      %p311 = por %p309, %p310
      %p312 = scmp.ne.s32.totalorder %s300, %s301
      %p313 = scmp.eq.s32.totalorder %s39, 1
      %p314 = por %p312, %p313
      %p316 = scmp.ne.s32.totalorder %s301, %s315
      %p317 = scmp.eq.s32.totalorder %s39, 0
      %p318 = por %p316, %p317
      %s320 = sadd.s32 %s319, 1
      %p323 = scmp.eq.s32.totalorder %s33, 1
      %p324 = scmp.ne.s32.totalorder %s319, %s321
      %p325 = scmp.eq.s32.totalorder %s33, 0
      %p326 = por %p324, %p325
      %p327 = scmp.ne.s32.totalorder %s319, %s321
      %p328 = scmp.eq.s32.totalorder %s38, 1
      %p329 = por %p327, %p328
      %p330 = scmp.ne.s32.totalorder %s321, %s322
      %p331 = scmp.eq.s32.totalorder %s38, 0
      %p332 = por %p330, %p331
      %p333 = scmp.ne.s32.totalorder %s321, %s322
      %p334 = scmp.eq.s32.totalorder %s39, 1
      %p335 = por %p333, %p334
      %p337 = scmp.ne.s32.totalorder %s322, %s336
      %p338 = scmp.eq.s32.totalorder %s39, 0
      %p339 = por %p337, %p338
      %s341 = sadd.s32 %s340, 1
      %p344 = scmp.eq.s32.totalorder %s33, 1
      %p345 = scmp.ne.s32.totalorder %s340, %s342
      %p346 = scmp.eq.s32.totalorder %s33, 0
      %p347 = por %p345, %p346
      %p348 = scmp.ne.s32.totalorder %s340, %s342
      %p349 = scmp.eq.s32.totalorder %s38, 1
      %p350 = por %p348, %p349
      %p351 = scmp.ne.s32.totalorder %s342, %s343
      %p352 = scmp.eq.s32.totalorder %s38, 0
      %p353 = por %p351, %p352
      %p354 = scmp.ne.s32.totalorder %s342, %s343
      %p355 = scmp.eq.s32.totalorder %s39, 1
      %p356 = por %p354, %p355
      %p358 = scmp.ne.s32.totalorder %s343, %s357
      %p359 = scmp.eq.s32.totalorder %s39, 0
      %p360 = por %p358, %p359
      %s362 = sadd.s32 %s361, 1
      %p365 = scmp.eq.s32.totalorder %s33, 1
      %p366 = scmp.ne.s32.totalorder %s361, %s363
      %p367 = scmp.eq.s32.totalorder %s33, 0
      %p368 = por %p366, %p367
      %p369 = scmp.ne.s32.totalorder %s361, %s363
      %p370 = scmp.eq.s32.totalorder %s38, 1
      %p371 = por %p369, %p370
      %p372 = scmp.ne.s32.totalorder %s363, %s364
      %p373 = scmp.eq.s32.totalorder %s38, 0
      %p374 = por %p372, %p373
      %p375 = scmp.ne.s32.totalorder %s363, %s364
      %p376 = scmp.eq.s32.totalorder %s39, 1
      %p377 = por %p375, %p376
      %p379 = scmp.ne.s32.totalorder %s364, %s378
      %p380 = scmp.eq.s32.totalorder %s39, 0
      %p381 = por %p379, %p380
      %s383 = sadd.s32 %s382, 1
      %p386 = scmp.eq.s32.totalorder %s33, 1
      %p387 = scmp.ne.s32.totalorder %s382, %s384
      %p388 = scmp.eq.s32.totalorder %s33, 0
      %p389 = por %p387, %p388
      %p390 = scmp.ne.s32.totalorder %s382, %s384
      %p391 = scmp.eq.s32.totalorder %s38, 1
      %p392 = por %p390, %p391
      %p393 = scmp.ne.s32.totalorder %s384, %s385
      %p394 = scmp.eq.s32.totalorder %s38, 0
      %p395 = por %p393, %p394
      %p396 = scmp.ne.s32.totalorder %s384, %s385
      %p397 = scmp.eq.s32.totalorder %s39, 1
      %p398 = por %p396, %p397
      %p400 = scmp.ne.s32.totalorder %s385, %s399
      %p401 = scmp.eq.s32.totalorder %s39, 0
      %p402 = por %p400, %p401
      %s404 = sadd.s32 %s403, 1
      %p407 = scmp.eq.s32.totalorder %s33, 1
      %p408 = scmp.ne.s32.totalorder %s403, %s405
      %p409 = scmp.eq.s32.totalorder %s33, 0
      %p410 = por %p408, %p409
      %p411 = scmp.ne.s32.totalorder %s403, %s405
      %p412 = scmp.eq.s32.totalorder %s38, 1
      %p413 = por %p411, %p412
      %p414 = scmp.ne.s32.totalorder %s405, %s406
      %p415 = scmp.eq.s32.totalorder %s38, 0
      %p416 = por %p414, %p415
      %p417 = scmp.ne.s32.totalorder %s405, %s406
      %p418 = scmp.eq.s32.totalorder %s39, 1
      %p419 = por %p417, %p418
      %p421 = scmp.ne.s32.totalorder %s406, %s420
      %p422 = scmp.eq.s32.totalorder %s39, 0
      %p423 = por %p421, %p422
      %s424 = ssub.s32 %s33, %s40
      %p425 = scmp.eq.s32.totalorder %s424, 0
      %s427 = sadd.s32 %s426, 1
      %s428 = scalar_select %p425, %s426, %s427
      %p431 = pneg %p425
      %p432 = scmp.eq.s32.totalorder %s33, 1
      %p433 = por %p431, %p432
      %p434 = scmp.ne.s32.totalorder %s426, %s429
      %p435 = scmp.eq.s32.totalorder %s33, 0
      %p436 = por %p434, %p435
      %p437 = scmp.ne.s32.totalorder %s426, %s429
      %p438 = scmp.eq.s32.totalorder %s38, 1
      %p439 = por %p437, %p438
      %p440 = scmp.ne.s32.totalorder %s429, %s430
      %p441 = scmp.eq.s32.totalorder %s38, 0
      %p442 = por %p440, %p441
      %p443 = scmp.ne.s32.totalorder %s429, %s430
      %p444 = scmp.eq.s32.totalorder %s39, 1
      %p445 = por %p443, %p444
      %p447 = scmp.ne.s32.totalorder %s430, %s446
      %p448 = scmp.eq.s32.totalorder %s39, 0
      %p449 = por %p447, %p448
      %s450 = ssub.s32 %s33, %s40
      %p451 = scmp.eq.s32.totalorder %s450, 0
      %s453 = sadd.s32 %s452, 1
      %s454 = scalar_select %p451, %s452, %s453
      %p457 = pneg %p451
      %p458 = scmp.eq.s32.totalorder %s33, 1
      %p459 = por %p457, %p458
      %p460 = scmp.ne.s32.totalorder %s452, %s455
      %p461 = scmp.eq.s32.totalorder %s33, 0
      %p462 = por %p460, %p461
      %p463 = scmp.ne.s32.totalorder %s452, %s455
      %p464 = scmp.eq.s32.totalorder %s38, 1
      %p465 = por %p463, %p464
      %p466 = scmp.ne.s32.totalorder %s455, %s456
      %p467 = scmp.eq.s32.totalorder %s38, 0
      %p468 = por %p466, %p467
      %p469 = scmp.ne.s32.totalorder %s455, %s456
      %p470 = scmp.eq.s32.totalorder %s39, 1
      %p471 = por %p469, %p470
      %p473 = scmp.ne.s32.totalorder %s456, %s472
      %p474 = scmp.eq.s32.totalorder %s39, 0
      %p475 = por %p473, %p474
      %p476 = scmp.le.s32.totalorder 1, %s33
      %p477 = scmp.lt.s32.totalorder %s33, 3
      %p478 = pnand %p476, %p477
      %p479 = pneg %p478
      // Predicated region
      $region9: #{tpu_custom_call.1} parent=5 // pred_check
        _
      $region10: #{tpu_custom_call.1} parent=5 // pred_check_branch
        %481 = sbr.rel (%p478) target = $region12
      $region11: #{tpu_custom_call.1} parent=5 // pred_region
        %s482 = ssub.s32 %s33, 1
        // Predicated region
        $region13: #{tpu_custom_call.1} parent=11 // pred_check
          %p483 = pneg %p80
        $region14: #{tpu_custom_call.1} parent=11 // pred_check_branch
          %485 = sbr.rel (%p483) target = $region16
        $region15: #{tpu_custom_call.1} parent=11 // pred_region
          %s487 = ssub.s32 16, 16
          %488 = vsyncadd [#allocation5], %s487
          %s490 = sshll.u32 %s1, 4
          %s491 = int_to_ptr.vmem [resolvable:$true] %s490
          %493 = dma.vmem_to_smem %s491, 16, [#allocation3], [#allocation5]
        $region16: #{tpu_custom_call.1} parent=11 // pred_fallthru
          _
        // Predicated region
        $region17: #{tpu_custom_call.1} parent=11 // pred_check
          %p494 = pneg %p101
        $region18: #{tpu_custom_call.1} parent=11 // pred_check_branch
          %496 = sbr.rel (%p494) target = $region20
        $region19: #{tpu_custom_call.1} parent=11 // pred_region
          _
        $region20: #{tpu_custom_call.1} parent=11 // pred_fallthru
          _
        // Predicated region
        $region21: #{tpu_custom_call.1} parent=11 // pred_check
          %p497 = pneg %p122
        $region22: #{tpu_custom_call.1} parent=11 // pred_check_branch
          %499 = sbr.rel (%p497) target = $region24
        $region23: #{tpu_custom_call.1} parent=11 // pred_region
          _
        $region24: #{tpu_custom_call.1} parent=11 // pred_fallthru
          _
        // Predicated region
        $region25: #{tpu_custom_call.1} parent=11 // pred_check
          %p500 = pneg %p143
        $region26: #{tpu_custom_call.1} parent=11 // pred_check_branch
          %502 = sbr.rel (%p500) target = $region28
        $region27: #{tpu_custom_call.1} parent=11 // pred_region
          _
        $region28: #{tpu_custom_call.1} parent=11 // pred_fallthru
          _
        // Predicated region
        $region29: #{tpu_custom_call.1} parent=11 // pred_check
          %p503 = pneg %p164
        $region30: #{tpu_custom_call.1} parent=11 // pred_check_branch
          %505 = sbr.rel (%p503) target = $region32
        $region31: #{tpu_custom_call.1} parent=11 // pred_region
          _
        $region32: #{tpu_custom_call.1} parent=11 // pred_fallthru
          _
        // Predicated region
        $region33: #{tpu_custom_call.1} parent=11 // pred_check
          %p506 = pneg %p185
        $region34: #{tpu_custom_call.1} parent=11 // pred_check_branch
          %508 = sbr.rel (%p506) target = $region36
        $region35: #{tpu_custom_call.1} parent=11 // pred_region
          _
        $region36: #{tpu_custom_call.1} parent=11 // pred_fallthru
          _
        // Predicated region
        $region37: #{tpu_custom_call.1} parent=11 // pred_check
          %p509 = pneg %p206
        $region38: #{tpu_custom_call.1} parent=11 // pred_check_branch
          %511 = sbr.rel (%p509) target = $region40
        $region39: #{tpu_custom_call.1} parent=11 // pred_region
          _
        $region40: #{tpu_custom_call.1} parent=11 // pred_fallthru
          _
        // Predicated region
        $region41: #{tpu_custom_call.1} parent=11 // pred_check
          %p512 = pneg %p227
        $region42: #{tpu_custom_call.1} parent=11 // pred_check_branch
          %514 = sbr.rel (%p512) target = $region44
        $region43: #{tpu_custom_call.1} parent=11 // pred_region
          _
        $region44: #{tpu_custom_call.1} parent=11 // pred_fallthru
          _
        // Predicated region
        $region45: #{tpu_custom_call.1} parent=11 // pred_check
          %p515 = pneg %p248
        $region46: #{tpu_custom_call.1} parent=11 // pred_check_branch
          %517 = sbr.rel (%p515) target = $region48
        $region47: #{tpu_custom_call.1} parent=11 // pred_region
          _
        $region48: #{tpu_custom_call.1} parent=11 // pred_fallthru
          _
        // Predicated region
        $region49: #{tpu_custom_call.1} parent=11 // pred_check
          %p518 = pneg %p269
        $region50: #{tpu_custom_call.1} parent=11 // pred_check_branch
          %520 = sbr.rel (%p518) target = $region52
        $region51: #{tpu_custom_call.1} parent=11 // pred_region
          _
        $region52: #{tpu_custom_call.1} parent=11 // pred_fallthru
          _
        // Predicated region
        $region53: #{tpu_custom_call.1} parent=11 // pred_check
          %p521 = pneg %p290
        $region54: #{tpu_custom_call.1} parent=11 // pred_check_branch
          %523 = sbr.rel (%p521) target = $region56
        $region55: #{tpu_custom_call.1} parent=11 // pred_region
          _
        $region56: #{tpu_custom_call.1} parent=11 // pred_fallthru
          _
        // Predicated region
        $region57: #{tpu_custom_call.1} parent=11 // pred_check
          %p524 = pneg %p311
        $region58: #{tpu_custom_call.1} parent=11 // pred_check_branch
          %526 = sbr.rel (%p524) target = $region60
        $region59: #{tpu_custom_call.1} parent=11 // pred_region
          _
        $region60: #{tpu_custom_call.1} parent=11 // pred_fallthru
          _
        // Predicated region
        $region61: #{tpu_custom_call.1} parent=11 // pred_check
          %p527 = pneg %p332
        $region62: #{tpu_custom_call.1} parent=11 // pred_check_branch
          %529 = sbr.rel (%p527) target = $region64
        $region63: #{tpu_custom_call.1} parent=11 // pred_region
          _
        $region64: #{tpu_custom_call.1} parent=11 // pred_fallthru
          _
        // Predicated region
        $region65: #{tpu_custom_call.1} parent=11 // pred_check
          %p530 = pneg %p353
        $region66: #{tpu_custom_call.1} parent=11 // pred_check_branch
          %532 = sbr.rel (%p530) target = $region68
        $region67: #{tpu_custom_call.1} parent=11 // pred_region
          _
        $region68: #{tpu_custom_call.1} parent=11 // pred_fallthru
          _
        // Predicated region
        $region69: #{tpu_custom_call.1} parent=11 // pred_check
          %p533 = pneg %p374
        $region70: #{tpu_custom_call.1} parent=11 // pred_check_branch
          %535 = sbr.rel (%p533) target = $region72
        $region71: #{tpu_custom_call.1} parent=11 // pred_region
          _
        $region72: #{tpu_custom_call.1} parent=11 // pred_fallthru
          _
        // Predicated region
        $region73: #{tpu_custom_call.1} parent=11 // pred_check
          %p536 = pneg %p395
        $region74: #{tpu_custom_call.1} parent=11 // pred_check_branch
          %538 = sbr.rel (%p536) target = $region76
        $region75: #{tpu_custom_call.1} parent=11 // pred_region
          _
        $region76: #{tpu_custom_call.1} parent=11 // pred_fallthru
          _
        // Predicated region
        $region77: #{tpu_custom_call.1} parent=11 // pred_check
          %p539 = pneg %p416
        $region78: #{tpu_custom_call.1} parent=11 // pred_check_branch
          %541 = sbr.rel (%p539) target = $region80
        $region79: #{tpu_custom_call.1} parent=11 // pred_region
          _
        $region80: #{tpu_custom_call.1} parent=11 // pred_fallthru
          _
      $region12: #{tpu_custom_call.1} parent=5 // pred_fallthru
        _
      %p542 = scmp.lt.s32.totalorder %s33, 2
      // Predicated region
      $region81: #{tpu_custom_call.1} parent=5 // pred_check
        %p543 = pneg %p542
      $region82: #{tpu_custom_call.1} parent=5 // pred_check_branch
        %545 = sbr.rel (%p543) target = $region84
      $region83: #{tpu_custom_call.1} parent=5 // pred_region
        // Predicated region
        $region85: #{tpu_custom_call.1} parent=83 // pred_check
          %p546 = pneg %p53
        $region86: #{tpu_custom_call.1} parent=83 // pred_check_branch
          %548 = sbr.rel (%p546) target = $region88
        $region87: #{tpu_custom_call.1} parent=83 // pred_region
          %p549 = scmp.lt.s32.totalorder %s33, 1
          %s550 = scalar_select %p549, %s33, 1
          %s551 = smul.addr %s550, 2
          %s552 = smul.addr %s551, 8
          %s553 = scalar_lea.vmem %s0, %s552
        $region88: #{tpu_custom_call.1} parent=83 // pred_fallthru
          _
      $region84: #{tpu_custom_call.1} parent=5 // pred_fallthru
        _
      %p554 = scmp.le.s32.totalorder 1, %s33
      %p555 = scmp.lt.s32.totalorder %s33, 3
      %p556 = pnand %p554, %p555
      %p557 = pneg %p556
      // Predicated region
      $region89: #{tpu_custom_call.1} parent=5 // pred_check
        _
      $region90: #{tpu_custom_call.1} parent=5 // pred_check_branch
        %559 = sbr.rel (%p556) target = $region92
      $region91: #{tpu_custom_call.1} parent=5 // pred_region
        %s560 = ssub.s32 %s33, 1
        // Predicated region
        $region93: #{tpu_custom_call.1} parent=91 // pred_check
          %p561 = pneg %p80
        $region94: #{tpu_custom_call.1} parent=91 // pred_check_branch
          %563 = sbr.rel (%p561) target = $region96
        $region95: #{tpu_custom_call.1} parent=91 // pred_region
          %564 = dma.done [#allocation5], 16
        $region96: #{tpu_custom_call.1} parent=91 // pred_fallthru
          _
        %565 = sfence
        %p566 = scmp.lt.s32.totalorder %s38, 1
        %s567 = scalar_select %p566, %s38, 1
        %s568 = smul.addr %s567, 2
        %s569 = smul.addr %s568, 8
        %s570 = scalar_lea.vmem %s0, %s569
        %p571 = pneg %p59
        %p572 = pneg %p56
        %p573 = pneg %p80
        %p574 = pneg %p77
        %p575 = pneg %p101
        %p576 = pneg %p98
        %p577 = pneg %p122
        %p578 = pneg %p119
        %p579 = pneg %p143
        %p580 = pneg %p140
        %p581 = pneg %p164
        %p582 = pneg %p161
        %p583 = pneg %p185
        %p584 = pneg %p182
        %p585 = pneg %p206
        %p586 = pneg %p203
        %p587 = pneg %p227
        %p588 = pneg %p224
        %p589 = pneg %p248
        %p590 = pneg %p245
        %p591 = pneg %p269
        %p592 = pneg %p266
        %p593 = pneg %p290
        %p594 = pneg %p287
        %p595 = pneg %p311
        %p596 = pneg %p308
        %p597 = pneg %p332
        %p598 = pneg %p329
        %p599 = pneg %p353
        %p600 = pneg %p350
        %p601 = pneg %p374
        %p602 = pneg %p371
        %p603 = pneg %p395
        %p604 = pneg %p392
        %p605 = pneg %p416
        %p606 = pneg %p413
        %p607 = pneg %p442
        %p608 = pneg %p439
        %s609 = sand.u32 %s429, 1
        %s610 = scalar_lea.sflag [#allocation4], %s609
        %s611 = sand.u32 %s429, 1
        %s612 = smul.addr %s611, 16
        %s613 = scalar_lea.vmem [#allocation6], %s612
        %p614 = pneg %p468
        %p615 = pneg %p465
        %s616 = sand.u32 %s455, 1
        %s617 = scalar_lea.sflag [#allocation8], %s616
        %s618 = sand.u32 %s455, 1
        %s619 = smul.addr %s618, 16
        %s620 = scalar_lea.vmem [#allocation7], %s619
        %p621 = scmp.lt.s32.totalorder %s38, 1
        %s622 = scalar_select %p621, %s38, 1
        %s623 = smul.addr %s622, 2
        %s624 = smul.addr %s623, 8
        %s625 = scalar_lea.vmem %s0, %s624
        %s627 = sld [smem:[#allocation3 + %s38]]
        %v628 = vlaneseq
        %v629 = vshrl.u32 %v628, 7
        %v630 = vadd.s32 %v629, 8
        %v631 = vstv %s627
        %vm632 = vcmp.lt.s32.totalorder %v629, %v631
        %vm633 = vcmp.lt.s32.totalorder %v630, %v631
        %v634 = vsel %vm632, 1, 0
        %v635 = vsel %vm633, 1, 0
        %v636 = vcvt.s32.f32 %v634
        %v637 = vcvt.s32.f32 %v635
        %v638 = vlaneseq
        %v639 = vand.u32 %v638, 127
        %vm640 = vcmp.lt.s32.totalorder %v639, %v631
        %v641 = vsel %vm640, 0.0, -1e+09
        %v642 = vsub.s32 %v639, %v629
        %v643 = vsub.s32 %v639, %v630
        %vm644 = vcmp.eq.s32.totalorder %v642, 4294967292
        %vm645 = vcmp.eq.s32.totalorder %v643, 4294967292
        %v646 = vsel %vm644, 1, 0
        %v647 = vsel %vm645, 1, 0
        %v648 = vcvt.s32.f32 %v646
        %v649 = vcvt.s32.f32 %v647
        %vm650 = vcmp.eq.s32.totalorder %v642, 4294967293
        %vm651 = vcmp.eq.s32.totalorder %v643, 4294967293
        %v652 = vsel %vm650, 1, 0
        %v653 = vsel %vm651, 1, 0
        %v654 = vcvt.s32.f32 %v652
        %v655 = vcvt.s32.f32 %v653
        %vm656 = vcmp.eq.s32.totalorder %v642, 4294967294
        %vm657 = vcmp.eq.s32.totalorder %v643, 4294967294
        %v658 = vsel %vm656, 1, 0
        %v659 = vsel %vm657, 1, 0
        %v660 = vcvt.s32.f32 %v658
        %v661 = vcvt.s32.f32 %v659
        %vm662 = vcmp.eq.s32.totalorder %v642, 4294967295
        %vm663 = vcmp.eq.s32.totalorder %v643, 4294967295
        %v664 = vsel %vm662, 1, 0
        %v665 = vsel %vm663, 1, 0
        %v666 = vcvt.s32.f32 %v664
        %v667 = vcvt.s32.f32 %v665
        %vm668 = vcmp.eq.s32.totalorder %v642, 0
        %vm669 = vcmp.eq.s32.totalorder %v643, 0
        %v670 = vsel %vm668, 1, 0
        %v671 = vsel %vm669, 1, 0
        %v672 = vcvt.s32.f32 %v670
        %v673 = vcvt.s32.f32 %v671
        %vm674 = vcmp.eq.s32.totalorder %v642, 1
        %vm675 = vcmp.eq.s32.totalorder %v643, 1
        %v676 = vsel %vm674, 1, 0
        %v677 = vsel %vm675, 1, 0
        %v678 = vcvt.s32.f32 %v676
        %v679 = vcvt.s32.f32 %v677
        %vm680 = vcmp.eq.s32.totalorder %v642, 2
        %vm681 = vcmp.eq.s32.totalorder %v643, 2
        %v682 = vsel %vm680, 1, 0
        %v683 = vsel %vm681, 1, 0
        %v684 = vcvt.s32.f32 %v682
        %v685 = vcvt.s32.f32 %v683
        %vm686 = vcmp.eq.s32.totalorder %v642, 3
        %vm687 = vcmp.eq.s32.totalorder %v643, 3
        %v688 = vsel %vm686, 1, 0
        %v689 = vsel %vm687, 1, 0
        %v690 = vcvt.s32.f32 %v688
        %v691 = vcvt.s32.f32 %v689
        %vm692 = vcmp.eq.s32.totalorder %v642, 4
        %vm693 = vcmp.eq.s32.totalorder %v643, 4
        %v694 = vsel %vm692, 1, 0
        %v695 = vsel %vm693, 1, 0
        %v696 = vcvt.s32.f32 %v694
        %v697 = vcvt.s32.f32 %v695
        %vm698 = vcmp.eq.s32.totalorder %v629, %v639
        %vm699 = vcmp.eq.s32.totalorder %v630, %v639
        %v700 = vsel %vm698, 1, 0
        %v701 = vsel %vm699, 1, 0
        %v702 = vcvt.s32.f32 %v700
        %v703 = vcvt.s32.f32 %v701
        %704 = vst [vmem:[#allocation2] sm:$0xff] 0.0
        %705 = vst [vmem:[#allocation2 + $0x8] sm:$0xff] 0.0
        %706 = vst [vmem:[#allocation2 + $0x10] sm:$0xff] 0.0
        %v707 = vld [vmem:[%s625] sm:$0xff]
        %v708 = vld [vmem:[%s625 + $0x8] sm:$0xff]
        %v709 = vmul.f32 %v707, %v636
        %v710 = vmul.f32 %v708, %v637
        %v711 = vld [vmem:[%s2] sm:$0xff]
        %v712 = vld [vmem:[%s2 + $0x8] sm:$0xff]
        %v713 = vld [vmem:[%s2 + $0x10] sm:$0xff]
        %v714 = vld [vmem:[%s2 + $0x18] sm:$0xff]
        %v715 = vld [vmem:[%s2 + $0x20] sm:$0xff]
        %v716 = vld [vmem:[%s2 + $0x28] sm:$0xff]
        %v717 = vpack.c.bf16 %v710, %v709
        %v718 = vld [vmem:[%s3] sm:$0x3]
        %v720 = vlaneseq
        %v721 = vshrl.u32 %v720, 7
        %v722 = vsub.s32 0, %v721
        %v723 = vrot.slane %v718, %v722
        %v724 = vlaneseq
        %v725 = vshrl.u32 %v724, 7
        %v726 = vsub.s32 1, %v725
        %v727 = vrot.slane %v718, %v726
        %v736 = vunpack.c.l.b16 %v711
        %v737 = vunpack.c.h.b16 %v711
        %v738 = vunpack.c.l.b16 %v712
        %v739 = vunpack.c.h.b16 %v712
        %v740 = vunpack.c.l.b16 %v713
        %v741 = vunpack.c.h.b16 %v713
        %v742 = vunpack.c.l.b16 %v714
        %v743 = vunpack.c.h.b16 %v714
        %v744 = vunpack.c.l.b16 %v715
        %v745 = vunpack.c.h.b16 %v715
        %v746 = vunpack.c.l.b16 %v716
        %v747 = vunpack.c.h.b16 %v716
        %v748 = vpack.c.b16 %v738, %v736
        %v749 = vpack.c.b16 %v739, %v737
        %v750 = vpack.c.b16 %v742, %v740
        %v751 = vpack.c.b16 %v743, %v741
        %v752 = vpack.c.b16 %v746, %v744
        %v753 = vpack.c.b16 %v747, %v745
        %vm760 = vcmask 392192
        %v762 = vsel %vm760, %v717, 0
        %764 = vmatprep.subr.bf16.mxu0 0
        %765 = vmatpush1.bf16.msra.mxu0 0
        %766 = vmatprep.subr.bf16.mxu0 0
        %767 = vmatpush1.bf16.msra.mxu0 0
        %768 = vmatprep.subr.bf16.mxu0 0
        %769 = vmatpush1.bf16.msra.mxu0 0
        %770 = vmatprep.subr.bf16.mxu0 0
        %771 = vmatpush1.bf16.msra.mxu0 0
        %772 = vmatprep.subr.bf16.mxu0 0
        %773 = vmatpush1.bf16.msra.mxu0 0
        %774 = vmatprep.subr.bf16.mxu0 %v753
        %775 = vmatpush1.bf16.msra.mxu0 %v752
        %776 = vmatprep.subr.bf16.mxu0 %v751
        %777 = vmatpush1.bf16.msra.mxu0 %v750
        %778 = vmatprep.subr.bf16.mxu0 %v749
        %779 = vmatpush1.bf16.msra.mxu0 %v748
        %780 = vmatprep.subr.bf16.mxu0 0
        %781 = vmatpush2.bf16.msra.mxu0 0
        %782 = vmatprep.subr.bf16.mxu0 0
        %783 = vmatpush2.bf16.msra.mxu0 0
        %784 = vmatprep.subr.bf16.mxu0 0
        %785 = vmatpush2.bf16.msra.mxu0 0
        %786 = vmatprep.subr.bf16.mxu0 0
        %787 = vmatpush2.bf16.msra.mxu0 0
        %788 = vmatprep.subr.bf16.mxu0 0
        %789 = vmatpush2.bf16.msra.mxu0 0
        %790 = vmatprep.subr.bf16.mxu0 0
        %791 = vmatpush2.bf16.msra.mxu0 0
        %792 = vmatprep.subr.bf16.mxu0 0
        %793 = vmatpush2.bf16.msra.mxu0 0
        %794 = vmatprep.subr.bf16.mxu0 0
        %795 = vmatpush2.bf16.msra.mxu0 0
        %796 = vmatprep.mubr.bf16.mxu0 0
        %797 = vmatmul.mubr.bf16.gmra.mxu0 %v762
        %v798 = vpop.f32.mrf.mxu0
        %v799 = vadd.f32 %v723, %v798
        %v800 = vpop.f32.mrf.mxu0
        %v801 = vadd.f32 %v727, %v800
        %v802 = vpop.f32.mrf.mxu0
        %v803 = vadd.f32 %v723, %v802
        %v804 = vpop.f32.mrf.mxu0
        %v805 = vadd.f32 %v727, %v804
        %806 = vdwg.mxu0
        %v807 = vld [vmem:[%s6] sm:$0xf]
        %v808 = vld [vmem:[%s6 + $0x4] sm:$0x1]
        %v809 = vld [vmem:[%s7] sm:$0xf]
        %v810 = vld [vmem:[%s7 + $0x4] sm:$0x1]
        %v811 = vmul.f32 %v799, 0.20412415
        %v812 = vmul.f32 %v803, 0.20412415
        %v813 = vpack.c.bf16 %v812, %v811
        %v814 = vpack.c.bf16 %v803, %v799
        %v817 = vunpack.c.l.b16 %v807
        %v818 = vunpack.c.l.b16 %v808
        %v819 = vpack.c.b16 %v818, %v817
        %vm820 = vcmask 195584
        %v822 = vsel %vm820, %v813, 0
        %v825 = vsel %vm820, %v819, 0
        %827 = vmatprep.subr.bf16.mxu0 0
        %828 = vmatpush1.bf16.xpose.msra.mxu0 0
        %829 = vmatprep.subr.bf16.mxu0 0
        %830 = vmatpush1.bf16.xpose.msra.mxu0 0
        %831 = vmatprep.subr.bf16.mxu0 0
        %832 = vmatpush1.bf16.xpose.msra.mxu0 0
        %833 = vmatprep.subr.bf16.mxu0 0
        %834 = vmatpush1.bf16.xpose.msra.mxu0 0
        %835 = vmatprep.subr.bf16.mxu0 0
        %836 = vmatpush1.bf16.xpose.msra.mxu0 0
        %837 = vmatprep.subr.bf16.mxu0 0
        %838 = vmatpush1.bf16.xpose.msra.mxu0 0
        %839 = vmatprep.subr.bf16.mxu0 0
        %840 = vmatpush1.bf16.xpose.msra.mxu0 0
        %841 = vmatprep.subr.bf16.mxu0 0
        %842 = vmatpush1.bf16.xpose.msra.mxu0 %v825
        %843 = vmatprep.subr.bf16.mxu0 0
        %844 = vmatpush2.bf16.xpose.msra.mxu0 0
        %845 = vmatprep.subr.bf16.mxu0 0
        %846 = vmatpush2.bf16.xpose.msra.mxu0 0
        %847 = vmatprep.subr.bf16.mxu0 0
        %848 = vmatpush2.bf16.xpose.msra.mxu0 0
        %849 = vmatprep.subr.bf16.mxu0 0
        %850 = vmatpush2.bf16.xpose.msra.mxu0 0
        %851 = vmatprep.subr.bf16.mxu0 0
        %852 = vmatpush2.bf16.xpose.msra.mxu0 0
        %853 = vmatprep.subr.bf16.mxu0 0
        %854 = vmatpush2.bf16.xpose.msra.mxu0 0
        %855 = vmatprep.subr.bf16.mxu0 0
        %856 = vmatpush2.bf16.xpose.msra.mxu0 0
        %857 = vmatprep.subr.bf16.mxu0 0
        %858 = vmatpush2.bf16.xpose.msra.mxu0 0
        %859 = vmatprep.mubr.bf16.mxu0 0
        %860 = vmatmul.mubr.bf16.gmra.mxu0 %v822
        %v861 = vpop.f32.mrf.mxu0
        %v862 = vadd.f32 0.0, %v861
        %v863 = vpop.f32.mrf.mxu0
        %v864 = vpop.f32.mrf.mxu0
        %v865 = vadd.f32 0.0, %v864
        %v866 = vpop.f32.mrf.mxu0
        %867 = vdwg.mxu0
        %869 = vset.pattern.permute.xlu0 0
        %870 = vperm.xlu0 %869, %v862
        %v871 = vpop.permute.xlu0 %870
        %874 = vset.pattern.permute.xlu0 0
        %875 = vperm.xlu0 %874, %v865
        %v876 = vpop.permute.xlu0 %875
        %v878 = vmul.f32 %v871, %v648
        %v879 = vmul.f32 %v876, %v649
        %881 = vrot.lane.b32.xlu0 %v814, 80
        %v882 = vpop.permute.xlu0 %881
        %v884 = vsel %vm820, %v882, 0
        %886 = vmatprep.subr.bf16.mxu0 0
        %887 = vmatpush1.bf16.xpose.msra.mxu0 0
        %888 = vmatprep.subr.bf16.mxu0 0
        %889 = vmatpush1.bf16.xpose.msra.mxu0 0
        %890 = vmatprep.subr.bf16.mxu0 0
        %891 = vmatpush1.bf16.xpose.msra.mxu0 0
        %892 = vmatprep.subr.bf16.mxu0 0
        %893 = vmatpush1.bf16.xpose.msra.mxu0 0
        %894 = vmatprep.subr.bf16.mxu0 0
        %895 = vmatpush1.bf16.xpose.msra.mxu0 0
        %896 = vmatprep.subr.bf16.mxu0 0
        %897 = vmatpush1.bf16.xpose.msra.mxu0 0
        %898 = vmatprep.subr.bf16.mxu0 0
        %899 = vmatpush1.bf16.xpose.msra.mxu0 0
        %900 = vmatprep.subr.bf16.mxu0 0
        %901 = vmatpush1.bf16.xpose.msra.mxu0 %v884
        %902 = vmatprep.subr.bf16.mxu0 0
        %903 = vmatpush2.bf16.xpose.msra.mxu0 0
        %904 = vmatprep.subr.bf16.mxu0 0
        %905 = vmatpush2.bf16.xpose.msra.mxu0 0
        %906 = vmatprep.subr.bf16.mxu0 0
        %907 = vmatpush2.bf16.xpose.msra.mxu0 0
        %908 = vmatprep.subr.bf16.mxu0 0
        %909 = vmatpush2.bf16.xpose.msra.mxu0 0
        %910 = vmatprep.subr.bf16.mxu0 0
        %911 = vmatpush2.bf16.xpose.msra.mxu0 0
        %912 = vmatprep.subr.bf16.mxu0 0
        %913 = vmatpush2.bf16.xpose.msra.mxu0 0
        %914 = vmatprep.subr.bf16.mxu0 0
        %915 = vmatpush2.bf16.xpose.msra.mxu0 0
        %916 = vmatprep.subr.bf16.mxu0 0
        %917 = vmatpush2.bf16.xpose.msra.mxu0 0
        %918 = vmatprep.mubr.bf16.mxu0 0
        %919 = vmatmul.mubr.bf16.gmra.mxu0 %v822
        %v920 = vpop.f32.mrf.mxu0
        %v921 = vadd.f32 %v878, %v920
        %v922 = vpop.f32.mrf.mxu0
        %v923 = vpop.f32.mrf.mxu0
        %v924 = vadd.f32 %v879, %v923
        %v925 = vpop.f32.mrf.mxu0
        %926 = vdwg.mxu0
        %927 = vset.pattern.permute.xlu0 1
        %928 = vperm.xlu0 %927, %v862
        %v929 = vpop.permute.xlu0 %928
        %931 = vset.pattern.permute.xlu0 1
        %932 = vperm.xlu0 %931, %v865
        %v933 = vpop.permute.xlu0 %932
        %v935 = vmul.f32 %v929, %v654
        %v936 = vmul.f32 %v933, %v655
        %v937 = vadd.f32 %v921, %v935
        %v938 = vadd.f32 %v924, %v936
        %939 = vset.pattern.permute.xlu0 2
        %940 = vperm.xlu0 %939, %v862
        %v941 = vpop.permute.xlu0 %940
        %943 = vset.pattern.permute.xlu0 2
        %944 = vperm.xlu0 %943, %v865
        %v945 = vpop.permute.xlu0 %944
        %v947 = vmul.f32 %v941, %v660
        %v948 = vmul.f32 %v945, %v661
        %v949 = vadd.f32 %v937, %v947
        %v950 = vadd.f32 %v938, %v948
        %951 = vset.pattern.permute.xlu0 3
        %952 = vperm.xlu0 %951, %v862
        %v953 = vpop.permute.xlu0 %952
        %955 = vset.pattern.permute.xlu0 3
        %956 = vperm.xlu0 %955, %v865
        %v957 = vpop.permute.xlu0 %956
        %v959 = vmul.f32 %v953, %v666
        %v960 = vmul.f32 %v957, %v667
        %v961 = vadd.f32 %v949, %v959
        %v962 = vadd.f32 %v950, %v960
        %963 = vset.pattern.permute.xlu0 4
        %964 = vperm.xlu0 %963, %v862
        %v965 = vpop.permute.xlu0 %964
        %967 = vset.pattern.permute.xlu0 4
        %968 = vperm.xlu0 %967, %v865
        %v969 = vpop.permute.xlu0 %968
        %v971 = vmul.f32 %v965, %v672
        %v972 = vmul.f32 %v969, %v673
        %v973 = vadd.f32 %v961, %v971
        %v974 = vadd.f32 %v962, %v972
        %975 = vset.pattern.permute.xlu0 5
        %976 = vperm.xlu0 %975, %v862
        %v977 = vpop.permute.xlu0 %976
        %979 = vset.pattern.permute.xlu0 5
        %980 = vperm.xlu0 %979, %v865
        %v981 = vpop.permute.xlu0 %980
        %v983 = vmul.f32 %v977, %v678
        %v984 = vmul.f32 %v981, %v679
        %v985 = vadd.f32 %v973, %v983
        %v986 = vadd.f32 %v974, %v984
        %987 = vset.pattern.permute.xlu0 6
        %988 = vperm.xlu0 %987, %v862
        %v989 = vpop.permute.xlu0 %988
        %991 = vset.pattern.permute.xlu0 6
        %992 = vperm.xlu0 %991, %v865
        %v993 = vpop.permute.xlu0 %992
        %v995 = vmul.f32 %v989, %v684
        %v996 = vmul.f32 %v993, %v685
        %v997 = vadd.f32 %v985, %v995
        %v998 = vadd.f32 %v986, %v996
        %999 = vset.pattern.permute.xlu0 7
        %1000 = vperm.xlu0 %999, %v862
        %v1001 = vpop.permute.xlu0 %1000
        %1003 = vset.pattern.permute.xlu0 7
        %1004 = vperm.xlu0 %1003, %v865
        %v1005 = vpop.permute.xlu0 %1004
        %v1007 = vmul.f32 %v1001, %v690
        %v1008 = vmul.f32 %v1005, %v691
        %v1009 = vadd.f32 %v997, %v1007
        %v1010 = vadd.f32 %v998, %v1008
        %1011 = vset.pattern.permute.xlu0 8
        %1012 = vperm.xlu0 %1011, %v862
        %v1013 = vpop.permute.xlu0 %1012
        %1015 = vset.pattern.permute.xlu0 8
        %1016 = vperm.xlu0 %1015, %v865
        %v1017 = vpop.permute.xlu0 %1016
        %v1019 = vmul.f32 %v1013, %v696
        %v1020 = vmul.f32 %v1017, %v697
        %v1021 = vadd.f32 %v1009, %v1019
        %v1022 = vadd.f32 %v1010, %v1020
        %v1023 = vadd.f32 %v1021, %v641
        %v1024 = vadd.f32 %v1022, %v641
        %vm1025 = vcmask 130048
        %v1026 = vsel %vm1025, %v1023, -inf
        %1027 = vmax.xlane.f32.xlu0 %v1026
        %v1028 = vpop.xlane.xlu0 %1027
        %v1029 = vsel %vm1025, %v1024, -inf
        %1030 = vmax.xlane.f32.xlu0 %v1029
        %v1031 = vpop.xlane.xlu0 %1030
        %v1032 = vsub.f32 %v1023, %v1028
        %v1033 = vsub.f32 %v1024, %v1031
        %v1034 = vmul.f32 %v1032, 1.442695
        %v1035 = vpow.pop %v1034
        %v1036 = vmul.f32 %v1033, 1.442695
        %v1037 = vpow.pop %v1036
        %v1038 = vsel %vm1025, %v1035, 0.0
        %1039 = vadd.xlane.f32.xlu0 %v1038
        %v1040 = vpop.xlane.xlu0 %1039
        %v1041 = vsel %vm1025, %v1037, 0.0
        %1042 = vadd.xlane.f32.xlu0 %v1041
        %v1043 = vpop.xlane.xlu0 %1042
        %v1044 = vrcp.pop %v1040
        %v1045 = vrcp.pop %v1043
        %v1046 = vmul.f32 %v1035, %v1044
        %v1047 = vmul.f32 %v1037, %v1045
        %v1048 = vpack.c.bf16 %v1047, %v1046
        %v1049 = vmul.f32 %v1046, %v648
        %v1050 = vmul.f32 %v1047, %v649
        %v1051 = vsel %vm1025, %v1049, 0.0
        %1052 = vadd.xlane.f32.xlu0 %v1051
        %v1053 = vpop.xlane.xlu0 %1052
        %v1054 = vsel %vm1025, %v1050, 0.0
        %1055 = vadd.xlane.f32.xlu0 %v1054
        %v1056 = vpop.xlane.xlu0 %1055
        %v1057 = vlaneseq
        %v1058 = vshrl.u32 %v1057, 7
        %v1059 = vsub.s32 0, %v1058
        %v1060 = vrot.slane %v702, %v1059
        %v1061 = vmul.f32 %v1053, %v1060
        %v1062 = vmul.f32 %v1056, %v1060
        %v1063 = vadd.f32 %v1061, 0.0
        %v1064 = vadd.f32 %v1062, 0.0
        %v1065 = vmul.f32 %v1046, %v654
        %v1066 = vmul.f32 %v1047, %v655
        %v1067 = vsel %vm1025, %v1065, 0.0
        %1068 = vadd.xlane.f32.xlu0 %v1067
        %v1069 = vpop.xlane.xlu0 %1068
        %v1070 = vsel %vm1025, %v1066, 0.0
        %1071 = vadd.xlane.f32.xlu0 %v1070
        %v1072 = vpop.xlane.xlu0 %1071
        %v1073 = vlaneseq
        %v1074 = vshrl.u32 %v1073, 7
        %v1075 = vsub.s32 1, %v1074
        %v1076 = vrot.slane %v702, %v1075
        %v1077 = vmul.f32 %v1069, %v1076
        %v1078 = vmul.f32 %v1072, %v1076
        %v1079 = vadd.f32 %v1063, %v1077
        %v1080 = vadd.f32 %v1064, %v1078
        %v1081 = vmul.f32 %v1046, %v660
        %v1082 = vmul.f32 %v1047, %v661
        %v1083 = vsel %vm1025, %v1081, 0.0
        %1084 = vadd.xlane.f32.xlu0 %v1083
        %v1085 = vpop.xlane.xlu0 %1084
        %v1086 = vsel %vm1025, %v1082, 0.0
        %1087 = vadd.xlane.f32.xlu0 %v1086
        %v1088 = vpop.xlane.xlu0 %1087
        %v1089 = vlaneseq
        %v1090 = vshrl.u32 %v1089, 7
        %v1091 = vsub.s32 2, %v1090
        %v1092 = vrot.slane %v702, %v1091
        %v1093 = vmul.f32 %v1085, %v1092
        %v1094 = vmul.f32 %v1088, %v1092
        %v1095 = vadd.f32 %v1079, %v1093
        %v1096 = vadd.f32 %v1080, %v1094
        %v1097 = vmul.f32 %v1046, %v666
        %v1098 = vmul.f32 %v1047, %v667
        %v1099 = vsel %vm1025, %v1097, 0.0
        %1100 = vadd.xlane.f32.xlu0 %v1099
        %v1101 = vpop.xlane.xlu0 %1100
        %v1102 = vsel %vm1025, %v1098, 0.0
        %1103 = vadd.xlane.f32.xlu0 %v1102
        %v1104 = vpop.xlane.xlu0 %1103
        %v1105 = vlaneseq
        %v1106 = vshrl.u32 %v1105, 7
        %v1107 = vsub.s32 3, %v1106
        %v1108 = vrot.slane %v702, %v1107
        %v1109 = vmul.f32 %v1101, %v1108
        %v1110 = vmul.f32 %v1104, %v1108
        %v1111 = vadd.f32 %v1095, %v1109
        %v1112 = vadd.f32 %v1096, %v1110
        %v1113 = vmul.f32 %v1046, %v672
        %v1114 = vmul.f32 %v1047, %v673
        %v1115 = vsel %vm1025, %v1113, 0.0
        %1116 = vadd.xlane.f32.xlu0 %v1115
        %v1117 = vpop.xlane.xlu0 %1116
        %v1118 = vsel %vm1025, %v1114, 0.0
        %1119 = vadd.xlane.f32.xlu0 %v1118
        %v1120 = vpop.xlane.xlu0 %1119
        %v1121 = vlaneseq
        %v1122 = vshrl.u32 %v1121, 7
        %v1123 = vsub.s32 4, %v1122
        %v1124 = vrot.slane %v702, %v1123
        %v1125 = vmul.f32 %v1117, %v1124
        %v1126 = vmul.f32 %v1120, %v1124
        %v1127 = vadd.f32 %v1111, %v1125
        %v1128 = vadd.f32 %v1112, %v1126
        %v1129 = vmul.f32 %v1046, %v678
        %v1130 = vmul.f32 %v1047, %v679
        %v1131 = vsel %vm1025, %v1129, 0.0
        %1132 = vadd.xlane.f32.xlu0 %v1131
        %v1133 = vpop.xlane.xlu0 %1132
        %v1134 = vsel %vm1025, %v1130, 0.0
        %1135 = vadd.xlane.f32.xlu0 %v1134
        %v1136 = vpop.xlane.xlu0 %1135
        %v1137 = vlaneseq
        %v1138 = vshrl.u32 %v1137, 7
        %v1139 = vsub.s32 5, %v1138
        %v1140 = vrot.slane %v702, %v1139
        %v1141 = vmul.f32 %v1133, %v1140
        %v1142 = vmul.f32 %v1136, %v1140
        %v1143 = vadd.f32 %v1127, %v1141
        %v1144 = vadd.f32 %v1128, %v1142
        %v1145 = vmul.f32 %v1046, %v684
        %v1146 = vmul.f32 %v1047, %v685
        %v1147 = vsel %vm1025, %v1145, 0.0
        %1148 = vadd.xlane.f32.xlu0 %v1147
        %v1149 = vpop.xlane.xlu0 %1148
        %v1150 = vsel %vm1025, %v1146, 0.0
        %1151 = vadd.xlane.f32.xlu0 %v1150
        %v1152 = vpop.xlane.xlu0 %1151
        %v1153 = vlaneseq
        %v1154 = vshrl.u32 %v1153, 7
        %v1155 = vsub.s32 6, %v1154
        %v1156 = vrot.slane %v702, %v1155
        %v1157 = vmul.f32 %v1149, %v1156
        %v1158 = vmul.f32 %v1152, %v1156
        %v1159 = vadd.f32 %v1143, %v1157
        %v1160 = vadd.f32 %v1144, %v1158
        %v1161 = vmul.f32 %v1046, %v690
        %v1162 = vmul.f32 %v1047, %v691
        %v1163 = vsel %vm1025, %v1161, 0.0
        %1164 = vadd.xlane.f32.xlu0 %v1163
        %v1165 = vpop.xlane.xlu0 %1164
        %v1166 = vsel %vm1025, %v1162, 0.0
        %1167 = vadd.xlane.f32.xlu0 %v1166
        %v1168 = vpop.xlane.xlu0 %1167
        %v1169 = vlaneseq
        %v1170 = vshrl.u32 %v1169, 7
        %v1171 = vsub.s32 7, %v1170
        %v1172 = vrot.slane %v702, %v1171
        %v1173 = vmul.f32 %v1165, %v1172
        %v1174 = vmul.f32 %v1168, %v1172
        %v1175 = vadd.f32 %v1159, %v1173
        %v1176 = vadd.f32 %v1160, %v1174
        %v1177 = vmul.f32 %v1046, %v696
        %v1178 = vmul.f32 %v1047, %v697
        %v1179 = vsel %vm1025, %v1177, 0.0
        %1180 = vadd.xlane.f32.xlu0 %v1179
        %v1181 = vpop.xlane.xlu0 %1180
        %v1182 = vsel %vm1025, %v1178, 0.0
        %1183 = vadd.xlane.f32.xlu0 %v1182
        %v1184 = vpop.xlane.xlu0 %1183
        %v1185 = vlaneseq
        %v1186 = vshrl.u32 %v1185, 7
        %v1187 = vsub.s32 0, %v1186
        %v1188 = vrot.slane %v703, %v1187
        %v1189 = vmul.f32 %v1181, %v1188
        %v1190 = vmul.f32 %v1184, %v1188
        %v1191 = vadd.f32 %v1175, %v1189
        %v1192 = vadd.f32 %v1176, %v1190
        %v1193 = vpack.c.bf16 %v1192, %v1191
        %v1196 = vunpack.c.l.b16 %v809
        %v1197 = vunpack.c.l.b16 %v810
        %v1198 = vpack.c.b16 %v1197, %v1196
        %vm1199 = vcmask 72704
        %v1201 = vsel %vm1199, %v1193, 0
        %vm1203 = vcmask 1043456
        %vm1204 = vcmask 1044480
        %v1205 = vsel %vm1203, 4294967295, 65535
        %v1206 = vsel %vm1204, %v1205, 0
        %v1208 = vand.u32 %v1198, %v1206
        %1210 = vmatprep.subr.bf16.mxu0 0
        %1211 = vmatpush1.bf16.msra.mxu0 0
        %1212 = vmatprep.subr.bf16.mxu0 0
        %1213 = vmatpush1.bf16.msra.mxu0 0
        %1214 = vmatprep.subr.bf16.mxu0 0
        %1215 = vmatpush1.bf16.msra.mxu0 0
        %1216 = vmatprep.subr.bf16.mxu0 0
        %1217 = vmatpush1.bf16.msra.mxu0 0
        %1218 = vmatprep.subr.bf16.mxu0 0
        %1219 = vmatpush1.bf16.msra.mxu0 0
        %1220 = vmatprep.subr.bf16.mxu0 0
        %1221 = vmatpush1.bf16.msra.mxu0 0
        %1222 = vmatprep.subr.bf16.mxu0 0
        %1223 = vmatpush1.bf16.msra.mxu0 0
        %1224 = vmatprep.subr.bf16.mxu0 0
        %1225 = vmatpush1.bf16.msra.mxu0 %v1208
        %1226 = vmatprep.subr.bf16.mxu0 0
        %1227 = vmatpush2.bf16.msra.mxu0 0
        %1228 = vmatprep.subr.bf16.mxu0 0
        %1229 = vmatpush2.bf16.msra.mxu0 0
        %1230 = vmatprep.subr.bf16.mxu0 0
        %1231 = vmatpush2.bf16.msra.mxu0 0
        %1232 = vmatprep.subr.bf16.mxu0 0
        %1233 = vmatpush2.bf16.msra.mxu0 0
        %1234 = vmatprep.subr.bf16.mxu0 0
        %1235 = vmatpush2.bf16.msra.mxu0 0
        %1236 = vmatprep.subr.bf16.mxu0 0
        %1237 = vmatpush2.bf16.msra.mxu0 0
        %1238 = vmatprep.subr.bf16.mxu0 0
        %1239 = vmatpush2.bf16.msra.mxu0 0
        %1240 = vmatprep.subr.bf16.mxu0 0
        %1241 = vmatpush2.bf16.msra.mxu0 0
        %1242 = vmatprep.mubr.bf16.mxu0 0
        %1243 = vmatmul.mubr.bf16.gmra.mxu0 %v1201
        %v1244 = vpop.f32.mrf.mxu0
        %v1245 = vadd.f32 0.0, %v1244
        %v1246 = vpop.f32.mrf.mxu0
        %v1247 = vpop.f32.mrf.mxu0
        %v1248 = vadd.f32 0.0, %v1247
        %v1249 = vpop.f32.mrf.mxu0
        %1250 = vdwg.mxu0
        %1251 = vrot.lane.b32.xlu0 %v814, 32
        %v1252 = vpop.permute.xlu0 %1251
        %v1255 = vsel %vm1025, %v1048, 0
        %1257 = vmatprep.subr.bf16.mxu0 0
        %1258 = vmatpush1.bf16.msra.mxu0 0
        %1259 = vmatprep.subr.bf16.mxu0 0
        %1260 = vmatpush1.bf16.msra.mxu0 0
        %1261 = vmatprep.subr.bf16.mxu0 0
        %1262 = vmatpush1.bf16.msra.mxu0 0
        %1263 = vmatprep.subr.bf16.mxu0 0
        %1264 = vmatpush1.bf16.msra.mxu0 0
        %1265 = vmatprep.subr.bf16.mxu0 0
        %1266 = vmatpush1.bf16.msra.mxu0 0
        %1267 = vmatprep.subr.bf16.mxu0 0
        %1268 = vmatpush1.bf16.msra.mxu0 0
        %1269 = vmatprep.subr.bf16.mxu0 0
        %1270 = vmatpush1.bf16.msra.mxu0 0
        %1271 = vmatprep.subr.bf16.mxu0 0
        %1272 = vmatpush1.bf16.msra.mxu0 %v1252
        %1273 = vmatprep.subr.bf16.mxu0 0
        %1274 = vmatpush2.bf16.msra.mxu0 0
        %1275 = vmatprep.subr.bf16.mxu0 0
        %1276 = vmatpush2.bf16.msra.mxu0 0
        %1277 = vmatprep.subr.bf16.mxu0 0
        %1278 = vmatpush2.bf16.msra.mxu0 0
        %1279 = vmatprep.subr.bf16.mxu0 0
        %1280 = vmatpush2.bf16.msra.mxu0 0
        %1281 = vmatprep.subr.bf16.mxu0 0
        %1282 = vmatpush2.bf16.msra.mxu0 0
        %1283 = vmatprep.subr.bf16.mxu0 0
        %1284 = vmatpush2.bf16.msra.mxu0 0
        %1285 = vmatprep.subr.bf16.mxu0 0
        %1286 = vmatpush2.bf16.msra.mxu0 0
        %1287 = vmatprep.subr.bf16.mxu0 0
        %1288 = vmatpush2.bf16.msra.mxu0 0
        %1289 = vmatprep.mubr.bf16.mxu0 0
        %1290 = vmatmul.mubr.bf16.gmra.mxu0 %v1255
        %v1291 = vpop.f32.mrf.mxu0
        %v1292 = vadd.f32 %v1245, %v1291
        %v1293 = vpop.f32.mrf.mxu0
        %v1294 = vpop.f32.mrf.mxu0
        %v1295 = vadd.f32 %v1248, %v1294
        %v1296 = vpop.f32.mrf.mxu0
        %1297 = vdwg.mxu0
        %1299 = vrot.lane.b32.xlu0 %v813, 104
        %v1300 = vpop.permute.xlu0 %1299
        %v1302 = vsel %vm820, %v1300, 0
        %1304 = vmatprep.subr.bf16.mxu0 0
        %1305 = vmatpush1.bf16.xpose.msra.mxu0 0
        %1306 = vmatprep.subr.bf16.mxu0 0
        %1307 = vmatpush1.bf16.xpose.msra.mxu0 0
        %1308 = vmatprep.subr.bf16.mxu0 0
        %1309 = vmatpush1.bf16.xpose.msra.mxu0 0
        %1310 = vmatprep.subr.bf16.mxu0 0
        %1311 = vmatpush1.bf16.xpose.msra.mxu0 0
        %1312 = vmatprep.subr.bf16.mxu0 0
        %1313 = vmatpush1.bf16.xpose.msra.mxu0 0
        %1314 = vmatprep.subr.bf16.mxu0 0
        %1315 = vmatpush1.bf16.xpose.msra.mxu0 0
        %1316 = vmatprep.subr.bf16.mxu0 0
        %1317 = vmatpush1.bf16.xpose.msra.mxu0 0
        %1318 = vmatprep.subr.bf16.mxu0 0
        %1319 = vmatpush1.bf16.xpose.msra.mxu0 %v825
        %1320 = vmatprep.subr.bf16.mxu0 0
        %1321 = vmatpush2.bf16.xpose.msra.mxu0 0
        %1322 = vmatprep.subr.bf16.mxu0 0
        %1323 = vmatpush2.bf16.xpose.msra.mxu0 0
        %1324 = vmatprep.subr.bf16.mxu0 0
        %1325 = vmatpush2.bf16.xpose.msra.mxu0 0
        %1326 = vmatprep.subr.bf16.mxu0 0
        %1327 = vmatpush2.bf16.xpose.msra.mxu0 0
        %1328 = vmatprep.subr.bf16.mxu0 0
        %1329 = vmatpush2.bf16.xpose.msra.mxu0 0
        %1330 = vmatprep.subr.bf16.mxu0 0
        %1331 = vmatpush2.bf16.xpose.msra.mxu0 0
        %1332 = vmatprep.subr.bf16.mxu0 0
        %1333 = vmatpush2.bf16.xpose.msra.mxu0 0
        %1334 = vmatprep.subr.bf16.mxu0 0
        %1335 = vmatpush2.bf16.xpose.msra.mxu0 0
        %1336 = vmatprep.mubr.bf16.mxu0 0
        %1337 = vmatmul.mubr.bf16.gmra.mxu0 %v1302
        %v1338 = vpop.f32.mrf.mxu0
        %v1339 = vadd.f32 0.0, %v1338
        %v1340 = vpop.f32.mrf.mxu0
        %v1341 = vpop.f32.mrf.mxu0
        %v1342 = vadd.f32 0.0, %v1341
        %v1343 = vpop.f32.mrf.mxu0
        %1344 = vdwg.mxu0
        %1346 = vset.pattern.permute.xlu0 0
        %1347 = vperm.xlu0 %1346, %v1339
        %v1348 = vpop.permute.xlu0 %1347
        %1351 = vset.pattern.permute.xlu0 0
        %1352 = vperm.xlu0 %1351, %v1342
        %v1353 = vpop.permute.xlu0 %1352
        %v1355 = vmul.f32 %v1348, %v648
        %v1356 = vmul.f32 %v1353, %v649
        %1357 = vrot.lane.b32.xlu0 %v814, 56
        %v1358 = vpop.permute.xlu0 %1357
        %v1360 = vsel %vm820, %v1358, 0
        %1362 = vmatprep.subr.bf16.mxu0 0
        %1363 = vmatpush1.bf16.xpose.msra.mxu0 0
        %1364 = vmatprep.subr.bf16.mxu0 0
        %1365 = vmatpush1.bf16.xpose.msra.mxu0 0
        %1366 = vmatprep.subr.bf16.mxu0 0
        %1367 = vmatpush1.bf16.xpose.msra.mxu0 0
        %1368 = vmatprep.subr.bf16.mxu0 0
        %1369 = vmatpush1.bf16.xpose.msra.mxu0 0
        %1370 = vmatprep.subr.bf16.mxu0 0
        %1371 = vmatpush1.bf16.xpose.msra.mxu0 0
        %1372 = vmatprep.subr.bf16.mxu0 0
        %1373 = vmatpush1.bf16.xpose.msra.mxu0 0
        %1374 = vmatprep.subr.bf16.mxu0 0
        %1375 = vmatpush1.bf16.xpose.msra.mxu0 0
        %1376 = vmatprep.subr.bf16.mxu0 0
        %1377 = vmatpush1.bf16.xpose.msra.mxu0 %v1360
        %1378 = vmatprep.subr.bf16.mxu0 0
        %1379 = vmatpush2.bf16.xpose.msra.mxu0 0
        %1380 = vmatprep.subr.bf16.mxu0 0
        %1381 = vmatpush2.bf16.xpose.msra.mxu0 0
        %1382 = vmatprep.subr.bf16.mxu0 0
        %1383 = vmatpush2.bf16.xpose.msra.mxu0 0
        %1384 = vmatprep.subr.bf16.mxu0 0
        %1385 = vmatpush2.bf16.xpose.msra.mxu0 0
        %1386 = vmatprep.subr.bf16.mxu0 0
        %1387 = vmatpush2.bf16.xpose.msra.mxu0 0
        %1388 = vmatprep.subr.bf16.mxu0 0
        %1389 = vmatpush2.bf16.xpose.msra.mxu0 0
        %1390 = vmatprep.subr.bf16.mxu0 0
        %1391 = vmatpush2.bf16.xpose.msra.mxu0 0
        %1392 = vmatprep.subr.bf16.mxu0 0
        %1393 = vmatpush2.bf16.xpose.msra.mxu0 0
        %1394 = vmatprep.mubr.bf16.mxu0 0
        %1395 = vmatmul.mubr.bf16.gmra.mxu0 %v1302
        %v1396 = vpop.f32.mrf.mxu0
        %v1397 = vadd.f32 %v1355, %v1396
        %v1398 = vpop.f32.mrf.mxu0
        %v1399 = vpop.f32.mrf.mxu0
        %v1400 = vadd.f32 %v1356, %v1399
        %v1401 = vpop.f32.mrf.mxu0
        %1402 = vdwg.mxu0
        %1403 = vset.pattern.permute.xlu0 1
        %1404 = vperm.xlu0 %1403, %v1339
        %v1405 = vpop.permute.xlu0 %1404
        %1407 = vset.pattern.permute.xlu0 1
        %1408 = vperm.xlu0 %1407, %v1342
        %v1409 = vpop.permute.xlu0 %1408
        %v1411 = vmul.f32 %v1405, %v654
        %v1412 = vmul.f32 %v1409, %v655
        %v1413 = vadd.f32 %v1397, %v1411
        %v1414 = vadd.f32 %v1400, %v1412
        %1415 = vset.pattern.permute.xlu0 2
        %1416 = vperm.xlu0 %1415, %v1339
        %v1417 = vpop.permute.xlu0 %1416
        %1419 = vset.pattern.permute.xlu0 2
        %1420 = vperm.xlu0 %1419, %v1342
        %v1421 = vpop.permute.xlu0 %1420
        %v1423 = vmul.f32 %v1417, %v660
        %v1424 = vmul.f32 %v1421, %v661
        %v1425 = vadd.f32 %v1413, %v1423
        %v1426 = vadd.f32 %v1414, %v1424
        %1427 = vset.pattern.permute.xlu0 3
        %1428 = vperm.xlu0 %1427, %v1339
        %v1429 = vpop.permute.xlu0 %1428
        %1431 = vset.pattern.permute.xlu0 3
        %1432 = vperm.xlu0 %1431, %v1342
        %v1433 = vpop.permute.xlu0 %1432
        %v1435 = vmul.f32 %v1429, %v666
        %v1436 = vmul.f32 %v1433, %v667
        %v1437 = vadd.f32 %v1425, %v1435
        %v1438 = vadd.f32 %v1426, %v1436
        %1439 = vset.pattern.permute.xlu0 4
        %1440 = vperm.xlu0 %1439, %v1339
        %v1441 = vpop.permute.xlu0 %1440
        %1443 = vset.pattern.permute.xlu0 4
        %1444 = vperm.xlu0 %1443, %v1342
        %v1445 = vpop.permute.xlu0 %1444
        %v1447 = vmul.f32 %v1441, %v672
        %v1448 = vmul.f32 %v1445, %v673
        %v1449 = vadd.f32 %v1437, %v1447
        %v1450 = vadd.f32 %v1438, %v1448
        %1451 = vset.pattern.permute.xlu0 5
        %1452 = vperm.xlu0 %1451, %v1339
        %v1453 = vpop.permute.xlu0 %1452
        %1455 = vset.pattern.permute.xlu0 5
        %1456 = vperm.xlu0 %1455, %v1342
        %v1457 = vpop.permute.xlu0 %1456
        %v1459 = vmul.f32 %v1453, %v678
        %v1460 = vmul.f32 %v1457, %v679
        %v1461 = vadd.f32 %v1449, %v1459
        %v1462 = vadd.f32 %v1450, %v1460
        %1463 = vset.pattern.permute.xlu0 6
        %1464 = vperm.xlu0 %1463, %v1339
        %v1465 = vpop.permute.xlu0 %1464
        %1467 = vset.pattern.permute.xlu0 6
        %1468 = vperm.xlu0 %1467, %v1342
        %v1469 = vpop.permute.xlu0 %1468
        %v1471 = vmul.f32 %v1465, %v684
        %v1472 = vmul.f32 %v1469, %v685
        %v1473 = vadd.f32 %v1461, %v1471
        %v1474 = vadd.f32 %v1462, %v1472
        %1475 = vset.pattern.permute.xlu0 7
        %1476 = vperm.xlu0 %1475, %v1339
        %v1477 = vpop.permute.xlu0 %1476
        %1479 = vset.pattern.permute.xlu0 7
        %1480 = vperm.xlu0 %1479, %v1342
        %v1481 = vpop.permute.xlu0 %1480
        %v1483 = vmul.f32 %v1477, %v690
        %v1484 = vmul.f32 %v1481, %v691
        %v1485 = vadd.f32 %v1473, %v1483
        %v1486 = vadd.f32 %v1474, %v1484
        %1487 = vset.pattern.permute.xlu0 8
        %1488 = vperm.xlu0 %1487, %v1339
        %v1489 = vpop.permute.xlu0 %1488
        %1491 = vset.pattern.permute.xlu0 8
        %1492 = vperm.xlu0 %1491, %v1342
        %v1493 = vpop.permute.xlu0 %1492
        %v1495 = vmul.f32 %v1489, %v696
        %v1496 = vmul.f32 %v1493, %v697
        %v1497 = vadd.f32 %v1485, %v1495
        %v1498 = vadd.f32 %v1486, %v1496
        %v1499 = vadd.f32 %v1497, %v641
        %v1500 = vadd.f32 %v1498, %v641
        %v1501 = vsel %vm1025, %v1499, -inf
        %1502 = vmax.xlane.f32.xlu0 %v1501
        %v1503 = vpop.xlane.xlu0 %1502
        %v1504 = vsel %vm1025, %v1500, -inf
        %1505 = vmax.xlane.f32.xlu0 %v1504
        %v1506 = vpop.xlane.xlu0 %1505
        %v1507 = vsub.f32 %v1499, %v1503
        %v1508 = vsub.f32 %v1500, %v1506
        %v1509 = vmul.f32 %v1507, 1.442695
        %v1510 = vpow.pop %v1509
        %v1511 = vmul.f32 %v1508, 1.442695
        %v1512 = vpow.pop %v1511
        %v1513 = vsel %vm1025, %v1510, 0.0
        %1514 = vadd.xlane.f32.xlu0 %v1513
        %v1515 = vpop.xlane.xlu0 %1514
        %v1516 = vsel %vm1025, %v1512, 0.0
        %1517 = vadd.xlane.f32.xlu0 %v1516
        %v1518 = vpop.xlane.xlu0 %1517
        %v1519 = vrcp.pop %v1515
        %v1520 = vrcp.pop %v1518
        %v1521 = vmul.f32 %v1510, %v1519
        %v1522 = vmul.f32 %v1512, %v1520
        %v1523 = vpack.c.bf16 %v1522, %v1521
        %v1524 = vpack.c.bf16 %v805, %v801
        %v1525 = vmul.f32 %v1521, %v648
        %v1526 = vmul.f32 %v1522, %v649
        %v1527 = vsel %vm1025, %v1525, 0.0
        %1528 = vadd.xlane.f32.xlu0 %v1527
        %v1529 = vpop.xlane.xlu0 %1528
        %v1530 = vsel %vm1025, %v1526, 0.0
        %1531 = vadd.xlane.f32.xlu0 %v1530
        %v1532 = vpop.xlane.xlu0 %1531
        %v1533 = vmul.f32 %v1529, %v1060
        %v1534 = vmul.f32 %v1532, %v1060
        %v1535 = vadd.f32 %v1533, 0.0
        %v1536 = vadd.f32 %v1534, 0.0
        %v1537 = vmul.f32 %v1521, %v654
        %v1538 = vmul.f32 %v1522, %v655
        %v1539 = vsel %vm1025, %v1537, 0.0
        %1540 = vadd.xlane.f32.xlu0 %v1539
        %v1541 = vpop.xlane.xlu0 %1540
        %v1542 = vsel %vm1025, %v1538, 0.0
        %1543 = vadd.xlane.f32.xlu0 %v1542
        %v1544 = vpop.xlane.xlu0 %1543
        %v1545 = vmul.f32 %v1541, %v1076
        %v1546 = vmul.f32 %v1544, %v1076
        %v1547 = vadd.f32 %v1535, %v1545
        %v1548 = vadd.f32 %v1536, %v1546
        %v1549 = vmul.f32 %v1521, %v660
        %v1550 = vmul.f32 %v1522, %v661
        %v1551 = vsel %vm1025, %v1549, 0.0
        %1552 = vadd.xlane.f32.xlu0 %v1551
        %v1553 = vpop.xlane.xlu0 %1552
        %v1554 = vsel %vm1025, %v1550, 0.0
        %1555 = vadd.xlane.f32.xlu0 %v1554
        %v1556 = vpop.xlane.xlu0 %1555
        %v1557 = vmul.f32 %v1553, %v1092
        %v1558 = vmul.f32 %v1556, %v1092
        %v1559 = vadd.f32 %v1547, %v1557
        %v1560 = vadd.f32 %v1548, %v1558
        %v1561 = vmul.f32 %v1521, %v666
        %v1562 = vmul.f32 %v1522, %v667
        %v1563 = vsel %vm1025, %v1561, 0.0
        %1564 = vadd.xlane.f32.xlu0 %v1563
        %v1565 = vpop.xlane.xlu0 %1564
        %v1566 = vsel %vm1025, %v1562, 0.0
        %1567 = vadd.xlane.f32.xlu0 %v1566
        %v1568 = vpop.xlane.xlu0 %1567
        %v1569 = vmul.f32 %v1565, %v1108
        %v1570 = vmul.f32 %v1568, %v1108
        %v1571 = vadd.f32 %v1559, %v1569
        %v1572 = vadd.f32 %v1560, %v1570
        %v1573 = vmul.f32 %v1521, %v672
        %v1574 = vmul.f32 %v1522, %v673
        %v1575 = vsel %vm1025, %v1573, 0.0
        %1576 = vadd.xlane.f32.xlu0 %v1575
        %v1577 = vpop.xlane.xlu0 %1576
        %v1578 = vsel %vm1025, %v1574, 0.0
        %1579 = vadd.xlane.f32.xlu0 %v1578
        %v1580 = vpop.xlane.xlu0 %1579
        %v1581 = vmul.f32 %v1577, %v1124
        %v1582 = vmul.f32 %v1580, %v1124
        %v1583 = vadd.f32 %v1571, %v1581
        %v1584 = vadd.f32 %v1572, %v1582
        %v1585 = vmul.f32 %v1521, %v678
        %v1586 = vmul.f32 %v1522, %v679
        %v1587 = vsel %vm1025, %v1585, 0.0
        %1588 = vadd.xlane.f32.xlu0 %v1587
        %v1589 = vpop.xlane.xlu0 %1588
        %v1590 = vsel %vm1025, %v1586, 0.0
        %1591 = vadd.xlane.f32.xlu0 %v1590
        %v1592 = vpop.xlane.xlu0 %1591
        %v1593 = vmul.f32 %v1589, %v1140
        %v1594 = vmul.f32 %v1592, %v1140
        %v1595 = vadd.f32 %v1583, %v1593
        %v1596 = vadd.f32 %v1584, %v1594
        %v1597 = vmul.f32 %v1521, %v684
        %v1598 = vmul.f32 %v1522, %v685
        %v1599 = vsel %vm1025, %v1597, 0.0
        %1600 = vadd.xlane.f32.xlu0 %v1599
        %v1601 = vpop.xlane.xlu0 %1600
        %v1602 = vsel %vm1025, %v1598, 0.0
        %1603 = vadd.xlane.f32.xlu0 %v1602
        %v1604 = vpop.xlane.xlu0 %1603
        %v1605 = vmul.f32 %v1601, %v1156
        %v1606 = vmul.f32 %v1604, %v1156
        %v1607 = vadd.f32 %v1595, %v1605
        %v1608 = vadd.f32 %v1596, %v1606
        %v1609 = vmul.f32 %v1521, %v690
        %v1610 = vmul.f32 %v1522, %v691
        %v1611 = vsel %vm1025, %v1609, 0.0
        %1612 = vadd.xlane.f32.xlu0 %v1611
        %v1613 = vpop.xlane.xlu0 %1612
        %v1614 = vsel %vm1025, %v1610, 0.0
        %1615 = vadd.xlane.f32.xlu0 %v1614
        %v1616 = vpop.xlane.xlu0 %1615
        %v1617 = vmul.f32 %v1613, %v1172
        %v1618 = vmul.f32 %v1616, %v1172
        %v1619 = vadd.f32 %v1607, %v1617
        %v1620 = vadd.f32 %v1608, %v1618
        %v1621 = vmul.f32 %v1521, %v696
        %v1622 = vmul.f32 %v1522, %v697
        %v1623 = vsel %vm1025, %v1621, 0.0
        %1624 = vadd.xlane.f32.xlu0 %v1623
        %v1625 = vpop.xlane.xlu0 %1624
        %v1626 = vsel %vm1025, %v1622, 0.0
        %1627 = vadd.xlane.f32.xlu0 %v1626
        %v1628 = vpop.xlane.xlu0 %1627
        %v1629 = vmul.f32 %v1625, %v1188
        %v1630 = vmul.f32 %v1628, %v1188
        %v1631 = vadd.f32 %v1619, %v1629
        %v1632 = vadd.f32 %v1620, %v1630
        %v1633 = vpack.c.bf16 %v1632, %v1631
        %v1635 = vsel %vm1199, %v1633, 0
        %1637 = vmatprep.subr.bf16.mxu0 0
        %1638 = vmatpush1.bf16.msra.mxu0 0
        %1639 = vmatprep.subr.bf16.mxu0 0
        %1640 = vmatpush1.bf16.msra.mxu0 0
        %1641 = vmatprep.subr.bf16.mxu0 0
        %1642 = vmatpush1.bf16.msra.mxu0 0
        %1643 = vmatprep.subr.bf16.mxu0 0
        %1644 = vmatpush1.bf16.msra.mxu0 0
        %1645 = vmatprep.subr.bf16.mxu0 0
        %1646 = vmatpush1.bf16.msra.mxu0 0
        %1647 = vmatprep.subr.bf16.mxu0 0
        %1648 = vmatpush1.bf16.msra.mxu0 0
        %1649 = vmatprep.subr.bf16.mxu0 0
        %1650 = vmatpush1.bf16.msra.mxu0 0
        %1651 = vmatprep.subr.bf16.mxu0 0
        %1652 = vmatpush1.bf16.msra.mxu0 %v1208
        %1653 = vmatprep.subr.bf16.mxu0 0
        %1654 = vmatpush2.bf16.msra.mxu0 0
        %1655 = vmatprep.subr.bf16.mxu0 0
        %1656 = vmatpush2.bf16.msra.mxu0 0
        %1657 = vmatprep.subr.bf16.mxu0 0
        %1658 = vmatpush2.bf16.msra.mxu0 0
        %1659 = vmatprep.subr.bf16.mxu0 0
        %1660 = vmatpush2.bf16.msra.mxu0 0
        %1661 = vmatprep.subr.bf16.mxu0 0
        %1662 = vmatpush2.bf16.msra.mxu0 0
        %1663 = vmatprep.subr.bf16.mxu0 0
        %1664 = vmatpush2.bf16.msra.mxu0 0
        %1665 = vmatprep.subr.bf16.mxu0 0
        %1666 = vmatpush2.bf16.msra.mxu0 0
        %1667 = vmatprep.subr.bf16.mxu0 0
        %1668 = vmatpush2.bf16.msra.mxu0 0
        %1669 = vmatprep.mubr.bf16.mxu0 0
        %1670 = vmatmul.mubr.bf16.gmra.mxu0 %v1635
        %v1671 = vpop.f32.mrf.mxu0
        %v1672 = vadd.f32 0.0, %v1671
        %v1673 = vpop.f32.mrf.mxu0
        %v1674 = vpop.f32.mrf.mxu0
        %v1675 = vadd.f32 0.0, %v1674
        %v1676 = vpop.f32.mrf.mxu0
        %1677 = vdwg.mxu0
        %1679 = vrot.lane.b32.xlu0 %v814, 8
        %v1680 = vpop.permute.xlu0 %1679
        %1681 = vrot.lane.b32.xlu0 %v1524, 8
        %v1682 = vpop.permute.xlu0 %1681
        %vm1683 = vcmask 64512
        %v1684 = vsel %vm1683, %v1680, %v1682
        %v1687 = vsel %vm1025, %v1523, 0
        %1689 = vmatprep.subr.bf16.mxu0 0
        %1690 = vmatpush1.bf16.msra.mxu0 0
        %1691 = vmatprep.subr.bf16.mxu0 0
        %1692 = vmatpush1.bf16.msra.mxu0 0
        %1693 = vmatprep.subr.bf16.mxu0 0
        %1694 = vmatpush1.bf16.msra.mxu0 0
        %1695 = vmatprep.subr.bf16.mxu0 0
        %1696 = vmatpush1.bf16.msra.mxu0 0
        %1697 = vmatprep.subr.bf16.mxu0 0
        %1698 = vmatpush1.bf16.msra.mxu0 0
        %1699 = vmatprep.subr.bf16.mxu0 0
        %1700 = vmatpush1.bf16.msra.mxu0 0
        %1701 = vmatprep.subr.bf16.mxu0 0
        %1702 = vmatpush1.bf16.msra.mxu0 0
        %1703 = vmatprep.subr.bf16.mxu0 0
        %1704 = vmatpush1.bf16.msra.mxu0 %v1684
        %1705 = vmatprep.subr.bf16.mxu0 0
        %1706 = vmatpush2.bf16.msra.mxu0 0
        %1707 = vmatprep.subr.bf16.mxu0 0
        %1708 = vmatpush2.bf16.msra.mxu0 0
        %1709 = vmatprep.subr.bf16.mxu0 0
        %1710 = vmatpush2.bf16.msra.mxu0 0
        %1711 = vmatprep.subr.bf16.mxu0 0
        %1712 = vmatpush2.bf16.msra.mxu0 0
        %1713 = vmatprep.subr.bf16.mxu0 0
        %1714 = vmatpush2.bf16.msra.mxu0 0
        %1715 = vmatprep.subr.bf16.mxu0 0
        %1716 = vmatpush2.bf16.msra.mxu0 0
        %1717 = vmatprep.subr.bf16.mxu0 0
        %1718 = vmatpush2.bf16.msra.mxu0 0
        %1719 = vmatprep.subr.bf16.mxu0 0
        %1720 = vmatpush2.bf16.msra.mxu0 0
        %1721 = vmatprep.mubr.bf16.mxu0 0
        %1722 = vmatmul.mubr.bf16.gmra.mxu0 %v1687
        %v1723 = vpop.f32.mrf.mxu0
        %v1724 = vadd.f32 %v1672, %v1723
        %v1725 = vpop.f32.mrf.mxu0
        %v1726 = vpop.f32.mrf.mxu0
        %v1727 = vadd.f32 %v1675, %v1726
        %v1728 = vpop.f32.mrf.mxu0
        %1729 = vdwg.mxu0
        %1732 = vrot.lane.b32.xlu0 %v1724, 24
        %v1733 = vpop.permute.xlu0 %1732
        %1734 = vrot.lane.b32.xlu0 %v1727, 24
        %v1735 = vpop.permute.xlu0 %1734
        %v1738 = vsel %vm820, %v1292, %v1733
        %v1739 = vsel %vm820, %v1295, %v1735
        %v1740 = vld [vmem:[%s4] sm:$0xf]
        %v1741 = vld [vmem:[%s4 + $0x4] sm:$0xf]
        %v1742 = vld [vmem:[%s4 + $0x8] sm:$0xf]
        %v1743 = vld [vmem:[%s4 + $0xc] sm:$0xf]
        %v1744 = vld [vmem:[%s4 + $0x10] sm:$0xf]
        %v1745 = vld [vmem:[%s4 + $0x14] sm:$0xf]
        %v1746 = vpack.c.bf16 %v1739, %v1738
        %v1747 = vld [vmem:[%s5] sm:$0x1]
        %v1749 = vlaneseq
        %v1750 = vshrl.u32 %v1749, 7
        %v1751 = vsub.s32 0, %v1750
        %v1752 = vrot.slane %v1747, %v1751
        %v1760 = vunpack.c.l.b16 %v1740
        %v1761 = vunpack.c.l.b16 %v1741
        %v1762 = vunpack.c.l.b16 %v1742
        %v1763 = vunpack.c.l.b16 %v1743
        %v1764 = vunpack.c.l.b16 %v1744
        %v1765 = vunpack.c.l.b16 %v1745
        %v1766 = vpack.c.b16 %v1761, %v1760
        %v1767 = vpack.c.b16 %v1763, %v1762
        %v1768 = vpack.c.b16 %v1765, %v1764
        %v1773 = vsel %vm760, %v1746, 0
        %1775 = vmatprep.subr.bf16.mxu0 0
        %1776 = vmatpush1.bf16.msra.mxu0 0
        %1777 = vmatprep.subr.bf16.mxu0 0
        %1778 = vmatpush1.bf16.msra.mxu0 0
        %1779 = vmatprep.subr.bf16.mxu0 0
        %1780 = vmatpush1.bf16.msra.mxu0 0
        %1781 = vmatprep.subr.bf16.mxu0 0
        %1782 = vmatpush1.bf16.msra.mxu0 0
        %1783 = vmatprep.subr.bf16.mxu0 0
        %1784 = vmatpush1.bf16.msra.mxu0 0
        %1785 = vmatprep.subr.bf16.mxu0 0
        %1786 = vmatpush1.bf16.msra.mxu0 %v1768
        %1787 = vmatprep.subr.bf16.mxu0 0
        %1788 = vmatpush1.bf16.msra.mxu0 %v1767
        %1789 = vmatprep.subr.bf16.mxu0 0
        %1790 = vmatpush1.bf16.msra.mxu0 %v1766
        %1791 = vmatprep.subr.bf16.mxu0 0
        %1792 = vmatpush2.bf16.msra.mxu0 0
        %1793 = vmatprep.subr.bf16.mxu0 0
        %1794 = vmatpush2.bf16.msra.mxu0 0
        %1795 = vmatprep.subr.bf16.mxu0 0
        %1796 = vmatpush2.bf16.msra.mxu0 0
        %1797 = vmatprep.subr.bf16.mxu0 0
        %1798 = vmatpush2.bf16.msra.mxu0 0
        %1799 = vmatprep.subr.bf16.mxu0 0
        %1800 = vmatpush2.bf16.msra.mxu0 0
        %1801 = vmatprep.subr.bf16.mxu0 0
        %1802 = vmatpush2.bf16.msra.mxu0 0
        %1803 = vmatprep.subr.bf16.mxu0 0
        %1804 = vmatpush2.bf16.msra.mxu0 0
        %1805 = vmatprep.subr.bf16.mxu0 0
        %1806 = vmatpush2.bf16.msra.mxu0 0
        %1807 = vmatprep.mubr.bf16.mxu0 0
        %1808 = vmatmul.mubr.bf16.gmra.mxu0 %v1773
        %v1809 = vpop.f32.mrf.mxu0
        %v1810 = vadd.f32 %v1752, %v1809
        %v1811 = vpop.f32.mrf.mxu0
        %v1812 = vpop.f32.mrf.mxu0
        %v1813 = vadd.f32 %v1752, %v1812
        %v1814 = vpop.f32.mrf.mxu0
        %1815 = vdwg.mxu0
        %v1816 = vadd.f32 %v709, %v1810
        %v1817 = vadd.f32 %v710, %v1813
        %v1818 = vld [vmem:[%s8] sm:$0x1]
        %v1819 = vld [vmem:[%s9] sm:$0x1]
        %v1820 = vsel %vm760, %v1816, 0.0
        %1821 = vadd.xlane.f32.xlu0 %v1820
        %v1822 = vpop.xlane.xlu0 %1821
        %v1823 = vsel %vm760, %v1817, 0.0
        %1824 = vadd.xlane.f32.xlu0 %v1823
        %v1825 = vpop.xlane.xlu0 %1824
        %v1826 = vrcp.pop 48.0
        %v1827 = vmul.f32 %v1822, %v1826
        %v1828 = vmul.f32 %v1825, %v1826
        %v1829 = vsub.f32 %v1816, %v1827
        %v1830 = vsub.f32 %v1817, %v1828
        %v1831 = vmul.f32 %v1829, %v1829
        %v1832 = vmul.f32 %v1830, %v1830
        %v1833 = vsel %vm760, %v1831, 0.0
        %1834 = vadd.xlane.f32.xlu0 %v1833
        %v1835 = vpop.xlane.xlu0 %1834
        %v1836 = vsel %vm760, %v1832, 0.0
        %1837 = vadd.xlane.f32.xlu0 %v1836
        %v1838 = vpop.xlane.xlu0 %1837
        %v1839 = vmul.f32 %v1835, %v1826
        %v1840 = vmul.f32 %v1838, %v1826
        %v1841 = vadd.f32 %v1839, 1e-05
        %v1842 = vadd.f32 %v1840, 1e-05
        %v1843 = vrsqrt.pop %v1841
        %v1844 = vrsqrt.pop %v1842
        %v1845 = vmul.f32 %v1829, %v1843
        %v1846 = vmul.f32 %v1830, %v1844
        %v1848 = vlaneseq
        %v1849 = vshrl.u32 %v1848, 7
        %v1850 = vsub.s32 0, %v1849
        %v1851 = vrot.slane %v1818, %v1850
        %v1853 = vmul.f32 %v1845, %v1851
        %v1854 = vmul.f32 %v1846, %v1851
        %v1856 = vlaneseq
        %v1857 = vshrl.u32 %v1856, 7
        %v1858 = vsub.s32 0, %v1857
        %v1859 = vrot.slane %v1819, %v1858
        %v1861 = vadd.f32 %v1853, %v1859
        %v1862 = vadd.f32 %v1854, %v1859
        %v1863 = vmul.f32 %v1861, %v636
        %v1864 = vmul.f32 %v1862, %v637
        %v1865 = vld [vmem:[%s10] sm:$0xf]
        %v1866 = vld [vmem:[%s10 + $0x4] sm:$0xf]
        %v1867 = vld [vmem:[%s10 + $0x8] sm:$0xf]
        %v1868 = vld [vmem:[%s10 + $0xc] sm:$0xf]
        %v1869 = vld [vmem:[%s10 + $0x10] sm:$0xf]
        %v1870 = vld [vmem:[%s10 + $0x14] sm:$0xf]
        %v1871 = vld [vmem:[%s10 + $0x18] sm:$0xf]
        %v1872 = vld [vmem:[%s10 + $0x1c] sm:$0xf]
        %v1873 = vld [vmem:[%s10 + $0x20] sm:$0xf]
        %v1874 = vld [vmem:[%s10 + $0x24] sm:$0xf]
        %v1875 = vld [vmem:[%s10 + $0x28] sm:$0xf]
        %v1876 = vld [vmem:[%s10 + $0x2c] sm:$0xf]
        %v1877 = vld [vmem:[%s10 + $0x30] sm:$0xf]
        %v1878 = vld [vmem:[%s10 + $0x34] sm:$0xf]
        %v1879 = vld [vmem:[%s10 + $0x38] sm:$0xf]
        %v1880 = vld [vmem:[%s10 + $0x3c] sm:$0xf]
        %v1881 = vld [vmem:[%s10 + $0x40] sm:$0xf]
        %v1882 = vld [vmem:[%s10 + $0x44] sm:$0xf]
        %v1883 = vld [vmem:[%s11] sm:$0x1]
        %1884 = vst.msk [vmem:[#allocation2 + $0x1] sm:$0xff] %vm760, %v1863
        %1885 = vst.msk [vmem:[#allocation2 + $0x9] sm:$0xff] %vm760, %v1864
        %v1886 = vld [vmem:[#allocation2] sm:$0xff]
        %v1887 = vld [vmem:[#allocation2 + $0x8] sm:$0xff]
        %v1888 = vld [vmem:[#allocation2 + $0x1] sm:$0xff]
        %v1889 = vld [vmem:[#allocation2 + $0x9] sm:$0xff]
        %v1890 = vld [vmem:[#allocation2 + $0x2] sm:$0xff]
        %v1891 = vld [vmem:[#allocation2 + $0xa] sm:$0xff]
        %1894 = vrot.lane.b32.xlu0 %v1888, 48
        %v1895 = vpop.permute.xlu0 %1894
        %1896 = vrot.lane.b32.xlu0 %v1889, 48
        %v1897 = vpop.permute.xlu0 %1896
        %1902 = vrot.lane.b32.xlu0 %v1890, 96
        %v1903 = vpop.permute.xlu0 %1902
        %1904 = vrot.lane.b32.xlu0 %v1891, 96
        %v1905 = vpop.permute.xlu0 %1904
        %v1908 = vsel %vm760, %v1886, %v1895
        %v1909 = vsel %vm760, %v1887, %v1897
        %vm1910 = vcmask 785408
        %v1911 = vsel %vm1910, %v1908, %v1903
        %v1912 = vsel %vm1910, %v1909, %v1905
        %v1913 = vpack.c.bf16 %v1912, %v1911
        %v1914 = vpack.c.bf16 %v1905, %v1903
        %v1916 = vlaneseq
        %v1917 = vshrl.u32 %v1916, 7
        %v1918 = vsub.s32 0, %v1917
        %v1919 = vrot.slane %v1883, %v1918
        %v1939 = vunpack.c.l.b16 %v1865
        %v1940 = vunpack.c.l.b16 %v1866
        %v1941 = vunpack.c.l.b16 %v1867
        %v1942 = vunpack.c.l.b16 %v1868
        %v1943 = vunpack.c.l.b16 %v1869
        %v1944 = vunpack.c.l.b16 %v1870
        %v1945 = vunpack.c.l.b16 %v1871
        %v1946 = vunpack.c.l.b16 %v1872
        %v1947 = vunpack.c.l.b16 %v1873
        %v1948 = vunpack.c.l.b16 %v1874
        %v1949 = vunpack.c.l.b16 %v1875
        %v1950 = vunpack.c.l.b16 %v1876
        %v1951 = vunpack.c.l.b16 %v1877
        %v1952 = vunpack.c.l.b16 %v1878
        %v1953 = vunpack.c.l.b16 %v1879
        %v1954 = vunpack.c.l.b16 %v1880
        %v1955 = vunpack.c.l.b16 %v1881
        %v1956 = vunpack.c.l.b16 %v1882
        %v1957 = vpack.c.b16 %v1940, %v1939
        %v1958 = vpack.c.b16 %v1942, %v1941
        %v1959 = vpack.c.b16 %v1944, %v1943
        %v1960 = vpack.c.b16 %v1946, %v1945
        %v1961 = vpack.c.b16 %v1948, %v1947
        %v1962 = vpack.c.b16 %v1950, %v1949
        %v1963 = vpack.c.b16 %v1952, %v1951
        %v1964 = vpack.c.b16 %v1954, %v1953
        %v1965 = vpack.c.b16 %v1956, %v1955
        %v1976 = vsel %vm1025, %v1914, 0
        %1978 = vmatprep.subr.bf16.mxu0 0
        %1979 = vmatpush1.bf16.msra.mxu0 %v1964
        %1980 = vmatprep.subr.bf16.mxu0 0
        %1981 = vmatpush1.bf16.msra.mxu0 %v1963
        %1982 = vmatprep.subr.bf16.mxu0 0
        %1983 = vmatpush1.bf16.msra.mxu0 %v1962
        %1984 = vmatprep.subr.bf16.mxu0 0
        %1985 = vmatpush1.bf16.msra.mxu0 %v1961
        %1986 = vmatprep.subr.bf16.mxu0 0
        %1987 = vmatpush1.bf16.msra.mxu0 %v1960
        %1988 = vmatprep.subr.bf16.mxu0 0
        %1989 = vmatpush1.bf16.msra.mxu0 %v1959
        %1990 = vmatprep.subr.bf16.mxu0 0
        %1991 = vmatpush1.bf16.msra.mxu0 %v1958
        %1992 = vmatprep.subr.bf16.mxu0 0
        %1993 = vmatpush1.bf16.msra.mxu0 %v1957
        %1994 = vmatprep.subr.bf16.mxu0 0
        %1995 = vmatpush2.bf16.msra.mxu0 0
        %1996 = vmatprep.subr.bf16.mxu0 0
        %1997 = vmatpush2.bf16.msra.mxu0 0
        %1998 = vmatprep.subr.bf16.mxu0 0
        %1999 = vmatpush2.bf16.msra.mxu0 0
        %2000 = vmatprep.subr.bf16.mxu0 0
        %2001 = vmatpush2.bf16.msra.mxu0 0
        %2002 = vmatprep.subr.bf16.mxu0 0
        %2003 = vmatpush2.bf16.msra.mxu0 0
        %2004 = vmatprep.subr.bf16.mxu0 0
        %2005 = vmatpush2.bf16.msra.mxu0 0
        %2006 = vmatprep.subr.bf16.mxu0 0
        %2007 = vmatpush2.bf16.msra.mxu0 0
        %2008 = vmatprep.subr.bf16.mxu0 0
        %2009 = vmatpush2.bf16.msra.mxu0 %v1965
        %2010 = vmatprep.mubr.bf16.mxu0 %v1976
        %2011 = vmatmul.mubr.bf16.gmra.mxu0 %v1913
        %v2012 = vpop.f32.mrf.mxu0
        %v2013 = vadd.f32 %v1919, %v2012
        %v2014 = vpop.f32.mrf.mxu0
        %v2015 = vpop.f32.mrf.mxu0
        %v2016 = vadd.f32 %v1919, %v2015
        %v2017 = vpop.f32.mrf.mxu0
        %2018 = vdwg.mxu0
        %v2019 = vmax.f32 %v2013, 0.0
        %v2020 = vmax.f32 %v2016, 0.0
        %v2021 = vmul.f32 %v2019, %v636
        %v2022 = vmul.f32 %v2020, %v637
        %v2023 = vld [vmem:[%s12] sm:$0xf]
        %v2024 = vld [vmem:[%s12 + $0x4] sm:$0xf]
        %v2025 = vld [vmem:[%s12 + $0x8] sm:$0xf]
        %v2026 = vld [vmem:[%s12 + $0xc] sm:$0xf]
        %v2027 = vld [vmem:[%s12 + $0x10] sm:$0xf]
        %v2028 = vld [vmem:[%s12 + $0x14] sm:$0xf]
        %v2029 = vld [vmem:[%s12 + $0x18] sm:$0xf]
        %v2030 = vld [vmem:[%s12 + $0x1c] sm:$0xf]
        %v2031 = vld [vmem:[%s12 + $0x20] sm:$0xf]
        %v2032 = vld [vmem:[%s12 + $0x24] sm:$0xf]
        %v2033 = vld [vmem:[%s12 + $0x28] sm:$0xf]
        %v2034 = vld [vmem:[%s12 + $0x2c] sm:$0xf]
        %v2035 = vld [vmem:[%s12 + $0x30] sm:$0xf]
        %v2036 = vld [vmem:[%s12 + $0x34] sm:$0xf]
        %v2037 = vld [vmem:[%s12 + $0x38] sm:$0xf]
        %v2038 = vld [vmem:[%s12 + $0x3c] sm:$0xf]
        %v2039 = vld [vmem:[%s12 + $0x40] sm:$0xf]
        %v2040 = vld [vmem:[%s12 + $0x44] sm:$0xf]
        %v2041 = vld [vmem:[%s12 + $0x48] sm:$0xf]
        %v2042 = vld [vmem:[%s12 + $0x4c] sm:$0xf]
        %v2043 = vld [vmem:[%s12 + $0x50] sm:$0xf]
        %v2044 = vld [vmem:[%s12 + $0x54] sm:$0xf]
        %v2045 = vld [vmem:[%s12 + $0x58] sm:$0xf]
        %v2046 = vld [vmem:[%s12 + $0x5c] sm:$0xf]
        %v2047 = vld [vmem:[%s13] sm:$0x1]
        %vm2048 = vcmask 523264
        %2049 = vst.msk [vmem:[#allocation2 + $0x1] sm:$0xff] %vm2048, %v2021
        %2050 = vst.msk [vmem:[#allocation2 + $0x9] sm:$0xff] %vm2048, %v2022
        %v2051 = vld [vmem:[#allocation2] sm:$0xff]
        %v2052 = vld [vmem:[#allocation2 + $0x8] sm:$0xff]
        %v2053 = vld [vmem:[#allocation2 + $0x1] sm:$0xff]
        %v2054 = vld [vmem:[#allocation2 + $0x9] sm:$0xff]
        %v2055 = vld [vmem:[#allocation2 + $0x2] sm:$0xff]
        %v2056 = vld [vmem:[#allocation2 + $0xa] sm:$0xff]
        %2059 = vrot.lane.b32.xlu0 %v2053, 64
        %v2060 = vpop.permute.xlu0 %2059
        %2061 = vrot.lane.b32.xlu0 %v2054, 64
        %v2062 = vpop.permute.xlu0 %2061
        %v2065 = vsel %vm2048, %v2051, %v2060
        %v2066 = vsel %vm2048, %v2052, %v2062
        %v2067 = vpack.c.bf16 %v2066, %v2065
        %v2068 = vpack.c.bf16 %v2056, %v2055
        %v2070 = vlaneseq
        %v2071 = vshrl.u32 %v2070, 7
        %v2072 = vsub.s32 0, %v2071
        %v2073 = vrot.slane %v2047, %v2072
        %v2099 = vunpack.c.l.b16 %v2023
        %v2100 = vunpack.c.l.b16 %v2024
        %v2101 = vunpack.c.l.b16 %v2025
        %v2102 = vunpack.c.l.b16 %v2026
        %v2103 = vunpack.c.l.b16 %v2027
        %v2104 = vunpack.c.l.b16 %v2028
        %v2105 = vunpack.c.l.b16 %v2029
        %v2106 = vunpack.c.l.b16 %v2030
        %v2107 = vunpack.c.l.b16 %v2031
        %v2108 = vunpack.c.l.b16 %v2032
        %v2109 = vunpack.c.l.b16 %v2033
        %v2110 = vunpack.c.l.b16 %v2034
        %v2111 = vunpack.c.l.b16 %v2035
        %v2112 = vunpack.c.l.b16 %v2036
        %v2113 = vunpack.c.l.b16 %v2037
        %v2114 = vunpack.c.l.b16 %v2038
        %v2115 = vunpack.c.l.b16 %v2039
        %v2116 = vunpack.c.l.b16 %v2040
        %v2117 = vunpack.c.l.b16 %v2041
        %v2118 = vunpack.c.l.b16 %v2042
        %v2119 = vunpack.c.l.b16 %v2043
        %v2120 = vunpack.c.l.b16 %v2044
        %v2121 = vunpack.c.l.b16 %v2045
        %v2122 = vunpack.c.l.b16 %v2046
        %v2123 = vpack.c.b16 %v2100, %v2099
        %v2124 = vpack.c.b16 %v2102, %v2101
        %v2125 = vpack.c.b16 %v2104, %v2103
        %v2126 = vpack.c.b16 %v2106, %v2105
        %v2127 = vpack.c.b16 %v2108, %v2107
        %v2128 = vpack.c.b16 %v2110, %v2109
        %v2129 = vpack.c.b16 %v2112, %v2111
        %v2130 = vpack.c.b16 %v2114, %v2113
        %v2131 = vpack.c.b16 %v2116, %v2115
        %v2132 = vpack.c.b16 %v2118, %v2117
        %v2133 = vpack.c.b16 %v2120, %v2119
        %v2134 = vpack.c.b16 %v2122, %v2121
        %v2148 = vsel %vm2048, %v2068, 0
        %2150 = vmatprep.subr.bf16.mxu0 0
        %2151 = vmatpush1.bf16.msra.mxu0 %v2130
        %2152 = vmatprep.subr.bf16.mxu0 0
        %2153 = vmatpush1.bf16.msra.mxu0 %v2129
        %2154 = vmatprep.subr.bf16.mxu0 0
        %2155 = vmatpush1.bf16.msra.mxu0 %v2128
        %2156 = vmatprep.subr.bf16.mxu0 0
        %2157 = vmatpush1.bf16.msra.mxu0 %v2127
        %2158 = vmatprep.subr.bf16.mxu0 0
        %2159 = vmatpush1.bf16.msra.mxu0 %v2126
        %2160 = vmatprep.subr.bf16.mxu0 0
        %2161 = vmatpush1.bf16.msra.mxu0 %v2125
        %2162 = vmatprep.subr.bf16.mxu0 0
        %2163 = vmatpush1.bf16.msra.mxu0 %v2124
        %2164 = vmatprep.subr.bf16.mxu0 0
        %2165 = vmatpush1.bf16.msra.mxu0 %v2123
        %2166 = vmatprep.subr.bf16.mxu0 0
        %2167 = vmatpush2.bf16.msra.mxu0 0
        %2168 = vmatprep.subr.bf16.mxu0 0
        %2169 = vmatpush2.bf16.msra.mxu0 0
        %2170 = vmatprep.subr.bf16.mxu0 0
        %2171 = vmatpush2.bf16.msra.mxu0 0
        %2172 = vmatprep.subr.bf16.mxu0 0
        %2173 = vmatpush2.bf16.msra.mxu0 0
        %2174 = vmatprep.subr.bf16.mxu0 0
        %2175 = vmatpush2.bf16.msra.mxu0 %v2134
        %2176 = vmatprep.subr.bf16.mxu0 0
        %2177 = vmatpush2.bf16.msra.mxu0 %v2133
        %2178 = vmatprep.subr.bf16.mxu0 0
        %2179 = vmatpush2.bf16.msra.mxu0 %v2132
        %2180 = vmatprep.subr.bf16.mxu0 0
        %2181 = vmatpush2.bf16.msra.mxu0 %v2131
        %2182 = vmatprep.mubr.bf16.mxu0 %v2148
        %2183 = vmatmul.mubr.bf16.gmra.mxu0 %v2067
        %v2184 = vpop.f32.mrf.mxu0
        %v2185 = vadd.f32 %v2073, %v2184
        %v2186 = vpop.f32.mrf.mxu0
        %v2187 = vpop.f32.mrf.mxu0
        %v2188 = vadd.f32 %v2073, %v2187
        %v2189 = vpop.f32.mrf.mxu0
        %2190 = vdwg.mxu0
        %v2191 = vmul.f32 %v2185, %v636
        %v2192 = vmul.f32 %v2188, %v637
        %v2193 = vadd.f32 %v1861, %v2191
        %v2194 = vadd.f32 %v1862, %v2192
        %v2195 = vld [vmem:[%s14] sm:$0x1]
        %v2196 = vld [vmem:[%s15] sm:$0x1]
        %v2197 = vsel %vm760, %v2193, 0.0
        %2198 = vadd.xlane.f32.xlu0 %v2197
        %v2199 = vpop.xlane.xlu0 %2198
        %v2200 = vsel %vm760, %v2194, 0.0
        %2201 = vadd.xlane.f32.xlu0 %v2200
        %v2202 = vpop.xlane.xlu0 %2201
        %v2203 = vmul.f32 %v2199, %v1826
        %v2204 = vmul.f32 %v2202, %v1826
        %v2205 = vsub.f32 %v2193, %v2203
        %v2206 = vsub.f32 %v2194, %v2204
        %v2207 = vmul.f32 %v2205, %v2205
        %v2208 = vmul.f32 %v2206, %v2206
        %v2209 = vsel %vm760, %v2207, 0.0
        %2210 = vadd.xlane.f32.xlu0 %v2209
        %v2211 = vpop.xlane.xlu0 %2210
        %v2212 = vsel %vm760, %v2208, 0.0
        %2213 = vadd.xlane.f32.xlu0 %v2212
        %v2214 = vpop.xlane.xlu0 %2213
        %v2215 = vmul.f32 %v2211, %v1826
        %v2216 = vmul.f32 %v2214, %v1826
        %v2217 = vadd.f32 %v2215, 1e-05
        %v2218 = vadd.f32 %v2216, 1e-05
        %v2219 = vrsqrt.pop %v2217
        %v2220 = vrsqrt.pop %v2218
        %v2221 = vmul.f32 %v2205, %v2219
        %v2222 = vmul.f32 %v2206, %v2220
        %v2224 = vlaneseq
        %v2225 = vshrl.u32 %v2224, 7
        %v2226 = vsub.s32 0, %v2225
        %v2227 = vrot.slane %v2195, %v2226
        %v2229 = vmul.f32 %v2221, %v2227
        %v2230 = vmul.f32 %v2222, %v2227
        %v2232 = vlaneseq
        %v2233 = vshrl.u32 %v2232, 7
        %v2234 = vsub.s32 0, %v2233
        %v2235 = vrot.slane %v2196, %v2234
        %v2237 = vadd.f32 %v2229, %v2235
        %v2238 = vadd.f32 %v2230, %v2235
        %s2239 = scalar_lea.vmem %s2, 48
        %v2240 = vld [vmem:[%s2239] sm:$0xff]
        %v2241 = vld [vmem:[%s2239 + $0x8] sm:$0xff]
        %v2242 = vld [vmem:[%s2239 + $0x10] sm:$0xff]
        %v2243 = vld [vmem:[%s2239 + $0x18] sm:$0xff]
        %v2244 = vld [vmem:[%s2239 + $0x20] sm:$0xff]
        %v2245 = vld [vmem:[%s2239 + $0x28] sm:$0xff]
        %v2246 = vpack.c.bf16 %v2238, %v2237
        %s2247 = scalar_lea.vmem %s3, 2
        %v2248 = vld [vmem:[%s2247] sm:$0x3]
        %v2250 = vlaneseq
        %v2251 = vshrl.u32 %v2250, 7
        %v2252 = vsub.s32 0, %v2251
        %v2253 = vrot.slane %v2248, %v2252
        %v2254 = vlaneseq
        %v2255 = vshrl.u32 %v2254, 7
        %v2256 = vsub.s32 1, %v2255
        %v2257 = vrot.slane %v2248, %v2256
        %v2266 = vunpack.c.l.b16 %v2240
        %v2267 = vunpack.c.h.b16 %v2240
        %v2268 = vunpack.c.l.b16 %v2241
        %v2269 = vunpack.c.h.b16 %v2241
        %v2270 = vunpack.c.l.b16 %v2242
        %v2271 = vunpack.c.h.b16 %v2242
        %v2272 = vunpack.c.l.b16 %v2243
        %v2273 = vunpack.c.h.b16 %v2243
        %v2274 = vunpack.c.l.b16 %v2244
        %v2275 = vunpack.c.h.b16 %v2244
        %v2276 = vunpack.c.l.b16 %v2245
        %v2277 = vunpack.c.h.b16 %v2245
        %v2278 = vpack.c.b16 %v2268, %v2266
        %v2279 = vpack.c.b16 %v2269, %v2267
        %v2280 = vpack.c.b16 %v2272, %v2270
        %v2281 = vpack.c.b16 %v2273, %v2271
        %v2282 = vpack.c.b16 %v2276, %v2274
        %v2283 = vpack.c.b16 %v2277, %v2275
        %v2291 = vsel %vm760, %v2246, 0
        %2293 = vmatprep.subr.bf16.mxu0 0
        %2294 = vmatpush1.bf16.msra.mxu0 0
        %2295 = vmatprep.subr.bf16.mxu0 0
        %2296 = vmatpush1.bf16.msra.mxu0 0
        %2297 = vmatprep.subr.bf16.mxu0 0
        %2298 = vmatpush1.bf16.msra.mxu0 0
        %2299 = vmatprep.subr.bf16.mxu0 0
        %2300 = vmatpush1.bf16.msra.mxu0 0
        %2301 = vmatprep.subr.bf16.mxu0 0
        %2302 = vmatpush1.bf16.msra.mxu0 0
        %2303 = vmatprep.subr.bf16.mxu0 %v2283
        %2304 = vmatpush1.bf16.msra.mxu0 %v2282
        %2305 = vmatprep.subr.bf16.mxu0 %v2281
        %2306 = vmatpush1.bf16.msra.mxu0 %v2280
        %2307 = vmatprep.subr.bf16.mxu0 %v2279
        %2308 = vmatpush1.bf16.msra.mxu0 %v2278
        %2309 = vmatprep.subr.bf16.mxu0 0
        %2310 = vmatpush2.bf16.msra.mxu0 0
        %2311 = vmatprep.subr.bf16.mxu0 0
        %2312 = vmatpush2.bf16.msra.mxu0 0
        %2313 = vmatprep.subr.bf16.mxu0 0
        %2314 = vmatpush2.bf16.msra.mxu0 0
        %2315 = vmatprep.subr.bf16.mxu0 0
        %2316 = vmatpush2.bf16.msra.mxu0 0
        %2317 = vmatprep.subr.bf16.mxu0 0
        %2318 = vmatpush2.bf16.msra.mxu0 0
        %2319 = vmatprep.subr.bf16.mxu0 0
        %2320 = vmatpush2.bf16.msra.mxu0 0
        %2321 = vmatprep.subr.bf16.mxu0 0
        %2322 = vmatpush2.bf16.msra.mxu0 0
        %2323 = vmatprep.subr.bf16.mxu0 0
        %2324 = vmatpush2.bf16.msra.mxu0 0
        %2325 = vmatprep.mubr.bf16.mxu0 0
        %2326 = vmatmul.mubr.bf16.gmra.mxu0 %v2291
        %v2327 = vpop.f32.mrf.mxu0
        %v2328 = vadd.f32 %v2253, %v2327
        %v2329 = vpop.f32.mrf.mxu0
        %v2330 = vadd.f32 %v2257, %v2329
        %v2331 = vpop.f32.mrf.mxu0
        %v2332 = vadd.f32 %v2253, %v2331
        %v2333 = vpop.f32.mrf.mxu0
        %v2334 = vadd.f32 %v2257, %v2333
        %2335 = vdwg.mxu0
        %s2336 = scalar_lea.vmem %s6, 8
        %v2337 = vld [vmem:[%s2336] sm:$0xf]
        %v2338 = vld [vmem:[%s2336 + $0x4] sm:$0x1]
        %s2339 = scalar_lea.vmem %s7, 8
        %v2340 = vld [vmem:[%s2339] sm:$0xf]
        %v2341 = vld [vmem:[%s2339 + $0x4] sm:$0x1]
        %v2342 = vmul.f32 %v2328, 0.20412415
        %v2343 = vmul.f32 %v2332, 0.20412415
        %v2344 = vpack.c.bf16 %v2343, %v2342
        %v2345 = vpack.c.bf16 %v2332, %v2328
        %v2348 = vunpack.c.l.b16 %v2337
        %v2349 = vunpack.c.l.b16 %v2338
        %v2350 = vpack.c.b16 %v2349, %v2348
        %v2352 = vsel %vm820, %v2344, 0
        %v2355 = vsel %vm820, %v2350, 0
        %2357 = vmatprep.subr.bf16.mxu0 0
        %2358 = vmatpush1.bf16.xpose.msra.mxu0 0
        %2359 = vmatprep.subr.bf16.mxu0 0
        %2360 = vmatpush1.bf16.xpose.msra.mxu0 0
        %2361 = vmatprep.subr.bf16.mxu0 0
        %2362 = vmatpush1.bf16.xpose.msra.mxu0 0
        %2363 = vmatprep.subr.bf16.mxu0 0
        %2364 = vmatpush1.bf16.xpose.msra.mxu0 0
        %2365 = vmatprep.subr.bf16.mxu0 0
        %2366 = vmatpush1.bf16.xpose.msra.mxu0 0
        %2367 = vmatprep.subr.bf16.mxu0 0
        %2368 = vmatpush1.bf16.xpose.msra.mxu0 0
        %2369 = vmatprep.subr.bf16.mxu0 0
        %2370 = vmatpush1.bf16.xpose.msra.mxu0 0
        %2371 = vmatprep.subr.bf16.mxu0 0
        %2372 = vmatpush1.bf16.xpose.msra.mxu0 %v2355
        %2373 = vmatprep.subr.bf16.mxu0 0
        %2374 = vmatpush2.bf16.xpose.msra.mxu0 0
        %2375 = vmatprep.subr.bf16.mxu0 0
        %2376 = vmatpush2.bf16.xpose.msra.mxu0 0
        %2377 = vmatprep.subr.bf16.mxu0 0
        %2378 = vmatpush2.bf16.xpose.msra.mxu0 0
        %2379 = vmatprep.subr.bf16.mxu0 0
        %2380 = vmatpush2.bf16.xpose.msra.mxu0 0
        %2381 = vmatprep.subr.bf16.mxu0 0
        %2382 = vmatpush2.bf16.xpose.msra.mxu0 0
        %2383 = vmatprep.subr.bf16.mxu0 0
        %2384 = vmatpush2.bf16.xpose.msra.mxu0 0
        %2385 = vmatprep.subr.bf16.mxu0 0
        %2386 = vmatpush2.bf16.xpose.msra.mxu0 0
        %2387 = vmatprep.subr.bf16.mxu0 0
        %2388 = vmatpush2.bf16.xpose.msra.mxu0 0
        %2389 = vmatprep.mubr.bf16.mxu0 0
        %2390 = vmatmul.mubr.bf16.gmra.mxu0 %v2352
        %v2391 = vpop.f32.mrf.mxu0
        %v2392 = vadd.f32 0.0, %v2391
        %v2393 = vpop.f32.mrf.mxu0
        %v2394 = vpop.f32.mrf.mxu0
        %v2395 = vadd.f32 0.0, %v2394
        %v2396 = vpop.f32.mrf.mxu0
        %2397 = vdwg.mxu0
        %2399 = vset.pattern.permute.xlu0 0
        %2400 = vperm.xlu0 %2399, %v2392
        %v2401 = vpop.permute.xlu0 %2400
        %2404 = vset.pattern.permute.xlu0 0
        %2405 = vperm.xlu0 %2404, %v2395
        %v2406 = vpop.permute.xlu0 %2405
        %v2408 = vmul.f32 %v2401, %v648
        %v2409 = vmul.f32 %v2406, %v649
        %2411 = vrot.lane.b32.xlu0 %v2345, 80
        %v2412 = vpop.permute.xlu0 %2411
        %v2414 = vsel %vm820, %v2412, 0
        %2416 = vmatprep.subr.bf16.mxu0 0
        %2417 = vmatpush1.bf16.xpose.msra.mxu0 0
        %2418 = vmatprep.subr.bf16.mxu0 0
        %2419 = vmatpush1.bf16.xpose.msra.mxu0 0
        %2420 = vmatprep.subr.bf16.mxu0 0
        %2421 = vmatpush1.bf16.xpose.msra.mxu0 0
        %2422 = vmatprep.subr.bf16.mxu0 0
        %2423 = vmatpush1.bf16.xpose.msra.mxu0 0
        %2424 = vmatprep.subr.bf16.mxu0 0
        %2425 = vmatpush1.bf16.xpose.msra.mxu0 0
        %2426 = vmatprep.subr.bf16.mxu0 0
        %2427 = vmatpush1.bf16.xpose.msra.mxu0 0
        %2428 = vmatprep.subr.bf16.mxu0 0
        %2429 = vmatpush1.bf16.xpose.msra.mxu0 0
        %2430 = vmatprep.subr.bf16.mxu0 0
        %2431 = vmatpush1.bf16.xpose.msra.mxu0 %v2414
        %2432 = vmatprep.subr.bf16.mxu0 0
        %2433 = vmatpush2.bf16.xpose.msra.mxu0 0
        %2434 = vmatprep.subr.bf16.mxu0 0
        %2435 = vmatpush2.bf16.xpose.msra.mxu0 0
        %2436 = vmatprep.subr.bf16.mxu0 0
        %2437 = vmatpush2.bf16.xpose.msra.mxu0 0
        %2438 = vmatprep.subr.bf16.mxu0 0
        %2439 = vmatpush2.bf16.xpose.msra.mxu0 0
        %2440 = vmatprep.subr.bf16.mxu0 0
        %2441 = vmatpush2.bf16.xpose.msra.mxu0 0
        %2442 = vmatprep.subr.bf16.mxu0 0
        %2443 = vmatpush2.bf16.xpose.msra.mxu0 0
        %2444 = vmatprep.subr.bf16.mxu0 0
        %2445 = vmatpush2.bf16.xpose.msra.mxu0 0
        %2446 = vmatprep.subr.bf16.mxu0 0
        %2447 = vmatpush2.bf16.xpose.msra.mxu0 0
        %2448 = vmatprep.mubr.bf16.mxu0 0
        %2449 = vmatmul.mubr.bf16.gmra.mxu0 %v2352
        %v2450 = vpop.f32.mrf.mxu0
        %v2451 = vadd.f32 %v2408, %v2450
        %v2452 = vpop.f32.mrf.mxu0
        %v2453 = vpop.f32.mrf.mxu0
        %v2454 = vadd.f32 %v2409, %v2453
        %v2455 = vpop.f32.mrf.mxu0
        %2456 = vdwg.mxu0
        %2457 = vset.pattern.permute.xlu0 1
        %2458 = vperm.xlu0 %2457, %v2392
        %v2459 = vpop.permute.xlu0 %2458
        %2461 = vset.pattern.permute.xlu0 1
        %2462 = vperm.xlu0 %2461, %v2395
        %v2463 = vpop.permute.xlu0 %2462
        %v2465 = vmul.f32 %v2459, %v654
        %v2466 = vmul.f32 %v2463, %v655
        %v2467 = vadd.f32 %v2451, %v2465
        %v2468 = vadd.f32 %v2454, %v2466
        %2469 = vset.pattern.permute.xlu0 2
        %2470 = vperm.xlu0 %2469, %v2392
        %v2471 = vpop.permute.xlu0 %2470
        %2473 = vset.pattern.permute.xlu0 2
        %2474 = vperm.xlu0 %2473, %v2395
        %v2475 = vpop.permute.xlu0 %2474
        %v2477 = vmul.f32 %v2471, %v660
        %v2478 = vmul.f32 %v2475, %v661
        %v2479 = vadd.f32 %v2467, %v2477
        %v2480 = vadd.f32 %v2468, %v2478
        %2481 = vset.pattern.permute.xlu0 3
        %2482 = vperm.xlu0 %2481, %v2392
        %v2483 = vpop.permute.xlu0 %2482
        %2485 = vset.pattern.permute.xlu0 3
        %2486 = vperm.xlu0 %2485, %v2395
        %v2487 = vpop.permute.xlu0 %2486
        %v2489 = vmul.f32 %v2483, %v666
        %v2490 = vmul.f32 %v2487, %v667
        %v2491 = vadd.f32 %v2479, %v2489
        %v2492 = vadd.f32 %v2480, %v2490
        %2493 = vset.pattern.permute.xlu0 4
        %2494 = vperm.xlu0 %2493, %v2392
        %v2495 = vpop.permute.xlu0 %2494
        %2497 = vset.pattern.permute.xlu0 4
        %2498 = vperm.xlu0 %2497, %v2395
        %v2499 = vpop.permute.xlu0 %2498
        %v2501 = vmul.f32 %v2495, %v672
        %v2502 = vmul.f32 %v2499, %v673
        %v2503 = vadd.f32 %v2491, %v2501
        %v2504 = vadd.f32 %v2492, %v2502
        %2505 = vset.pattern.permute.xlu0 5
        %2506 = vperm.xlu0 %2505, %v2392
        %v2507 = vpop.permute.xlu0 %2506
        %2509 = vset.pattern.permute.xlu0 5
        %2510 = vperm.xlu0 %2509, %v2395
        %v2511 = vpop.permute.xlu0 %2510
        %v2513 = vmul.f32 %v2507, %v678
        %v2514 = vmul.f32 %v2511, %v679
        %v2515 = vadd.f32 %v2503, %v2513
        %v2516 = vadd.f32 %v2504, %v2514
        %2517 = vset.pattern.permute.xlu0 6
        %2518 = vperm.xlu0 %2517, %v2392
        %v2519 = vpop.permute.xlu0 %2518
        %2521 = vset.pattern.permute.xlu0 6
        %2522 = vperm.xlu0 %2521, %v2395
        %v2523 = vpop.permute.xlu0 %2522
        %v2525 = vmul.f32 %v2519, %v684
        %v2526 = vmul.f32 %v2523, %v685
        %v2527 = vadd.f32 %v2515, %v2525
        %v2528 = vadd.f32 %v2516, %v2526
        %2529 = vset.pattern.permute.xlu0 7
        %2530 = vperm.xlu0 %2529, %v2392
        %v2531 = vpop.permute.xlu0 %2530
        %2533 = vset.pattern.permute.xlu0 7
        %2534 = vperm.xlu0 %2533, %v2395
        %v2535 = vpop.permute.xlu0 %2534
        %v2537 = vmul.f32 %v2531, %v690
        %v2538 = vmul.f32 %v2535, %v691
        %v2539 = vadd.f32 %v2527, %v2537
        %v2540 = vadd.f32 %v2528, %v2538
        %2541 = vset.pattern.permute.xlu0 8
        %2542 = vperm.xlu0 %2541, %v2392
        %v2543 = vpop.permute.xlu0 %2542
        %2545 = vset.pattern.permute.xlu0 8
        %2546 = vperm.xlu0 %2545, %v2395
        %v2547 = vpop.permute.xlu0 %2546
        %v2549 = vmul.f32 %v2543, %v696
        %v2550 = vmul.f32 %v2547, %v697
        %v2551 = vadd.f32 %v2539, %v2549
        %v2552 = vadd.f32 %v2540, %v2550
        %v2553 = vadd.f32 %v2551, %v641
        %v2554 = vadd.f32 %v2552, %v641
        %v2555 = vsel %vm1025, %v2553, -inf
        %2556 = vmax.xlane.f32.xlu0 %v2555
        %v2557 = vpop.xlane.xlu0 %2556
        %v2558 = vsel %vm1025, %v2554, -inf
        %2559 = vmax.xlane.f32.xlu0 %v2558
        %v2560 = vpop.xlane.xlu0 %2559
        %v2561 = vsub.f32 %v2553, %v2557
        %v2562 = vsub.f32 %v2554, %v2560
        %v2563 = vmul.f32 %v2561, 1.442695
        %v2564 = vpow.pop %v2563
        %v2565 = vmul.f32 %v2562, 1.442695
        %v2566 = vpow.pop %v2565
        %v2567 = vsel %vm1025, %v2564, 0.0
        %2568 = vadd.xlane.f32.xlu0 %v2567
        %v2569 = vpop.xlane.xlu0 %2568
        %v2570 = vsel %vm1025, %v2566, 0.0
        %2571 = vadd.xlane.f32.xlu0 %v2570
        %v2572 = vpop.xlane.xlu0 %2571
        %v2573 = vrcp.pop %v2569
        %v2574 = vrcp.pop %v2572
        %v2575 = vmul.f32 %v2564, %v2573
        %v2576 = vmul.f32 %v2566, %v2574
        %v2577 = vpack.c.bf16 %v2576, %v2575
        %v2578 = vmul.f32 %v2575, %v648
        %v2579 = vmul.f32 %v2576, %v649
        %v2580 = vsel %vm1025, %v2578, 0.0
        %2581 = vadd.xlane.f32.xlu0 %v2580
        %v2582 = vpop.xlane.xlu0 %2581
        %v2583 = vsel %vm1025, %v2579, 0.0
        %2584 = vadd.xlane.f32.xlu0 %v2583
        %v2585 = vpop.xlane.xlu0 %2584
        %v2586 = vmul.f32 %v2582, %v1060
        %v2587 = vmul.f32 %v2585, %v1060
        %v2588 = vadd.f32 %v2586, 0.0
        %v2589 = vadd.f32 %v2587, 0.0
        %v2590 = vmul.f32 %v2575, %v654
        %v2591 = vmul.f32 %v2576, %v655
        %v2592 = vsel %vm1025, %v2590, 0.0
        %2593 = vadd.xlane.f32.xlu0 %v2592
        %v2594 = vpop.xlane.xlu0 %2593
        %v2595 = vsel %vm1025, %v2591, 0.0
        %2596 = vadd.xlane.f32.xlu0 %v2595
        %v2597 = vpop.xlane.xlu0 %2596
        %v2598 = vmul.f32 %v2594, %v1076
        %v2599 = vmul.f32 %v2597, %v1076
        %v2600 = vadd.f32 %v2588, %v2598
        %v2601 = vadd.f32 %v2589, %v2599
        %v2602 = vmul.f32 %v2575, %v660
        %v2603 = vmul.f32 %v2576, %v661
        %v2604 = vsel %vm1025, %v2602, 0.0
        %2605 = vadd.xlane.f32.xlu0 %v2604
        %v2606 = vpop.xlane.xlu0 %2605
        %v2607 = vsel %vm1025, %v2603, 0.0
        %2608 = vadd.xlane.f32.xlu0 %v2607
        %v2609 = vpop.xlane.xlu0 %2608
        %v2610 = vmul.f32 %v2606, %v1092
        %v2611 = vmul.f32 %v2609, %v1092
        %v2612 = vadd.f32 %v2600, %v2610
        %v2613 = vadd.f32 %v2601, %v2611
        %v2614 = vmul.f32 %v2575, %v666
        %v2615 = vmul.f32 %v2576, %v667
        %v2616 = vsel %vm1025, %v2614, 0.0
        %2617 = vadd.xlane.f32.xlu0 %v2616
        %v2618 = vpop.xlane.xlu0 %2617
        %v2619 = vsel %vm1025, %v2615, 0.0
        %2620 = vadd.xlane.f32.xlu0 %v2619
        %v2621 = vpop.xlane.xlu0 %2620
        %v2622 = vmul.f32 %v2618, %v1108
        %v2623 = vmul.f32 %v2621, %v1108
        %v2624 = vadd.f32 %v2612, %v2622
        %v2625 = vadd.f32 %v2613, %v2623
        %v2626 = vmul.f32 %v2575, %v672
        %v2627 = vmul.f32 %v2576, %v673
        %v2628 = vsel %vm1025, %v2626, 0.0
        %2629 = vadd.xlane.f32.xlu0 %v2628
        %v2630 = vpop.xlane.xlu0 %2629
        %v2631 = vsel %vm1025, %v2627, 0.0
        %2632 = vadd.xlane.f32.xlu0 %v2631
        %v2633 = vpop.xlane.xlu0 %2632
        %v2634 = vmul.f32 %v2630, %v1124
        %v2635 = vmul.f32 %v2633, %v1124
        %v2636 = vadd.f32 %v2624, %v2634
        %v2637 = vadd.f32 %v2625, %v2635
        %v2638 = vmul.f32 %v2575, %v678
        %v2639 = vmul.f32 %v2576, %v679
        %v2640 = vsel %vm1025, %v2638, 0.0
        %2641 = vadd.xlane.f32.xlu0 %v2640
        %v2642 = vpop.xlane.xlu0 %2641
        %v2643 = vsel %vm1025, %v2639, 0.0
        %2644 = vadd.xlane.f32.xlu0 %v2643
        %v2645 = vpop.xlane.xlu0 %2644
        %v2646 = vmul.f32 %v2642, %v1140
        %v2647 = vmul.f32 %v2645, %v1140
        %v2648 = vadd.f32 %v2636, %v2646
        %v2649 = vadd.f32 %v2637, %v2647
        %v2650 = vmul.f32 %v2575, %v684
        %v2651 = vmul.f32 %v2576, %v685
        %v2652 = vsel %vm1025, %v2650, 0.0
        %2653 = vadd.xlane.f32.xlu0 %v2652
        %v2654 = vpop.xlane.xlu0 %2653
        %v2655 = vsel %vm1025, %v2651, 0.0
        %2656 = vadd.xlane.f32.xlu0 %v2655
        %v2657 = vpop.xlane.xlu0 %2656
        %v2658 = vmul.f32 %v2654, %v1156
        %v2659 = vmul.f32 %v2657, %v1156
        %v2660 = vadd.f32 %v2648, %v2658
        %v2661 = vadd.f32 %v2649, %v2659
        %v2662 = vmul.f32 %v2575, %v690
        %v2663 = vmul.f32 %v2576, %v691
        %v2664 = vsel %vm1025, %v2662, 0.0
        %2665 = vadd.xlane.f32.xlu0 %v2664
        %v2666 = vpop.xlane.xlu0 %2665
        %v2667 = vsel %vm1025, %v2663, 0.0
        %2668 = vadd.xlane.f32.xlu0 %v2667
        %v2669 = vpop.xlane.xlu0 %2668
        %v2670 = vmul.f32 %v2666, %v1172
        %v2671 = vmul.f32 %v2669, %v1172
        %v2672 = vadd.f32 %v2660, %v2670
        %v2673 = vadd.f32 %v2661, %v2671
        %v2674 = vmul.f32 %v2575, %v696
        %v2675 = vmul.f32 %v2576, %v697
        %v2676 = vsel %vm1025, %v2674, 0.0
        %2677 = vadd.xlane.f32.xlu0 %v2676
        %v2678 = vpop.xlane.xlu0 %2677
        %v2679 = vsel %vm1025, %v2675, 0.0
        %2680 = vadd.xlane.f32.xlu0 %v2679
        %v2681 = vpop.xlane.xlu0 %2680
        %v2682 = vmul.f32 %v2678, %v1188
        %v2683 = vmul.f32 %v2681, %v1188
        %v2684 = vadd.f32 %v2672, %v2682
        %v2685 = vadd.f32 %v2673, %v2683
        %v2686 = vpack.c.bf16 %v2685, %v2684
        %v2689 = vunpack.c.l.b16 %v2340
        %v2690 = vunpack.c.l.b16 %v2341
        %v2691 = vpack.c.b16 %v2690, %v2689
        %v2693 = vsel %vm1199, %v2686, 0
        %v2696 = vand.u32 %v2691, %v1206
        %2698 = vmatprep.subr.bf16.mxu0 0
        %2699 = vmatpush1.bf16.msra.mxu0 0
        %2700 = vmatprep.subr.bf16.mxu0 0
        %2701 = vmatpush1.bf16.msra.mxu0 0
        %2702 = vmatprep.subr.bf16.mxu0 0
        %2703 = vmatpush1.bf16.msra.mxu0 0
        %2704 = vmatprep.subr.bf16.mxu0 0
        %2705 = vmatpush1.bf16.msra.mxu0 0
        %2706 = vmatprep.subr.bf16.mxu0 0
        %2707 = vmatpush1.bf16.msra.mxu0 0
        %2708 = vmatprep.subr.bf16.mxu0 0
        %2709 = vmatpush1.bf16.msra.mxu0 0
        %2710 = vmatprep.subr.bf16.mxu0 0
        %2711 = vmatpush1.bf16.msra.mxu0 0
        %2712 = vmatprep.subr.bf16.mxu0 0
        %2713 = vmatpush1.bf16.msra.mxu0 %v2696
        %2714 = vmatprep.subr.bf16.mxu0 0
        %2715 = vmatpush2.bf16.msra.mxu0 0
        %2716 = vmatprep.subr.bf16.mxu0 0
        %2717 = vmatpush2.bf16.msra.mxu0 0
        %2718 = vmatprep.subr.bf16.mxu0 0
        %2719 = vmatpush2.bf16.msra.mxu0 0
        %2720 = vmatprep.subr.bf16.mxu0 0
        %2721 = vmatpush2.bf16.msra.mxu0 0
        %2722 = vmatprep.subr.bf16.mxu0 0
        %2723 = vmatpush2.bf16.msra.mxu0 0
        %2724 = vmatprep.subr.bf16.mxu0 0
        %2725 = vmatpush2.bf16.msra.mxu0 0
        %2726 = vmatprep.subr.bf16.mxu0 0
        %2727 = vmatpush2.bf16.msra.mxu0 0
        %2728 = vmatprep.subr.bf16.mxu0 0
        %2729 = vmatpush2.bf16.msra.mxu0 0
        %2730 = vmatprep.mubr.bf16.mxu0 0
        %2731 = vmatmul.mubr.bf16.gmra.mxu0 %v2693
        %v2732 = vpop.f32.mrf.mxu0
        %v2733 = vadd.f32 0.0, %v2732
        %v2734 = vpop.f32.mrf.mxu0
        %v2735 = vpop.f32.mrf.mxu0
        %v2736 = vadd.f32 0.0, %v2735
        %v2737 = vpop.f32.mrf.mxu0
        %2738 = vdwg.mxu0
        %2739 = vrot.lane.b32.xlu0 %v2345, 32
        %v2740 = vpop.permute.xlu0 %2739
        %v2743 = vsel %vm1025, %v2577, 0
        %2745 = vmatprep.subr.bf16.mxu0 0
        %2746 = vmatpush1.bf16.msra.mxu0 0
        %2747 = vmatprep.subr.bf16.mxu0 0
        %2748 = vmatpush1.bf16.msra.mxu0 0
        %2749 = vmatprep.subr.bf16.mxu0 0
        %2750 = vmatpush1.bf16.msra.mxu0 0
        %2751 = vmatprep.subr.bf16.mxu0 0
        %2752 = vmatpush1.bf16.msra.mxu0 0
        %2753 = vmatprep.subr.bf16.mxu0 0
        %2754 = vmatpush1.bf16.msra.mxu0 0
        %2755 = vmatprep.subr.bf16.mxu0 0
        %2756 = vmatpush1.bf16.msra.mxu0 0
        %2757 = vmatprep.subr.bf16.mxu0 0
        %2758 = vmatpush1.bf16.msra.mxu0 0
        %2759 = vmatprep.subr.bf16.mxu0 0
        %2760 = vmatpush1.bf16.msra.mxu0 %v2740
        %2761 = vmatprep.subr.bf16.mxu0 0
        %2762 = vmatpush2.bf16.msra.mxu0 0
        %2763 = vmatprep.subr.bf16.mxu0 0
        %2764 = vmatpush2.bf16.msra.mxu0 0
        %2765 = vmatprep.subr.bf16.mxu0 0
        %2766 = vmatpush2.bf16.msra.mxu0 0
        %2767 = vmatprep.subr.bf16.mxu0 0
        %2768 = vmatpush2.bf16.msra.mxu0 0
        %2769 = vmatprep.subr.bf16.mxu0 0
        %2770 = vmatpush2.bf16.msra.mxu0 0
        %2771 = vmatprep.subr.bf16.mxu0 0
        %2772 = vmatpush2.bf16.msra.mxu0 0
        %2773 = vmatprep.subr.bf16.mxu0 0
        %2774 = vmatpush2.bf16.msra.mxu0 0
        %2775 = vmatprep.subr.bf16.mxu0 0
        %2776 = vmatpush2.bf16.msra.mxu0 0
        %2777 = vmatprep.mubr.bf16.mxu0 0
        %2778 = vmatmul.mubr.bf16.gmra.mxu0 %v2743
        %v2779 = vpop.f32.mrf.mxu0
        %v2780 = vadd.f32 %v2733, %v2779
        %v2781 = vpop.f32.mrf.mxu0
        %v2782 = vpop.f32.mrf.mxu0
        %v2783 = vadd.f32 %v2736, %v2782
        %v2784 = vpop.f32.mrf.mxu0
        %2785 = vdwg.mxu0
        %2787 = vrot.lane.b32.xlu0 %v2344, 104
        %v2788 = vpop.permute.xlu0 %2787
        %v2790 = vsel %vm820, %v2788, 0
        %2792 = vmatprep.subr.bf16.mxu0 0
        %2793 = vmatpush1.bf16.xpose.msra.mxu0 0
        %2794 = vmatprep.subr.bf16.mxu0 0
        %2795 = vmatpush1.bf16.xpose.msra.mxu0 0
        %2796 = vmatprep.subr.bf16.mxu0 0
        %2797 = vmatpush1.bf16.xpose.msra.mxu0 0
        %2798 = vmatprep.subr.bf16.mxu0 0
        %2799 = vmatpush1.bf16.xpose.msra.mxu0 0
        %2800 = vmatprep.subr.bf16.mxu0 0
        %2801 = vmatpush1.bf16.xpose.msra.mxu0 0
        %2802 = vmatprep.subr.bf16.mxu0 0
        %2803 = vmatpush1.bf16.xpose.msra.mxu0 0
        %2804 = vmatprep.subr.bf16.mxu0 0
        %2805 = vmatpush1.bf16.xpose.msra.mxu0 0
        %2806 = vmatprep.subr.bf16.mxu0 0
        %2807 = vmatpush1.bf16.xpose.msra.mxu0 %v2355
        %2808 = vmatprep.subr.bf16.mxu0 0
        %2809 = vmatpush2.bf16.xpose.msra.mxu0 0
        %2810 = vmatprep.subr.bf16.mxu0 0
        %2811 = vmatpush2.bf16.xpose.msra.mxu0 0
        %2812 = vmatprep.subr.bf16.mxu0 0
        %2813 = vmatpush2.bf16.xpose.msra.mxu0 0
        %2814 = vmatprep.subr.bf16.mxu0 0
        %2815 = vmatpush2.bf16.xpose.msra.mxu0 0
        %2816 = vmatprep.subr.bf16.mxu0 0
        %2817 = vmatpush2.bf16.xpose.msra.mxu0 0
        %2818 = vmatprep.subr.bf16.mxu0 0
        %2819 = vmatpush2.bf16.xpose.msra.mxu0 0
        %2820 = vmatprep.subr.bf16.mxu0 0
        %2821 = vmatpush2.bf16.xpose.msra.mxu0 0
        %2822 = vmatprep.subr.bf16.mxu0 0
        %2823 = vmatpush2.bf16.xpose.msra.mxu0 0
        %2824 = vmatprep.mubr.bf16.mxu0 0
        %2825 = vmatmul.mubr.bf16.gmra.mxu0 %v2790
        %v2826 = vpop.f32.mrf.mxu0
        %v2827 = vadd.f32 0.0, %v2826
        %v2828 = vpop.f32.mrf.mxu0
        %v2829 = vpop.f32.mrf.mxu0
        %v2830 = vadd.f32 0.0, %v2829
        %v2831 = vpop.f32.mrf.mxu0
        %2832 = vdwg.mxu0
        %2834 = vset.pattern.permute.xlu0 0
        %2835 = vperm.xlu0 %2834, %v2827
        %v2836 = vpop.permute.xlu0 %2835
        %2839 = vset.pattern.permute.xlu0 0
        %2840 = vperm.xlu0 %2839, %v2830
        %v2841 = vpop.permute.xlu0 %2840
        %v2843 = vmul.f32 %v2836, %v648
        %v2844 = vmul.f32 %v2841, %v649
        %2845 = vrot.lane.b32.xlu0 %v2345, 56
        %v2846 = vpop.permute.xlu0 %2845
        %v2848 = vsel %vm820, %v2846, 0
        %2850 = vmatprep.subr.bf16.mxu0 0
        %2851 = vmatpush1.bf16.xpose.msra.mxu0 0
        %2852 = vmatprep.subr.bf16.mxu0 0
        %2853 = vmatpush1.bf16.xpose.msra.mxu0 0
        %2854 = vmatprep.subr.bf16.mxu0 0
        %2855 = vmatpush1.bf16.xpose.msra.mxu0 0
        %2856 = vmatprep.subr.bf16.mxu0 0
        %2857 = vmatpush1.bf16.xpose.msra.mxu0 0
        %2858 = vmatprep.subr.bf16.mxu0 0
        %2859 = vmatpush1.bf16.xpose.msra.mxu0 0
        %2860 = vmatprep.subr.bf16.mxu0 0
        %2861 = vmatpush1.bf16.xpose.msra.mxu0 0
        %2862 = vmatprep.subr.bf16.mxu0 0
        %2863 = vmatpush1.bf16.xpose.msra.mxu0 0
        %2864 = vmatprep.subr.bf16.mxu0 0
        %2865 = vmatpush1.bf16.xpose.msra.mxu0 %v2848
        %2866 = vmatprep.subr.bf16.mxu0 0
        %2867 = vmatpush2.bf16.xpose.msra.mxu0 0
        %2868 = vmatprep.subr.bf16.mxu0 0
        %2869 = vmatpush2.bf16.xpose.msra.mxu0 0
        %2870 = vmatprep.subr.bf16.mxu0 0
        %2871 = vmatpush2.bf16.xpose.msra.mxu0 0
        %2872 = vmatprep.subr.bf16.mxu0 0
        %2873 = vmatpush2.bf16.xpose.msra.mxu0 0
        %2874 = vmatprep.subr.bf16.mxu0 0
        %2875 = vmatpush2.bf16.xpose.msra.mxu0 0
        %2876 = vmatprep.subr.bf16.mxu0 0
        %2877 = vmatpush2.bf16.xpose.msra.mxu0 0
        %2878 = vmatprep.subr.bf16.mxu0 0
        %2879 = vmatpush2.bf16.xpose.msra.mxu0 0
        %2880 = vmatprep.subr.bf16.mxu0 0
        %2881 = vmatpush2.bf16.xpose.msra.mxu0 0
        %2882 = vmatprep.mubr.bf16.mxu0 0
        %2883 = vmatmul.mubr.bf16.gmra.mxu0 %v2790
        %v2884 = vpop.f32.mrf.mxu0
        %v2885 = vadd.f32 %v2843, %v2884
        %v2886 = vpop.f32.mrf.mxu0
        %v2887 = vpop.f32.mrf.mxu0
        %v2888 = vadd.f32 %v2844, %v2887
        %v2889 = vpop.f32.mrf.mxu0
        %2890 = vdwg.mxu0
        %2891 = vset.pattern.permute.xlu0 1
        %2892 = vperm.xlu0 %2891, %v2827
        %v2893 = vpop.permute.xlu0 %2892
        %2895 = vset.pattern.permute.xlu0 1
        %2896 = vperm.xlu0 %2895, %v2830
        %v2897 = vpop.permute.xlu0 %2896
        %v2899 = vmul.f32 %v2893, %v654
        %v2900 = vmul.f32 %v2897, %v655
        %v2901 = vadd.f32 %v2885, %v2899
        %v2902 = vadd.f32 %v2888, %v2900
        %2903 = vset.pattern.permute.xlu0 2
        %2904 = vperm.xlu0 %2903, %v2827
        %v2905 = vpop.permute.xlu0 %2904
        %2907 = vset.pattern.permute.xlu0 2
        %2908 = vperm.xlu0 %2907, %v2830
        %v2909 = vpop.permute.xlu0 %2908
        %v2911 = vmul.f32 %v2905, %v660
        %v2912 = vmul.f32 %v2909, %v661
        %v2913 = vadd.f32 %v2901, %v2911
        %v2914 = vadd.f32 %v2902, %v2912
        %2915 = vset.pattern.permute.xlu0 3
        %2916 = vperm.xlu0 %2915, %v2827
        %v2917 = vpop.permute.xlu0 %2916
        %2919 = vset.pattern.permute.xlu0 3
        %2920 = vperm.xlu0 %2919, %v2830
        %v2921 = vpop.permute.xlu0 %2920
        %v2923 = vmul.f32 %v2917, %v666
        %v2924 = vmul.f32 %v2921, %v667
        %v2925 = vadd.f32 %v2913, %v2923
        %v2926 = vadd.f32 %v2914, %v2924
        %2927 = vset.pattern.permute.xlu0 4
        %2928 = vperm.xlu0 %2927, %v2827
        %v2929 = vpop.permute.xlu0 %2928
        %2931 = vset.pattern.permute.xlu0 4
        %2932 = vperm.xlu0 %2931, %v2830
        %v2933 = vpop.permute.xlu0 %2932
        %v2935 = vmul.f32 %v2929, %v672
        %v2936 = vmul.f32 %v2933, %v673
        %v2937 = vadd.f32 %v2925, %v2935
        %v2938 = vadd.f32 %v2926, %v2936
        %2939 = vset.pattern.permute.xlu0 5
        %2940 = vperm.xlu0 %2939, %v2827
        %v2941 = vpop.permute.xlu0 %2940
        %2943 = vset.pattern.permute.xlu0 5
        %2944 = vperm.xlu0 %2943, %v2830
        %v2945 = vpop.permute.xlu0 %2944
        %v2947 = vmul.f32 %v2941, %v678
        %v2948 = vmul.f32 %v2945, %v679
        %v2949 = vadd.f32 %v2937, %v2947
        %v2950 = vadd.f32 %v2938, %v2948
        %2951 = vset.pattern.permute.xlu0 6
        %2952 = vperm.xlu0 %2951, %v2827
        %v2953 = vpop.permute.xlu0 %2952
        %2955 = vset.pattern.permute.xlu0 6
        %2956 = vperm.xlu0 %2955, %v2830
        %v2957 = vpop.permute.xlu0 %2956
        %v2959 = vmul.f32 %v2953, %v684
        %v2960 = vmul.f32 %v2957, %v685
        %v2961 = vadd.f32 %v2949, %v2959
        %v2962 = vadd.f32 %v2950, %v2960
        %2963 = vset.pattern.permute.xlu0 7
        %2964 = vperm.xlu0 %2963, %v2827
        %v2965 = vpop.permute.xlu0 %2964
        %2967 = vset.pattern.permute.xlu0 7
        %2968 = vperm.xlu0 %2967, %v2830
        %v2969 = vpop.permute.xlu0 %2968
        %v2971 = vmul.f32 %v2965, %v690
        %v2972 = vmul.f32 %v2969, %v691
        %v2973 = vadd.f32 %v2961, %v2971
        %v2974 = vadd.f32 %v2962, %v2972
        %2975 = vset.pattern.permute.xlu0 8
        %2976 = vperm.xlu0 %2975, %v2827
        %v2977 = vpop.permute.xlu0 %2976
        %2979 = vset.pattern.permute.xlu0 8
        %2980 = vperm.xlu0 %2979, %v2830
        %v2981 = vpop.permute.xlu0 %2980
        %v2983 = vmul.f32 %v2977, %v696
        %v2984 = vmul.f32 %v2981, %v697
        %v2985 = vadd.f32 %v2973, %v2983
        %v2986 = vadd.f32 %v2974, %v2984
        %v2987 = vadd.f32 %v2985, %v641
        %v2988 = vadd.f32 %v2986, %v641
        %v2989 = vsel %vm1025, %v2987, -inf
        %2990 = vmax.xlane.f32.xlu0 %v2989
        %v2991 = vpop.xlane.xlu0 %2990
        %v2992 = vsel %vm1025, %v2988, -inf
        %2993 = vmax.xlane.f32.xlu0 %v2992
        %v2994 = vpop.xlane.xlu0 %2993
        %v2995 = vsub.f32 %v2987, %v2991
        %v2996 = vsub.f32 %v2988, %v2994
        %v2997 = vmul.f32 %v2995, 1.442695
        %v2998 = vpow.pop %v2997
        %v2999 = vmul.f32 %v2996, 1.442695
        %v3000 = vpow.pop %v2999
        %v3001 = vsel %vm1025, %v2998, 0.0
        %3002 = vadd.xlane.f32.xlu0 %v3001
        %v3003 = vpop.xlane.xlu0 %3002
        %v3004 = vsel %vm1025, %v3000, 0.0
        %3005 = vadd.xlane.f32.xlu0 %v3004
        %v3006 = vpop.xlane.xlu0 %3005
        %v3007 = vrcp.pop %v3003
        %v3008 = vrcp.pop %v3006
        %v3009 = vmul.f32 %v2998, %v3007
        %v3010 = vmul.f32 %v3000, %v3008
        %v3011 = vpack.c.bf16 %v3010, %v3009
        %v3012 = vpack.c.bf16 %v2334, %v2330
        %v3013 = vmul.f32 %v3009, %v648
        %v3014 = vmul.f32 %v3010, %v649
        %v3015 = vsel %vm1025, %v3013, 0.0
        %3016 = vadd.xlane.f32.xlu0 %v3015
        %v3017 = vpop.xlane.xlu0 %3016
        %v3018 = vsel %vm1025, %v3014, 0.0
        %3019 = vadd.xlane.f32.xlu0 %v3018
        %v3020 = vpop.xlane.xlu0 %3019
        %v3021 = vmul.f32 %v3017, %v1060
        %v3022 = vmul.f32 %v3020, %v1060
        %v3023 = vadd.f32 %v3021, 0.0
        %v3024 = vadd.f32 %v3022, 0.0
        %v3025 = vmul.f32 %v3009, %v654
        %v3026 = vmul.f32 %v3010, %v655
        %v3027 = vsel %vm1025, %v3025, 0.0
        %3028 = vadd.xlane.f32.xlu0 %v3027
        %v3029 = vpop.xlane.xlu0 %3028
        %v3030 = vsel %vm1025, %v3026, 0.0
        %3031 = vadd.xlane.f32.xlu0 %v3030
        %v3032 = vpop.xlane.xlu0 %3031
        %v3033 = vmul.f32 %v3029, %v1076
        %v3034 = vmul.f32 %v3032, %v1076
        %v3035 = vadd.f32 %v3023, %v3033
        %v3036 = vadd.f32 %v3024, %v3034
        %v3037 = vmul.f32 %v3009, %v660
        %v3038 = vmul.f32 %v3010, %v661
        %v3039 = vsel %vm1025, %v3037, 0.0
        %3040 = vadd.xlane.f32.xlu0 %v3039
        %v3041 = vpop.xlane.xlu0 %3040
        %v3042 = vsel %vm1025, %v3038, 0.0
        %3043 = vadd.xlane.f32.xlu0 %v3042
        %v3044 = vpop.xlane.xlu0 %3043
        %v3045 = vmul.f32 %v3041, %v1092
        %v3046 = vmul.f32 %v3044, %v1092
        %v3047 = vadd.f32 %v3035, %v3045
        %v3048 = vadd.f32 %v3036, %v3046
        %v3049 = vmul.f32 %v3009, %v666
        %v3050 = vmul.f32 %v3010, %v667
        %v3051 = vsel %vm1025, %v3049, 0.0
        %3052 = vadd.xlane.f32.xlu0 %v3051
        %v3053 = vpop.xlane.xlu0 %3052
        %v3054 = vsel %vm1025, %v3050, 0.0
        %3055 = vadd.xlane.f32.xlu0 %v3054
        %v3056 = vpop.xlane.xlu0 %3055
        %v3057 = vmul.f32 %v3053, %v1108
        %v3058 = vmul.f32 %v3056, %v1108
        %v3059 = vadd.f32 %v3047, %v3057
        %v3060 = vadd.f32 %v3048, %v3058
        %v3061 = vmul.f32 %v3009, %v672
        %v3062 = vmul.f32 %v3010, %v673
        %v3063 = vsel %vm1025, %v3061, 0.0
        %3064 = vadd.xlane.f32.xlu0 %v3063
        %v3065 = vpop.xlane.xlu0 %3064
        %v3066 = vsel %vm1025, %v3062, 0.0
        %3067 = vadd.xlane.f32.xlu0 %v3066
        %v3068 = vpop.xlane.xlu0 %3067
        %v3069 = vmul.f32 %v3065, %v1124
        %v3070 = vmul.f32 %v3068, %v1124
        %v3071 = vadd.f32 %v3059, %v3069
        %v3072 = vadd.f32 %v3060, %v3070
        %v3073 = vmul.f32 %v3009, %v678
        %v3074 = vmul.f32 %v3010, %v679
        %v3075 = vsel %vm1025, %v3073, 0.0
        %3076 = vadd.xlane.f32.xlu0 %v3075
        %v3077 = vpop.xlane.xlu0 %3076
        %v3078 = vsel %vm1025, %v3074, 0.0
        %3079 = vadd.xlane.f32.xlu0 %v3078
        %v3080 = vpop.xlane.xlu0 %3079
        %v3081 = vmul.f32 %v3077, %v1140
        %v3082 = vmul.f32 %v3080, %v1140
        %v3083 = vadd.f32 %v3071, %v3081
        %v3084 = vadd.f32 %v3072, %v3082
        %v3085 = vmul.f32 %v3009, %v684
        %v3086 = vmul.f32 %v3010, %v685
        %v3087 = vsel %vm1025, %v3085, 0.0
        %3088 = vadd.xlane.f32.xlu0 %v3087
        %v3089 = vpop.xlane.xlu0 %3088
        %v3090 = vsel %vm1025, %v3086, 0.0
        %3091 = vadd.xlane.f32.xlu0 %v3090
        %v3092 = vpop.xlane.xlu0 %3091
        %v3093 = vmul.f32 %v3089, %v1156
        %v3094 = vmul.f32 %v3092, %v1156
        %v3095 = vadd.f32 %v3083, %v3093
        %v3096 = vadd.f32 %v3084, %v3094
        %v3097 = vmul.f32 %v3009, %v690
        %v3098 = vmul.f32 %v3010, %v691
        %v3099 = vsel %vm1025, %v3097, 0.0
        %3100 = vadd.xlane.f32.xlu0 %v3099
        %v3101 = vpop.xlane.xlu0 %3100
        %v3102 = vsel %vm1025, %v3098, 0.0
        %3103 = vadd.xlane.f32.xlu0 %v3102
        %v3104 = vpop.xlane.xlu0 %3103
        %v3105 = vmul.f32 %v3101, %v1172
        %v3106 = vmul.f32 %v3104, %v1172
        %v3107 = vadd.f32 %v3095, %v3105
        %v3108 = vadd.f32 %v3096, %v3106
        %v3109 = vmul.f32 %v3009, %v696
        %v3110 = vmul.f32 %v3010, %v697
        %v3111 = vsel %vm1025, %v3109, 0.0
        %3112 = vadd.xlane.f32.xlu0 %v3111
        %v3113 = vpop.xlane.xlu0 %3112
        %v3114 = vsel %vm1025, %v3110, 0.0
        %3115 = vadd.xlane.f32.xlu0 %v3114
        %v3116 = vpop.xlane.xlu0 %3115
        %v3117 = vmul.f32 %v3113, %v1188
        %v3118 = vmul.f32 %v3116, %v1188
        %v3119 = vadd.f32 %v3107, %v3117
        %v3120 = vadd.f32 %v3108, %v3118
        %v3121 = vpack.c.bf16 %v3120, %v3119
        %v3123 = vsel %vm1199, %v3121, 0
        %3125 = vmatprep.subr.bf16.mxu0 0
        %3126 = vmatpush1.bf16.msra.mxu0 0
        %3127 = vmatprep.subr.bf16.mxu0 0
        %3128 = vmatpush1.bf16.msra.mxu0 0
        %3129 = vmatprep.subr.bf16.mxu0 0
        %3130 = vmatpush1.bf16.msra.mxu0 0
        %3131 = vmatprep.subr.bf16.mxu0 0
        %3132 = vmatpush1.bf16.msra.mxu0 0
        %3133 = vmatprep.subr.bf16.mxu0 0
        %3134 = vmatpush1.bf16.msra.mxu0 0
        %3135 = vmatprep.subr.bf16.mxu0 0
        %3136 = vmatpush1.bf16.msra.mxu0 0
        %3137 = vmatprep.subr.bf16.mxu0 0
        %3138 = vmatpush1.bf16.msra.mxu0 0
        %3139 = vmatprep.subr.bf16.mxu0 0
        %3140 = vmatpush1.bf16.msra.mxu0 %v2696
        %3141 = vmatprep.subr.bf16.mxu0 0
        %3142 = vmatpush2.bf16.msra.mxu0 0
        %3143 = vmatprep.subr.bf16.mxu0 0
        %3144 = vmatpush2.bf16.msra.mxu0 0
        %3145 = vmatprep.subr.bf16.mxu0 0
        %3146 = vmatpush2.bf16.msra.mxu0 0
        %3147 = vmatprep.subr.bf16.mxu0 0
        %3148 = vmatpush2.bf16.msra.mxu0 0
        %3149 = vmatprep.subr.bf16.mxu0 0
        %3150 = vmatpush2.bf16.msra.mxu0 0
        %3151 = vmatprep.subr.bf16.mxu0 0
        %3152 = vmatpush2.bf16.msra.mxu0 0
        %3153 = vmatprep.subr.bf16.mxu0 0
        %3154 = vmatpush2.bf16.msra.mxu0 0
        %3155 = vmatprep.subr.bf16.mxu0 0
        %3156 = vmatpush2.bf16.msra.mxu0 0
        %3157 = vmatprep.mubr.bf16.mxu0 0
        %3158 = vmatmul.mubr.bf16.gmra.mxu0 %v3123
        %v3159 = vpop.f32.mrf.mxu0
        %v3160 = vadd.f32 0.0, %v3159
        %v3161 = vpop.f32.mrf.mxu0
        %v3162 = vpop.f32.mrf.mxu0
        %v3163 = vadd.f32 0.0, %v3162
        %v3164 = vpop.f32.mrf.mxu0
        %3165 = vdwg.mxu0
        %3167 = vrot.lane.b32.xlu0 %v2345, 8
        %v3168 = vpop.permute.xlu0 %3167
        %3169 = vrot.lane.b32.xlu0 %v3012, 8
        %v3170 = vpop.permute.xlu0 %3169
        %v3171 = vsel %vm1683, %v3168, %v3170
        %v3174 = vsel %vm1025, %v3011, 0
        %3176 = vmatprep.subr.bf16.mxu0 0
        %3177 = vmatpush1.bf16.msra.mxu0 0
        %3178 = vmatprep.subr.bf16.mxu0 0
        %3179 = vmatpush1.bf16.msra.mxu0 0
        %3180 = vmatprep.subr.bf16.mxu0 0
        %3181 = vmatpush1.bf16.msra.mxu0 0
        %3182 = vmatprep.subr.bf16.mxu0 0
        %3183 = vmatpush1.bf16.msra.mxu0 0
        %3184 = vmatprep.subr.bf16.mxu0 0
        %3185 = vmatpush1.bf16.msra.mxu0 0
        %3186 = vmatprep.subr.bf16.mxu0 0
        %3187 = vmatpush1.bf16.msra.mxu0 0
        %3188 = vmatprep.subr.bf16.mxu0 0
        %3189 = vmatpush1.bf16.msra.mxu0 0
        %3190 = vmatprep.subr.bf16.mxu0 0
        %3191 = vmatpush1.bf16.msra.mxu0 %v3171
        %3192 = vmatprep.subr.bf16.mxu0 0
        %3193 = vmatpush2.bf16.msra.mxu0 0
        %3194 = vmatprep.subr.bf16.mxu0 0
        %3195 = vmatpush2.bf16.msra.mxu0 0
        %3196 = vmatprep.subr.bf16.mxu0 0
        %3197 = vmatpush2.bf16.msra.mxu0 0
        %3198 = vmatprep.subr.bf16.mxu0 0
        %3199 = vmatpush2.bf16.msra.mxu0 0
        %3200 = vmatprep.subr.bf16.mxu0 0
        %3201 = vmatpush2.bf16.msra.mxu0 0
        %3202 = vmatprep.subr.bf16.mxu0 0
        %3203 = vmatpush2.bf16.msra.mxu0 0
        %3204 = vmatprep.subr.bf16.mxu0 0
        %3205 = vmatpush2.bf16.msra.mxu0 0
        %3206 = vmatprep.subr.bf16.mxu0 0
        %3207 = vmatpush2.bf16.msra.mxu0 0
        %3208 = vmatprep.mubr.bf16.mxu0 0
        %3209 = vmatmul.mubr.bf16.gmra.mxu0 %v3174
        %v3210 = vpop.f32.mrf.mxu0
        %v3211 = vadd.f32 %v3160, %v3210
        %v3212 = vpop.f32.mrf.mxu0
        %v3213 = vpop.f32.mrf.mxu0
        %v3214 = vadd.f32 %v3163, %v3213
        %v3215 = vpop.f32.mrf.mxu0
        %3216 = vdwg.mxu0
        %3219 = vrot.lane.b32.xlu0 %v3211, 24
        %v3220 = vpop.permute.xlu0 %3219
        %3221 = vrot.lane.b32.xlu0 %v3214, 24
        %v3222 = vpop.permute.xlu0 %3221
        %v3225 = vsel %vm820, %v2780, %v3220
        %v3226 = vsel %vm820, %v2783, %v3222
        %s3227 = scalar_lea.vmem %s4, 24
        %v3228 = vld [vmem:[%s3227] sm:$0xf]
        %v3229 = vld [vmem:[%s3227 + $0x4] sm:$0xf]
        %v3230 = vld [vmem:[%s3227 + $0x8] sm:$0xf]
        %v3231 = vld [vmem:[%s3227 + $0xc] sm:$0xf]
        %v3232 = vld [vmem:[%s3227 + $0x10] sm:$0xf]
        %v3233 = vld [vmem:[%s3227 + $0x14] sm:$0xf]
        %v3234 = vpack.c.bf16 %v3226, %v3225
        %s3235 = scalar_lea.vmem %s5, 1
        %v3236 = vld [vmem:[%s3235] sm:$0x1]
        %v3238 = vlaneseq
        %v3239 = vshrl.u32 %v3238, 7
        %v3240 = vsub.s32 0, %v3239
        %v3241 = vrot.slane %v3236, %v3240
        %v3249 = vunpack.c.l.b16 %v3228
        %v3250 = vunpack.c.l.b16 %v3229
        %v3251 = vunpack.c.l.b16 %v3230
        %v3252 = vunpack.c.l.b16 %v3231
        %v3253 = vunpack.c.l.b16 %v3232
        %v3254 = vunpack.c.l.b16 %v3233
        %v3255 = vpack.c.b16 %v3250, %v3249
        %v3256 = vpack.c.b16 %v3252, %v3251
        %v3257 = vpack.c.b16 %v3254, %v3253
        %v3262 = vsel %vm760, %v3234, 0
        %3264 = vmatprep.subr.bf16.mxu0 0
        %3265 = vmatpush1.bf16.msra.mxu0 0
        %3266 = vmatprep.subr.bf16.mxu0 0
        %3267 = vmatpush1.bf16.msra.mxu0 0
        %3268 = vmatprep.subr.bf16.mxu0 0
        %3269 = vmatpush1.bf16.msra.mxu0 0
        %3270 = vmatprep.subr.bf16.mxu0 0
        %3271 = vmatpush1.bf16.msra.mxu0 0
        %3272 = vmatprep.subr.bf16.mxu0 0
        %3273 = vmatpush1.bf16.msra.mxu0 0
        %3274 = vmatprep.subr.bf16.mxu0 0
        %3275 = vmatpush1.bf16.msra.mxu0 %v3257
        %3276 = vmatprep.subr.bf16.mxu0 0
        %3277 = vmatpush1.bf16.msra.mxu0 %v3256
        %3278 = vmatprep.subr.bf16.mxu0 0
        %3279 = vmatpush1.bf16.msra.mxu0 %v3255
        %3280 = vmatprep.subr.bf16.mxu0 0
        %3281 = vmatpush2.bf16.msra.mxu0 0
        %3282 = vmatprep.subr.bf16.mxu0 0
        %3283 = vmatpush2.bf16.msra.mxu0 0
        %3284 = vmatprep.subr.bf16.mxu0 0
        %3285 = vmatpush2.bf16.msra.mxu0 0
        %3286 = vmatprep.subr.bf16.mxu0 0
        %3287 = vmatpush2.bf16.msra.mxu0 0
        %3288 = vmatprep.subr.bf16.mxu0 0
        %3289 = vmatpush2.bf16.msra.mxu0 0
        %3290 = vmatprep.subr.bf16.mxu0 0
        %3291 = vmatpush2.bf16.msra.mxu0 0
        %3292 = vmatprep.subr.bf16.mxu0 0
        %3293 = vmatpush2.bf16.msra.mxu0 0
        %3294 = vmatprep.subr.bf16.mxu0 0
        %3295 = vmatpush2.bf16.msra.mxu0 0
        %3296 = vmatprep.mubr.bf16.mxu0 0
        %3297 = vmatmul.mubr.bf16.gmra.mxu0 %v3262
        %v3298 = vpop.f32.mrf.mxu0
        %v3299 = vadd.f32 %v3241, %v3298
        %v3300 = vpop.f32.mrf.mxu0
        %v3301 = vpop.f32.mrf.mxu0
        %v3302 = vadd.f32 %v3241, %v3301
        %v3303 = vpop.f32.mrf.mxu0
        %3304 = vdwg.mxu0
        %v3305 = vadd.f32 %v2237, %v3299
        %v3306 = vadd.f32 %v2238, %v3302
        %s3307 = scalar_lea.vmem %s8, 1
        %v3308 = vld [vmem:[%s3307] sm:$0x1]
        %s3309 = scalar_lea.vmem %s9, 1
        %v3310 = vld [vmem:[%s3309] sm:$0x1]
        %v3311 = vsel %vm760, %v3305, 0.0
        %3312 = vadd.xlane.f32.xlu0 %v3311
        %v3313 = vpop.xlane.xlu0 %3312
        %v3314 = vsel %vm760, %v3306, 0.0
        %3315 = vadd.xlane.f32.xlu0 %v3314
        %v3316 = vpop.xlane.xlu0 %3315
        %v3317 = vmul.f32 %v3313, %v1826
        %v3318 = vmul.f32 %v3316, %v1826
        %v3319 = vsub.f32 %v3305, %v3317
        %v3320 = vsub.f32 %v3306, %v3318
        %v3321 = vmul.f32 %v3319, %v3319
        %v3322 = vmul.f32 %v3320, %v3320
        %v3323 = vsel %vm760, %v3321, 0.0
        %3324 = vadd.xlane.f32.xlu0 %v3323
        %v3325 = vpop.xlane.xlu0 %3324
        %v3326 = vsel %vm760, %v3322, 0.0
        %3327 = vadd.xlane.f32.xlu0 %v3326
        %v3328 = vpop.xlane.xlu0 %3327
        %v3329 = vmul.f32 %v3325, %v1826
        %v3330 = vmul.f32 %v3328, %v1826
        %v3331 = vadd.f32 %v3329, 1e-05
        %v3332 = vadd.f32 %v3330, 1e-05
        %v3333 = vrsqrt.pop %v3331
        %v3334 = vrsqrt.pop %v3332
        %v3335 = vmul.f32 %v3319, %v3333
        %v3336 = vmul.f32 %v3320, %v3334
        %v3338 = vlaneseq
        %v3339 = vshrl.u32 %v3338, 7
        %v3340 = vsub.s32 0, %v3339
        %v3341 = vrot.slane %v3308, %v3340
        %v3343 = vmul.f32 %v3335, %v3341
        %v3344 = vmul.f32 %v3336, %v3341
        %v3346 = vlaneseq
        %v3347 = vshrl.u32 %v3346, 7
        %v3348 = vsub.s32 0, %v3347
        %v3349 = vrot.slane %v3310, %v3348
        %v3351 = vadd.f32 %v3343, %v3349
        %v3352 = vadd.f32 %v3344, %v3349
        %v3353 = vmul.f32 %v3351, %v636
        %v3354 = vmul.f32 %v3352, %v637
        %s3355 = scalar_lea.vmem %s10, 72
        %v3356 = vld [vmem:[%s3355] sm:$0xf]
        %v3357 = vld [vmem:[%s3355 + $0x4] sm:$0xf]
        %v3358 = vld [vmem:[%s3355 + $0x8] sm:$0xf]
        %v3359 = vld [vmem:[%s3355 + $0xc] sm:$0xf]
        %v3360 = vld [vmem:[%s3355 + $0x10] sm:$0xf]
        %v3361 = vld [vmem:[%s3355 + $0x14] sm:$0xf]
        %v3362 = vld [vmem:[%s3355 + $0x18] sm:$0xf]
        %v3363 = vld [vmem:[%s3355 + $0x1c] sm:$0xf]
        %v3364 = vld [vmem:[%s3355 + $0x20] sm:$0xf]
        %v3365 = vld [vmem:[%s3355 + $0x24] sm:$0xf]
        %v3366 = vld [vmem:[%s3355 + $0x28] sm:$0xf]
        %v3367 = vld [vmem:[%s3355 + $0x2c] sm:$0xf]
        %v3368 = vld [vmem:[%s3355 + $0x30] sm:$0xf]
        %v3369 = vld [vmem:[%s3355 + $0x34] sm:$0xf]
        %v3370 = vld [vmem:[%s3355 + $0x38] sm:$0xf]
        %v3371 = vld [vmem:[%s3355 + $0x3c] sm:$0xf]
        %v3372 = vld [vmem:[%s3355 + $0x40] sm:$0xf]
        %v3373 = vld [vmem:[%s3355 + $0x44] sm:$0xf]
        %s3374 = scalar_lea.vmem %s11, 1
        %v3375 = vld [vmem:[%s3374] sm:$0x1]
        %3376 = vst.msk [vmem:[#allocation2 + $0x1] sm:$0xff] %vm760, %v3353
        %3377 = vst.msk [vmem:[#allocation2 + $0x9] sm:$0xff] %vm760, %v3354
        %v3378 = vld [vmem:[#allocation2] sm:$0xff]
        %v3379 = vld [vmem:[#allocation2 + $0x8] sm:$0xff]
        %v3380 = vld [vmem:[#allocation2 + $0x1] sm:$0xff]
        %v3381 = vld [vmem:[#allocation2 + $0x9] sm:$0xff]
        %v3382 = vld [vmem:[#allocation2 + $0x2] sm:$0xff]
        %v3383 = vld [vmem:[#allocation2 + $0xa] sm:$0xff]
        %3386 = vrot.lane.b32.xlu0 %v3380, 48
        %v3387 = vpop.permute.xlu0 %3386
        %3388 = vrot.lane.b32.xlu0 %v3381, 48
        %v3389 = vpop.permute.xlu0 %3388
        %3394 = vrot.lane.b32.xlu0 %v3382, 96
        %v3395 = vpop.permute.xlu0 %3394
        %3396 = vrot.lane.b32.xlu0 %v3383, 96
        %v3397 = vpop.permute.xlu0 %3396
        %v3400 = vsel %vm760, %v3378, %v3387
        %v3401 = vsel %vm760, %v3379, %v3389
        %v3402 = vsel %vm1910, %v3400, %v3395
        %v3403 = vsel %vm1910, %v3401, %v3397
        %v3404 = vpack.c.bf16 %v3403, %v3402
        %v3405 = vpack.c.bf16 %v3397, %v3395
        %v3407 = vlaneseq
        %v3408 = vshrl.u32 %v3407, 7
        %v3409 = vsub.s32 0, %v3408
        %v3410 = vrot.slane %v3375, %v3409
        %v3430 = vunpack.c.l.b16 %v3356
        %v3431 = vunpack.c.l.b16 %v3357
        %v3432 = vunpack.c.l.b16 %v3358
        %v3433 = vunpack.c.l.b16 %v3359
        %v3434 = vunpack.c.l.b16 %v3360
        %v3435 = vunpack.c.l.b16 %v3361
        %v3436 = vunpack.c.l.b16 %v3362
        %v3437 = vunpack.c.l.b16 %v3363
        %v3438 = vunpack.c.l.b16 %v3364
        %v3439 = vunpack.c.l.b16 %v3365
        %v3440 = vunpack.c.l.b16 %v3366
        %v3441 = vunpack.c.l.b16 %v3367
        %v3442 = vunpack.c.l.b16 %v3368
        %v3443 = vunpack.c.l.b16 %v3369
        %v3444 = vunpack.c.l.b16 %v3370
        %v3445 = vunpack.c.l.b16 %v3371
        %v3446 = vunpack.c.l.b16 %v3372
        %v3447 = vunpack.c.l.b16 %v3373
        %v3448 = vpack.c.b16 %v3431, %v3430
        %v3449 = vpack.c.b16 %v3433, %v3432
        %v3450 = vpack.c.b16 %v3435, %v3434
        %v3451 = vpack.c.b16 %v3437, %v3436
        %v3452 = vpack.c.b16 %v3439, %v3438
        %v3453 = vpack.c.b16 %v3441, %v3440
        %v3454 = vpack.c.b16 %v3443, %v3442
        %v3455 = vpack.c.b16 %v3445, %v3444
        %v3456 = vpack.c.b16 %v3447, %v3446
        %v3467 = vsel %vm1025, %v3405, 0
        %3469 = vmatprep.subr.bf16.mxu0 0
        %3470 = vmatpush1.bf16.msra.mxu0 %v3455
        %3471 = vmatprep.subr.bf16.mxu0 0
        %3472 = vmatpush1.bf16.msra.mxu0 %v3454
        %3473 = vmatprep.subr.bf16.mxu0 0
        %3474 = vmatpush1.bf16.msra.mxu0 %v3453
        %3475 = vmatprep.subr.bf16.mxu0 0
        %3476 = vmatpush1.bf16.msra.mxu0 %v3452
        %3477 = vmatprep.subr.bf16.mxu0 0
        %3478 = vmatpush1.bf16.msra.mxu0 %v3451
        %3479 = vmatprep.subr.bf16.mxu0 0
        %3480 = vmatpush1.bf16.msra.mxu0 %v3450
        %3481 = vmatprep.subr.bf16.mxu0 0
        %3482 = vmatpush1.bf16.msra.mxu0 %v3449
        %3483 = vmatprep.subr.bf16.mxu0 0
        %3484 = vmatpush1.bf16.msra.mxu0 %v3448
        %3485 = vmatprep.subr.bf16.mxu0 0
        %3486 = vmatpush2.bf16.msra.mxu0 0
        %3487 = vmatprep.subr.bf16.mxu0 0
        %3488 = vmatpush2.bf16.msra.mxu0 0
        %3489 = vmatprep.subr.bf16.mxu0 0
        %3490 = vmatpush2.bf16.msra.mxu0 0
        %3491 = vmatprep.subr.bf16.mxu0 0
        %3492 = vmatpush2.bf16.msra.mxu0 0
        %3493 = vmatprep.subr.bf16.mxu0 0
        %3494 = vmatpush2.bf16.msra.mxu0 0
        %3495 = vmatprep.subr.bf16.mxu0 0
        %3496 = vmatpush2.bf16.msra.mxu0 0
        %3497 = vmatprep.subr.bf16.mxu0 0
        %3498 = vmatpush2.bf16.msra.mxu0 0
        %3499 = vmatprep.subr.bf16.mxu0 0
        %3500 = vmatpush2.bf16.msra.mxu0 %v3456
        %3501 = vmatprep.mubr.bf16.mxu0 %v3467
        %3502 = vmatmul.mubr.bf16.gmra.mxu0 %v3404
        %v3503 = vpop.f32.mrf.mxu0
        %v3504 = vadd.f32 %v3410, %v3503
        %v3505 = vpop.f32.mrf.mxu0
        %v3506 = vpop.f32.mrf.mxu0
        %v3507 = vadd.f32 %v3410, %v3506
        %v3508 = vpop.f32.mrf.mxu0
        %3509 = vdwg.mxu0
        %v3510 = vmax.f32 %v3504, 0.0
        %v3511 = vmax.f32 %v3507, 0.0
        %v3512 = vmul.f32 %v3510, %v636
        %v3513 = vmul.f32 %v3511, %v637
        %s3514 = scalar_lea.vmem %s12, 96
        %v3515 = vld [vmem:[%s3514] sm:$0xf]
        %v3516 = vld [vmem:[%s3514 + $0x4] sm:$0xf]
        %v3517 = vld [vmem:[%s3514 + $0x8] sm:$0xf]
        %v3518 = vld [vmem:[%s3514 + $0xc] sm:$0xf]
        %v3519 = vld [vmem:[%s3514 + $0x10] sm:$0xf]
        %v3520 = vld [vmem:[%s3514 + $0x14] sm:$0xf]
        %v3521 = vld [vmem:[%s3514 + $0x18] sm:$0xf]
        %v3522 = vld [vmem:[%s3514 + $0x1c] sm:$0xf]
        %v3523 = vld [vmem:[%s3514 + $0x20] sm:$0xf]
        %v3524 = vld [vmem:[%s3514 + $0x24] sm:$0xf]
        %v3525 = vld [vmem:[%s3514 + $0x28] sm:$0xf]
        %v3526 = vld [vmem:[%s3514 + $0x2c] sm:$0xf]
        %v3527 = vld [vmem:[%s3514 + $0x30] sm:$0xf]
        %v3528 = vld [vmem:[%s3514 + $0x34] sm:$0xf]
        %v3529 = vld [vmem:[%s3514 + $0x38] sm:$0xf]
        %v3530 = vld [vmem:[%s3514 + $0x3c] sm:$0xf]
        %v3531 = vld [vmem:[%s3514 + $0x40] sm:$0xf]
        %v3532 = vld [vmem:[%s3514 + $0x44] sm:$0xf]
        %v3533 = vld [vmem:[%s3514 + $0x48] sm:$0xf]
        %v3534 = vld [vmem:[%s3514 + $0x4c] sm:$0xf]
        %v3535 = vld [vmem:[%s3514 + $0x50] sm:$0xf]
        %v3536 = vld [vmem:[%s3514 + $0x54] sm:$0xf]
        %v3537 = vld [vmem:[%s3514 + $0x58] sm:$0xf]
        %v3538 = vld [vmem:[%s3514 + $0x5c] sm:$0xf]
        %s3539 = scalar_lea.vmem %s13, 1
        %v3540 = vld [vmem:[%s3539] sm:$0x1]
        %3541 = vst.msk [vmem:[#allocation2 + $0x1] sm:$0xff] %vm2048, %v3512
        %3542 = vst.msk [vmem:[#allocation2 + $0x9] sm:$0xff] %vm2048, %v3513
        %v3543 = vld [vmem:[#allocation2] sm:$0xff]
        %v3544 = vld [vmem:[#allocation2 + $0x8] sm:$0xff]
        %v3545 = vld [vmem:[#allocation2 + $0x1] sm:$0xff]
        %v3546 = vld [vmem:[#allocation2 + $0x9] sm:$0xff]
        %v3547 = vld [vmem:[#allocation2 + $0x2] sm:$0xff]
        %v3548 = vld [vmem:[#allocation2 + $0xa] sm:$0xff]
        %3551 = vrot.lane.b32.xlu0 %v3545, 64
        %v3552 = vpop.permute.xlu0 %3551
        %3553 = vrot.lane.b32.xlu0 %v3546, 64
        %v3554 = vpop.permute.xlu0 %3553
        %v3557 = vsel %vm2048, %v3543, %v3552
        %v3558 = vsel %vm2048, %v3544, %v3554
        %v3559 = vpack.c.bf16 %v3558, %v3557
        %v3560 = vpack.c.bf16 %v3548, %v3547
        %v3562 = vlaneseq
        %v3563 = vshrl.u32 %v3562, 7
        %v3564 = vsub.s32 0, %v3563
        %v3565 = vrot.slane %v3540, %v3564
        %v3591 = vunpack.c.l.b16 %v3515
        %v3592 = vunpack.c.l.b16 %v3516
        %v3593 = vunpack.c.l.b16 %v3517
        %v3594 = vunpack.c.l.b16 %v3518
        %v3595 = vunpack.c.l.b16 %v3519
        %v3596 = vunpack.c.l.b16 %v3520
        %v3597 = vunpack.c.l.b16 %v3521
        %v3598 = vunpack.c.l.b16 %v3522
        %v3599 = vunpack.c.l.b16 %v3523
        %v3600 = vunpack.c.l.b16 %v3524
        %v3601 = vunpack.c.l.b16 %v3525
        %v3602 = vunpack.c.l.b16 %v3526
        %v3603 = vunpack.c.l.b16 %v3527
        %v3604 = vunpack.c.l.b16 %v3528
        %v3605 = vunpack.c.l.b16 %v3529
        %v3606 = vunpack.c.l.b16 %v3530
        %v3607 = vunpack.c.l.b16 %v3531
        %v3608 = vunpack.c.l.b16 %v3532
        %v3609 = vunpack.c.l.b16 %v3533
        %v3610 = vunpack.c.l.b16 %v3534
        %v3611 = vunpack.c.l.b16 %v3535
        %v3612 = vunpack.c.l.b16 %v3536
        %v3613 = vunpack.c.l.b16 %v3537
        %v3614 = vunpack.c.l.b16 %v3538
        %v3615 = vpack.c.b16 %v3592, %v3591
        %v3616 = vpack.c.b16 %v3594, %v3593
        %v3617 = vpack.c.b16 %v3596, %v3595
        %v3618 = vpack.c.b16 %v3598, %v3597
        %v3619 = vpack.c.b16 %v3600, %v3599
        %v3620 = vpack.c.b16 %v3602, %v3601
        %v3621 = vpack.c.b16 %v3604, %v3603
        %v3622 = vpack.c.b16 %v3606, %v3605
        %v3623 = vpack.c.b16 %v3608, %v3607
        %v3624 = vpack.c.b16 %v3610, %v3609
        %v3625 = vpack.c.b16 %v3612, %v3611
        %v3626 = vpack.c.b16 %v3614, %v3613
        %v3640 = vsel %vm2048, %v3560, 0
        %3642 = vmatprep.subr.bf16.mxu0 0
        %3643 = vmatpush1.bf16.msra.mxu0 %v3622
        %3644 = vmatprep.subr.bf16.mxu0 0
        %3645 = vmatpush1.bf16.msra.mxu0 %v3621
        %3646 = vmatprep.subr.bf16.mxu0 0
        %3647 = vmatpush1.bf16.msra.mxu0 %v3620
        %3648 = vmatprep.subr.bf16.mxu0 0
        %3649 = vmatpush1.bf16.msra.mxu0 %v3619
        %3650 = vmatprep.subr.bf16.mxu0 0
        %3651 = vmatpush1.bf16.msra.mxu0 %v3618
        %3652 = vmatprep.subr.bf16.mxu0 0
        %3653 = vmatpush1.bf16.msra.mxu0 %v3617
        %3654 = vmatprep.subr.bf16.mxu0 0
        %3655 = vmatpush1.bf16.msra.mxu0 %v3616
        %3656 = vmatprep.subr.bf16.mxu0 0
        %3657 = vmatpush1.bf16.msra.mxu0 %v3615
        %3658 = vmatprep.subr.bf16.mxu0 0
        %3659 = vmatpush2.bf16.msra.mxu0 0
        %3660 = vmatprep.subr.bf16.mxu0 0
        %3661 = vmatpush2.bf16.msra.mxu0 0
        %3662 = vmatprep.subr.bf16.mxu0 0
        %3663 = vmatpush2.bf16.msra.mxu0 0
        %3664 = vmatprep.subr.bf16.mxu0 0
        %3665 = vmatpush2.bf16.msra.mxu0 0
        %3666 = vmatprep.subr.bf16.mxu0 0
        %3667 = vmatpush2.bf16.msra.mxu0 %v3626
        %3668 = vmatprep.subr.bf16.mxu0 0
        %3669 = vmatpush2.bf16.msra.mxu0 %v3625
        %3670 = vmatprep.subr.bf16.mxu0 0
        %3671 = vmatpush2.bf16.msra.mxu0 %v3624
        %3672 = vmatprep.subr.bf16.mxu0 0
        %3673 = vmatpush2.bf16.msra.mxu0 %v3623
        %3674 = vmatprep.mubr.bf16.mxu0 %v3640
        %3675 = vmatmul.mubr.bf16.gmra.mxu0 %v3559
        %v3676 = vpop.f32.mrf.mxu0
        %v3677 = vadd.f32 %v3565, %v3676
        %v3678 = vpop.f32.mrf.mxu0
        %v3679 = vpop.f32.mrf.mxu0
        %v3680 = vadd.f32 %v3565, %v3679
        %v3681 = vpop.f32.mrf.mxu0
        %3682 = vdwg.mxu0
        %v3683 = vmul.f32 %v3677, %v636
        %v3684 = vmul.f32 %v3680, %v637
        %v3685 = vadd.f32 %v3351, %v3683
        %v3686 = vadd.f32 %v3352, %v3684
        %s3687 = scalar_lea.vmem %s14, 1
        %v3688 = vld [vmem:[%s3687] sm:$0x1]
        %s3689 = scalar_lea.vmem %s15, 1
        %v3690 = vld [vmem:[%s3689] sm:$0x1]
        %v3691 = vsel %vm760, %v3685, 0.0
        %3692 = vadd.xlane.f32.xlu0 %v3691
        %v3693 = vpop.xlane.xlu0 %3692
        %v3694 = vsel %vm760, %v3686, 0.0
        %3695 = vadd.xlane.f32.xlu0 %v3694
        %v3696 = vpop.xlane.xlu0 %3695
        %v3697 = vmul.f32 %v3693, %v1826
        %v3698 = vmul.f32 %v3696, %v1826
        %v3699 = vsub.f32 %v3685, %v3697
        %v3700 = vsub.f32 %v3686, %v3698
        %v3701 = vmul.f32 %v3699, %v3699
        %v3702 = vmul.f32 %v3700, %v3700
        %v3703 = vsel %vm760, %v3701, 0.0
        %3704 = vadd.xlane.f32.xlu0 %v3703
        %v3705 = vpop.xlane.xlu0 %3704
        %v3706 = vsel %vm760, %v3702, 0.0
        %3707 = vadd.xlane.f32.xlu0 %v3706
        %v3708 = vpop.xlane.xlu0 %3707
        %v3709 = vmul.f32 %v3705, %v1826
        %v3710 = vmul.f32 %v3708, %v1826
        %v3711 = vadd.f32 %v3709, 1e-05
        %v3712 = vadd.f32 %v3710, 1e-05
        %v3713 = vrsqrt.pop %v3711
        %v3714 = vrsqrt.pop %v3712
        %v3715 = vmul.f32 %v3699, %v3713
        %v3716 = vmul.f32 %v3700, %v3714
        %v3718 = vlaneseq
        %v3719 = vshrl.u32 %v3718, 7
        %v3720 = vsub.s32 0, %v3719
        %v3721 = vrot.slane %v3688, %v3720
        %v3723 = vmul.f32 %v3715, %v3721
        %v3724 = vmul.f32 %v3716, %v3721
        %v3726 = vlaneseq
        %v3727 = vshrl.u32 %v3726, 7
        %v3728 = vsub.s32 0, %v3727
        %v3729 = vrot.slane %v3690, %v3728
        %v3731 = vadd.f32 %v3723, %v3729
        %v3732 = vadd.f32 %v3724, %v3729
        %v3733 = vmul.f32 %v3731, %v636
        %v3734 = vmul.f32 %v3732, %v637
        %3735 = vst.msk [vmem:[%s613] sm:$0xff] %vm760, %v3733
        %3736 = vst.msk [vmem:[%s613 + $0x8] sm:$0xff] %vm760, %v3734
        %v3737 = vld [vmem:[%s16] sm:$0xf]
        %v3738 = vld [vmem:[%s16 + $0x4] sm:$0xf]
        %v3739 = vld [vmem:[%s16 + $0x8] sm:$0xf]
        %v3740 = vld [vmem:[%s16 + $0xc] sm:$0xf]
        %v3741 = vld [vmem:[%s16 + $0x10] sm:$0xf]
        %v3742 = vld [vmem:[%s16 + $0x14] sm:$0xf]
        %v3743 = vpack.c.bf16 %v3734, %v3733
        %v3744 = vld [vmem:[%s17] sm:$0x1]
        %v3746 = vlaneseq
        %v3747 = vshrl.u32 %v3746, 7
        %v3748 = vsub.s32 0, %v3747
        %v3749 = vrot.slane %v3744, %v3748
        %v3757 = vunpack.c.l.b16 %v3737
        %v3758 = vunpack.c.l.b16 %v3738
        %v3759 = vunpack.c.l.b16 %v3739
        %v3760 = vunpack.c.l.b16 %v3740
        %v3761 = vunpack.c.l.b16 %v3741
        %v3762 = vunpack.c.l.b16 %v3742
        %v3763 = vpack.c.b16 %v3758, %v3757
        %v3764 = vpack.c.b16 %v3760, %v3759
        %v3765 = vpack.c.b16 %v3762, %v3761
        %v3770 = vsel %vm760, %v3743, 0
        %3772 = vmatprep.subr.bf16.mxu0 0
        %3773 = vmatpush1.bf16.msra.mxu0 0
        %3774 = vmatprep.subr.bf16.mxu0 0
        %3775 = vmatpush1.bf16.msra.mxu0 0
        %3776 = vmatprep.subr.bf16.mxu0 0
        %3777 = vmatpush1.bf16.msra.mxu0 0
        %3778 = vmatprep.subr.bf16.mxu0 0
        %3779 = vmatpush1.bf16.msra.mxu0 0
        %3780 = vmatprep.subr.bf16.mxu0 0
        %3781 = vmatpush1.bf16.msra.mxu0 0
        %3782 = vmatprep.subr.bf16.mxu0 0
        %3783 = vmatpush1.bf16.msra.mxu0 %v3765
        %3784 = vmatprep.subr.bf16.mxu0 0
        %3785 = vmatpush1.bf16.msra.mxu0 %v3764
        %3786 = vmatprep.subr.bf16.mxu0 0
        %3787 = vmatpush1.bf16.msra.mxu0 %v3763
        %3788 = vmatprep.subr.bf16.mxu0 0
        %3789 = vmatpush2.bf16.msra.mxu0 0
        %3790 = vmatprep.subr.bf16.mxu0 0
        %3791 = vmatpush2.bf16.msra.mxu0 0
        %3792 = vmatprep.subr.bf16.mxu0 0
        %3793 = vmatpush2.bf16.msra.mxu0 0
        %3794 = vmatprep.subr.bf16.mxu0 0
        %3795 = vmatpush2.bf16.msra.mxu0 0
        %3796 = vmatprep.subr.bf16.mxu0 0
        %3797 = vmatpush2.bf16.msra.mxu0 0
        %3798 = vmatprep.subr.bf16.mxu0 0
        %3799 = vmatpush2.bf16.msra.mxu0 0
        %3800 = vmatprep.subr.bf16.mxu0 0
        %3801 = vmatpush2.bf16.msra.mxu0 0
        %3802 = vmatprep.subr.bf16.mxu0 0
        %3803 = vmatpush2.bf16.msra.mxu0 0
        %3804 = vmatprep.mubr.bf16.mxu0 0
        %3805 = vmatmul.mubr.bf16.gmra.mxu0 %v3770
        %v3806 = vpop.f32.mrf.mxu0
        %v3807 = vadd.f32 %v3749, %v3806
        %v3808 = vpop.f32.mrf.mxu0
        %v3809 = vpop.f32.mrf.mxu0
        %v3810 = vadd.f32 %v3749, %v3809
        %v3811 = vpop.f32.mrf.mxu0
        %3812 = vdwg.mxu0
        %v3813 = vmul.f32 %v3807, %v636
        %v3814 = vmul.f32 %v3810, %v637
        %3815 = vst [vmem:[%s620] sm:$0xff] %v3813
        %3816 = vst [vmem:[%s620 + $0x8] sm:$0xff] %v3814
        %s3817 = sand.u32 %s429, 1
        %s3818 = scalar_lea.sflag [#allocation4], %s3817
        %s3819 = sand.u32 %s429, 1
        %s3820 = smul.addr %s3819, 16
        %s3821 = scalar_lea.vmem [#allocation6], %s3820
        %s3822 = sand.u32 %s455, 1
        %s3823 = scalar_lea.sflag [#allocation8], %s3822
        %s3824 = sand.u32 %s455, 1
        %s3825 = smul.addr %s3824, 16
        %s3826 = scalar_lea.vmem [#allocation7], %s3825
        // Predicated region
        $region97: #{tpu_custom_call.1} parent=91 // pred_check
          %p3827 = pneg %p439
        $region98: #{tpu_custom_call.1} parent=91 // pred_check_branch
          %3829 = sbr.rel (%p3827) target = $region100
        $region99: #{tpu_custom_call.1} parent=91 // pred_region
          %s3831 = ssub.s32 256, 256
          %3832 = vsyncadd %s3818, %s3831
          %s3833 = smul.addr %s38, 2
          %s3834 = smul.addr %s3833, 128
          %s3835 = scalar_lea.hbm %s18, %s3834
          %s3836 = sshll.u32 %s3821, 4
          %s3837 = int_to_ptr.vmem [resolvable:$true] %s3836
          %3842 = dma.vmem_to_hbm [thread:$0]  %s3837, 256, %s3835, %s3818, 128, 128, 8
        $region100: #{tpu_custom_call.1} parent=91 // pred_fallthru
          _
        // Predicated region
        $region101: #{tpu_custom_call.1} parent=91 // pred_check
          %p3843 = pneg %p465
        $region102: #{tpu_custom_call.1} parent=91 // pred_check_branch
          %3845 = sbr.rel (%p3843) target = $region104
        $region103: #{tpu_custom_call.1} parent=91 // pred_region
          %s3847 = ssub.s32 256, 256
          %3848 = vsyncadd %s3823, %s3847
          %s3849 = smul.addr %s38, 2
          %s3850 = smul.addr %s3849, 128
          %s3851 = scalar_lea.hbm %s19, %s3850
          %s3852 = sshll.u32 %s3826, 4
          %s3853 = int_to_ptr.vmem [resolvable:$true] %s3852
          %3858 = dma.vmem_to_hbm [thread:$0]  %s3853, 256, %s3851, %s3823, 128, 128, 8
        $region104: #{tpu_custom_call.1} parent=91 // pred_fallthru
          _
      $region92: #{tpu_custom_call.1} parent=5 // pred_fallthru
        _
      %p3859 = scmp.le.s32.totalorder 2, %s33
      // Predicated region
      $region105: #{tpu_custom_call.1} parent=5 // pred_check
        %p3860 = pneg %p3859
      $region106: #{tpu_custom_call.1} parent=5 // pred_check_branch
        %3862 = sbr.rel (%p3860) target = $region108
      $region107: #{tpu_custom_call.1} parent=5 // pred_region
        %s3863 = ssub.s32 %s33, 2
        // Predicated region
        $region109: #{tpu_custom_call.1} parent=107 // pred_check
          %p3864 = pneg %p445
        $region110: #{tpu_custom_call.1} parent=107 // pred_check_branch
          %3866 = sbr.rel (%p3864) target = $region112
        $region111: #{tpu_custom_call.1} parent=107 // pred_region
          %s3867 = sand.u32 %s430, 1
          %s3868 = scalar_lea.sflag [#allocation4], %s3867
          %s3869 = sand.u32 %s430, 1
          %s3870 = smul.addr %s3869, 16
          %s3871 = scalar_lea.vmem [#allocation6], %s3870
          %3872 = dma.done %s3868, 256
        $region112: #{tpu_custom_call.1} parent=107 // pred_fallthru
          _
        // Predicated region
        $region113: #{tpu_custom_call.1} parent=107 // pred_check
          %p3873 = pneg %p471
        $region114: #{tpu_custom_call.1} parent=107 // pred_check_branch
          %3875 = sbr.rel (%p3873) target = $region116
        $region115: #{tpu_custom_call.1} parent=107 // pred_region
          %s3876 = sand.u32 %s456, 1
          %s3877 = scalar_lea.sflag [#allocation8], %s3876
          %s3878 = sand.u32 %s456, 1
          %s3879 = smul.addr %s3878, 16
          %s3880 = scalar_lea.vmem [#allocation7], %s3879
          %3881 = dma.done %s3877, 256
        $region116: #{tpu_custom_call.1} parent=107 // pred_fallthru
          _
      $region108: #{tpu_custom_call.1} parent=5 // pred_fallthru
        _
    $region6: #{tpu_custom_call.1} parent=1 // loop_footer
      %s37 = sadd.s32 1, %s33
    $region7: #{tpu_custom_call.1} parent=1 // loop_footer_branch
      %32 = sbr.rel target = $region3
    $region8: #{tpu_custom_call.1} parent=1 // loop_exit
      _
    %3882 = vsyncpa [#allocation4], 1
    %s3883 = scalar_lea.sflag [#allocation4], 1
    %3884 = vsyncpa %s3883, 1
    %3885 = vsyncpa [#allocation8], 1
    %s3886 = scalar_lea.sflag [#allocation8], 1
    %3887 = vsyncpa %s3886, 1
    %3888 = vsyncpa [#allocation5], 1
    %s3889 = scalar_lea.sflag [#allocation5], 1
    %3890 = vsyncpa %s3889, 1

</llo_original>
